<compile_context>
chip_gen: v7x
topology: tpu7x:2x2x1
jax: 0.10.0
libtpu: 0.0.40
codegen_flags: <defaults>
</compile_context>

<pallas_src>
import jax
import jax.numpy as jnp
from jax import lax
from jax.experimental import pallas as pl
from jax.experimental.pallas import tpu as pltpu

BN_EPS = 1e-5


# ---------------------------------------------------------------------------
# Fused Pallas kernel (B_TILE batch elements per grid step)
# ---------------------------------------------------------------------------
def _make_bottleneck_kernel(B, H, W, Ho, Wo, stride, has_se):
    HW, HoWo = H * W, Ho * Wo
    has_sel = stride > 1

    def kernel(*refs):
        refs = list(refs)
        x_ref, wa_ref, ba_ref, wbf_ref, bb_ref = refs[:5]
        idx = 5
        sel_ref = None
        if has_sel:
            sel_ref = refs[idx]
            idx += 1
        if has_se:
            w1_ref, b1_ref, w2_ref, b2_ref = refs[idx:idx + 4]
            idx += 4
        wc_ref, bc_ref, o_ref, ypad_ref, col_ref = refs[idx:idx + 5]

        w_b = bb_ref.shape[-1]
        w_out = bc_ref.shape[-1]

        # --- zero ONLY the 1-wide halo of the padded scratch (per step; the
        #     scratch is per-TensorCore so no program_id==0 trick) ------------
        zrow = jnp.zeros((B, 1, W + 2, w_b), jnp.float32)
        zcol = jnp.zeros((B, H, 1, w_b), jnp.float32)
        ypad_ref[:, 0:1, :, :] = zrow
        ypad_ref[:, H + 1:H + 2, :, :] = zrow
        ypad_ref[:, 1:H + 1, 0:1, :] = zcol
        ypad_ref[:, 1:H + 1, W + 1:W + 2, :] = zcol

        # --- conv a (1x1) + folded BN + ReLU; interior of padded scratch -----
        # x block is (B, w_in, HW); contract the channel dim directly (trans-A)
        # so the wrapper never materializes an NHWC copy in HBM.
        for b in range(B):
            ya = lax.dot_general(x_ref[b], wa_ref[...],
                                 (((0,), (0,)), ((), ())),
                                 preferred_element_type=jnp.float32)  # (HW,w_b)
            ya = jnp.maximum(ya + ba_ref[...], 0.0)
            ypad_ref[b, 1:H + 1, 1:W + 1, :] = ya.reshape(H, W, w_b)

        # --- stage the 9 tap windows (contiguous slices only) ----------------
        for t in range(9):
            kh, kw = divmod(t, 3)
            col_ref[:, :, :, t * w_b:(t + 1) * w_b] = \
                ypad_ref[:, kh:kh + H, kw:kw + W, :]

        # --- conv b: ONE big-K matmul (K = 9*w_b) at stride 1 ----------------
        col = col_ref[...].reshape(B * HW, 9 * w_b)
        yb = jnp.dot(col, wbf_ref[...], preferred_element_type=jnp.float32)

        if has_sel:
            # stride-s conv output == stride-1 output subsampled at (s*ho,s*wo);
            # pick those rows with a 0/1 selection matmul (exact, MXU-friendly).
            yb3 = yb.reshape(B, HW, w_b)
            yb = jnp.concatenate(
                [jnp.dot(sel_ref[...], yb3[b],
                         preferred_element_type=jnp.float32)
                 for b in range(B)], axis=0)                  # (B*HoWo, w_b)

        yb = jnp.maximum(yb + bb_ref[...], 0.0)               # (B*HoWo, w_b)

        # --- SE gate, fused ---------------------------------------------------
        if has_se:
            m = jnp.mean(yb.reshape(B, HoWo, w_b), axis=1)    # (B, w_b)
            h = jnp.dot(m, w1_ref[...],
                        preferred_element_type=jnp.float32) + b1_ref[...]
            h = jnp.maximum(h, 0.0)
            g = jnp.dot(h, w2_ref[...],
                        preferred_element_type=jnp.float32) + b2_ref[...]
            gate = jax.nn.sigmoid(g)                          # (B, w_b)
            yb = (yb.reshape(B, HoWo, w_b) * gate[:, None, :]
                  ).reshape(B * HoWo, w_b)

        # --- conv c (1x1) + folded BN (no ReLU) --------------------------------
        yc = jnp.dot(yb, wc_ref[...],
                     preferred_element_type=jnp.float32) + bc_ref[...]
        o_ref[...] = yc.reshape(B, HoWo, w_out).astype(o_ref.dtype)

    return kernel


# ---------------------------------------------------------------------------
# Parameter preparation (BN folding, grouped-conv densification)
# ---------------------------------------------------------------------------
def _bn_fold(gamma, beta, mean, var, eps=BN_EPS):
    scale = gamma / jnp.sqrt(var + eps)
    return scale, beta - mean * scale


def _grouped3x3_tap_weights(w, num_gs):
    """PyTorch grouped-conv weight (C_out, C_in/groups, 3, 3) -> stacked dense
    block-diagonal tap matrices of shape (9, C_in, C_out)."""
    c_out, c_in_g, kh, kw = w.shape
    c_in = c_in_g * num_gs
    c_out_g = c_out // num_gs
    taps = jnp.zeros((kh * kw, c_in, c_out), jnp.float32)
    for g in range(num_gs):
        blk = jnp.transpose(w[g * c_out_g:(g + 1) * c_out_g], (2, 3, 1, 0))
        blk = blk.reshape(kh * kw, c_in_g, c_out_g)
        taps = taps.at[:, g * c_in_g:(g + 1) * c_in_g,
                       g * c_out_g:(g + 1) * c_out_g].set(blk)
    return taps


def _pick_b_tile(n):
    # Batch several images per grid step (fills MXU rows, amortizes ~0.35us
    # per-step overhead) but keep >= 2 grid steps so both v7x cores get work.
    for bt in (8, 4, 2):
        if n % bt == 0 and n // bt >= 2:
            return bt
    return 1


def bottleneck_transform(x_nchw, params, stride):
    x = jnp.asarray(x_nchw, jnp.float32)
    N, w_in, H, W = x.shape
    Ho = (H + 2 - 3) // stride + 1
    Wo = (W + 2 - 3) // stride + 1
    HW, HoWo = H * W, Ho * Wo

    # fold inference BatchNorm into conv weights (f32) + per-channel bias
    sa, ba = _bn_fold(*params["a_bn"])
    wa = params["a_w"][:, :, 0, 0].T * sa[None, :]                # (w_in, w_b)
    w_b = wa.shape[1]

    sb, bb = _bn_fold(*params["b_bn"])
    wb = _grouped3x3_tap_weights(params["b_w"], params["num_gs"])
    wb = wb * sb[None, None, :]                                   # (9, w_b, w_b)
    wbf = wb.reshape(9 * w_b, w_b)                                # big-K weight

    sc, bc = _bn_fold(*params["c_bn"])
    wc = params["c_w"][:, :, 0, 0].T * sc[None, :]                # (w_b, w_out)
    w_out = wc.shape[1]

    B_tile = _pick_b_tile(N)
    grid = (N // B_tile,)

    # x passed as (N, C, H*W): a free reshape of NCHW -> no HBM transpose pass.
    args = [x.reshape(N, w_in, HW), wa, ba.reshape(1, w_b), wbf,
            bb.reshape(1, w_b)]
    specs = [
        pl.BlockSpec((B_tile, w_in, HW), lambda g: (g, 0, 0)),
        pl.BlockSpec((w_in, w_b), lambda g: (0, 0)),
        pl.BlockSpec((1, w_b), lambda g: (0, 0)),
        pl.BlockSpec((9 * w_b, w_b), lambda g: (0, 0)),
        pl.BlockSpec((1, w_b), lambda g: (0, 0)),
    ]

    if stride > 1:
        # 0/1 selection matrix picking the strided rows of the stride-1 output.
        rows = ((jnp.arange(Ho) * stride)[:, None] * W
                + (jnp.arange(Wo) * stride)[None, :]).reshape(-1)
        sel = jax.nn.one_hot(rows, HW, dtype=jnp.float32)         # (HoWo, HW)
        args.append(sel)
        specs.append(pl.BlockSpec((HoWo, HW), lambda g: (0, 0)))

    has_se = "se" in params
    if has_se:
        w1, b1, w2, b2 = params["se"]
        w_se = w1.shape[0]
        args += [w1[:, :, 0, 0].T.astype(jnp.float32),
                 b1.reshape(1, w_se).astype(jnp.float32),
                 w2[:, :, 0, 0].T.astype(jnp.float32),
                 b2.reshape(1, w_b).astype(jnp.float32)]
        specs += [pl.BlockSpec((w_b, w_se), lambda g: (0, 0)),
                  pl.BlockSpec((1, w_se), lambda g: (0, 0)),
                  pl.BlockSpec((w_se, w_b), lambda g: (0, 0)),
                  pl.BlockSpec((1, w_b), lambda g: (0, 0))]

    args += [wc, bc.reshape(1, w_out)]
    specs += [pl.BlockSpec((w_b, w_out), lambda g: (0, 0)),
              pl.BlockSpec((1, w_out), lambda g: (0, 0))]

    flops = 2 * N * (HW * w_in * w_b
                     + HW * (9 * w_b) * w_b
                     + (HoWo * HW * w_b if stride > 1 else 0)
                     + HoWo * w_b * w_out)
    bytes_accessed = 4 * (N * w_in * HW + int(wa.size) + int(wbf.size)
                          + int(wc.size) + N * HoWo * w_out)

    kernel = _make_bottleneck_kernel(B_tile, H, W, Ho, Wo, stride, has_se)
    out = pl.pallas_call(
        kernel,
        out_shape=jax.ShapeDtypeStruct((N, HoWo, w_out), jnp.float32),
        grid=grid,
        in_specs=specs,
        out_specs=pl.BlockSpec((B_tile, HoWo, w_out), lambda g: (g, 0, 0)),
        scratch_shapes=[
            pltpu.VMEM((B_tile, H + 2, W + 2, w_b), jnp.float32),     # padded ya
            pltpu.VMEM((B_tile, H, W, 9 * w_b), jnp.float32),         # im2col
        ],
        compiler_params=pltpu.CompilerParams(
            dimension_semantics=("parallel",)),
        cost_estimate=pl.CostEstimate(
            flops=int(flops),
            transcendentals=int(N * w_b) if has_se else 0,
            bytes_accessed=int(bytes_accessed)),
    )(*args)

    # (N, HoWo, w_out) -> NCHW
    return jnp.transpose(out, (0, 2, 1)).reshape(N, w_out, Ho, Wo)


# ---------------------------------------------------------------------------
# Pure-JAX reference (for correctness check)
# ---------------------------------------------------------------------------
def ref_forward(x, params, stride):
    dn = ("NCHW", "OIHW", "NCHW")
    prec = lax.Precision.HIGHEST

    def bn(z, p):
        g, b, m, v = p
        g, b, m, v = (t[None, :, None, None] for t in (g, b, m, v))
        return (z - m) / jnp.sqrt(v + BN_EPS) * g + b

    y = lax.conv_general_dilated(x, params["a_w"], (1, 1), "VALID",
                                 dimension_numbers=dn, precision=prec)
    y = jax.nn.relu(bn(y, params["a_bn"]))
    y = lax.conv_general_dilated(y, params["b_w"], (stride, stride),
                                 ((1, 1), (1, 1)), dimension_numbers=dn,
                                 feature_group_count=params["num_gs"],
                                 precision=prec)
    y = jax.nn.relu(bn(y, params["b_bn"]))
    if "se" in params:
        w1, b1, w2, b2 = params["se"]
        s = jnp.mean(y, axis=(2, 3), keepdims=True)
        s = lax.conv_general_dilated(s, w1, (1, 1), "VALID",
                                     dimension_numbers=dn, precision=prec)
        s = jax.nn.relu(s + b1[None, :, None, None])
        s = lax.conv_general_dilated(s, w2, (1, 1), "VALID",
                                     dimension_numbers=dn, precision=prec)
        y = y * jax.nn.sigmoid(s + b2[None, :, None, None])
    y = lax.conv_general_dilated(y, params["c_w"], (1, 1), "VALID",
                                 dimension_numbers=dn, precision=prec)
    return bn(y, params["c_bn"])


# ---------------------------------------------------------------------------
if __name__ == "__main__":
    # BottleneckTransform hyperparameters (small, consistent with the module)
    w_in, w_out, stride, bm, gw, se_r = 32, 64, 2, 0.5, 8, 0.25
    w_b = int(round(w_out * bm))          # 32
    num_gs = w_b // gw                    # 4
    w_se = int(round(w_in * se_r))        # 8

    key = jax.random.PRNGKey(0)
    ks = jax.random.split(key, 20)

    def bn_params(kk, c):
        k1, k2, k3, k4 = jax.random.split(kk, 4)
        gamma = 1.0 + 0.1 * jax.random.normal(k1, (c,), jnp.float32)
        beta = 0.1 * jax.random.normal(k2, (c,), jnp.float32)
        mean = 0.1 * jax.random.normal(k3, (c,), jnp.float32)
        var = 0.5 + jnp.abs(jax.random.normal(k4, (c,), jnp.float32))
        return (gamma, beta, mean, var)

    params = {
        "a_w": 0.1 * jax.random.normal(ks[0], (w_b, w_in, 1, 1), jnp.float32),
        "a_bn": bn_params(ks[1], w_b),
        "b_w": 0.1 * jax.random.normal(ks[2], (w_b, gw, 3, 3), jnp.float32),
        "b_bn": bn_params(ks[3], w_b),
        "se": (
            0.1 * jax.random.normal(ks[4], (w_se, w_b, 1, 1), jnp.float32),
            0.1 * jax.random.normal(ks[5], (w_se,), jnp.float32),
            0.1 * jax.random.normal(ks[6], (w_b, w_se, 1, 1), jnp.float32),
            0.1 * jax.random.normal(ks[7], (w_b,), jnp.float32),
        ),
        "c_w": 0.1 * jax.random.normal(ks[8], (w_out, w_b, 1, 1), jnp.float32),
        "c_bn": bn_params(ks[9], w_out),
        "num_gs": num_gs,
    }

    x = jax.random.normal(ks[10], (2, w_in, 16, 16), jnp.float32)   # NCHW

    # main configuration (stride = 2)
    out = jax.block_until_ready(bottleneck_transform(x, params, stride))
    ref = jax.block_until_ready(ref_forward(x, params, stride))
    assert out.shape == ref.shape == (2, w_out, 16 // stride, 16 // stride)
    max_err = float(jnp.max(jnp.abs(out - ref)))
    assert max_err < 1e-2, f"stride-2 mismatch vs reference: {max_err}"

    # stride-1 path (no spatial subsampling) with the same weights
    out1 = jax.block_until_ready(bottleneck_transform(x, params, 1))
    ref1 = jax.block_until_ready(ref_forward(x, params, 1))
    err1 = float(jnp.max(jnp.abs(out1 - ref1)))
    assert err1 < 1e-2, f"stride-1 mismatch vs reference: {err1}"

    print("KERNEL_OK")
</pallas_src>

<mosaic_0001>
module attributes {stable_mosaic.version = 11 : i64} {
  func.func @kernel(%arg0: i32, %arg1: memref<1x32x256xf32, #tpu.memory_space<vmem>>, %arg2: memref<32x32xf32, #tpu.memory_space<vmem>>, %arg3: memref<1x32xf32, #tpu.memory_space<vmem>>, %arg4: memref<288x32xf32, #tpu.memory_space<vmem>>, %arg5: memref<1x32xf32, #tpu.memory_space<vmem>>, %arg6: memref<64x256xf32, #tpu.memory_space<vmem>>, %arg7: memref<32x8xf32, #tpu.memory_space<vmem>>, %arg8: memref<1x8xf32, #tpu.memory_space<vmem>>, %arg9: memref<8x32xf32, #tpu.memory_space<vmem>>, %arg10: memref<1x32xf32, #tpu.memory_space<vmem>>, %arg11: memref<32x64xf32, #tpu.memory_space<vmem>>, %arg12: memref<1x64xf32, #tpu.memory_space<vmem>>, %arg13: memref<1x64x64xf32, #tpu.memory_space<vmem>>, %arg14: memref<1x18x18x32xf32, #tpu.memory_space<vmem>>, %arg15: memref<1x16x16x288xf32, #tpu.memory_space<vmem>>) attributes {dimension_semantics = [#tpu.dimension_semantics<parallel>], iteration_bounds = array<i64: 2>, scalar_prefetch = 0 : i64, scratch_operands = 2 : i64, tpu.core_type = #tpu.core_type<tc>, window_params = [{transform_indices = @transform_0, window_bounds = array<i64: 1, 32, 256>}, {pipeline_mode = #tpu.pipeline_mode<synchronous>, transform_indices = @transform_1, window_bounds = array<i64: 32, 32>}, {pipeline_mode = #tpu.pipeline_mode<synchronous>, transform_indices = @transform_2, window_bounds = array<i64: 1, 32>}, {pipeline_mode = #tpu.pipeline_mode<synchronous>, transform_indices = @transform_3, window_bounds = array<i64: 288, 32>}, {pipeline_mode = #tpu.pipeline_mode<synchronous>, transform_indices = @transform_4, window_bounds = array<i64: 1, 32>}, {pipeline_mode = #tpu.pipeline_mode<synchronous>, transform_indices = @transform_5, window_bounds = array<i64: 64, 256>}, {pipeline_mode = #tpu.pipeline_mode<synchronous>, transform_indices = @transform_6, window_bounds = array<i64: 32, 8>}, {pipeline_mode = #tpu.pipeline_mode<synchronous>, transform_indices = @transform_7, window_bounds = array<i64: 1, 8>}, {pipeline_mode = #tpu.pipeline_mode<synchronous>, transform_indices = @transform_8, window_bounds = array<i64: 8, 32>}, {pipeline_mode = #tpu.pipeline_mode<synchronous>, transform_indices = @transform_9, window_bounds = array<i64: 1, 32>}, {pipeline_mode = #tpu.pipeline_mode<synchronous>, transform_indices = @transform_10, window_bounds = array<i64: 32, 64>}, {pipeline_mode = #tpu.pipeline_mode<synchronous>, transform_indices = @transform_11, window_bounds = array<i64: 1, 64>}, {transform_indices = @transform_12, window_bounds = array<i64: 1, 64, 64>}]} {
    %cst = arith.constant 0.000000e+00 : f32
    %0 = vector.broadcast %cst : f32 to vector<1x1x18x32xf32>
    %cst_0 = arith.constant 0.000000e+00 : f32
    %1 = vector.broadcast %cst_0 : f32 to vector<1x16x1x32xf32>
    %c0 = arith.constant 0 : index
    %c0_1 = arith.constant 0 : index
    %c0_2 = arith.constant 0 : index
    %c0_3 = arith.constant 0 : index
    %2 = vector.load %arg14[%c0, %c0_1, %c0_2, %c0_3] : memref<1x18x18x32xf32, #tpu.memory_space<vmem>>, vector<1x1x18x32xf32>
    tpu.vector_store %arg14[%c0, %c0_1, %c0_2, %c0_3], %0 {strides = array<i32>} : memref<1x18x18x32xf32, #tpu.memory_space<vmem>>, vector<1x1x18x32xf32>,
    %c0_4 = arith.constant 0 : index
    %c17 = arith.constant 17 : index
    %c0_5 = arith.constant 0 : index
    %c0_6 = arith.constant 0 : index
    %3 = vector.load %arg14[%c0_4, %c17, %c0_5, %c0_6] : memref<1x18x18x32xf32, #tpu.memory_space<vmem>>, vector<1x1x18x32xf32>
    tpu.vector_store %arg14[%c0_4, %c17, %c0_5, %c0_6], %0 {strides = array<i32>} : memref<1x18x18x32xf32, #tpu.memory_space<vmem>>, vector<1x1x18x32xf32>,
    %c0_7 = arith.constant 0 : index
    %c1 = arith.constant 1 : index
    %c0_8 = arith.constant 0 : index
    %c0_9 = arith.constant 0 : index
    %4 = vector.load %arg14[%c0_7, %c1, %c0_8, %c0_9] : memref<1x18x18x32xf32, #tpu.memory_space<vmem>>, vector<1x16x1x32xf32>
    tpu.vector_store %arg14[%c0_7, %c1, %c0_8, %c0_9], %1 {strides = array<i32>} : memref<1x18x18x32xf32, #tpu.memory_space<vmem>>, vector<1x16x1x32xf32>,
    %c0_10 = arith.constant 0 : index
    %c1_11 = arith.constant 1 : index
    %c17_12 = arith.constant 17 : index
    %c0_13 = arith.constant 0 : index
    %5 = vector.load %arg14[%c0_10, %c1_11, %c17_12, %c0_13] : memref<1x18x18x32xf32, #tpu.memory_space<vmem>>, vector<1x16x1x32xf32>
    tpu.vector_store %arg14[%c0_10, %c1_11, %c17_12, %c0_13], %1 {strides = array<i32>} : memref<1x18x18x32xf32, #tpu.memory_space<vmem>>, vector<1x16x1x32xf32>,
    %c0_14 = arith.constant 0 : index
    %c0_15 = arith.constant 0 : index
    %c0_16 = arith.constant 0 : index
    %6 = vector.load %arg1[%c0_14, %c0_15, %c0_16] : memref<1x32x256xf32, #tpu.memory_space<vmem>>, vector<1x32x256xf32>
    %7 = vector.shape_cast %6 : vector<1x32x256xf32> to vector<32x256xf32>
    %c0_17 = arith.constant 0 : index
    %c0_18 = arith.constant 0 : index
    %8 = vector.load %arg2[%c0_17, %c0_18] : memref<32x32xf32, #tpu.memory_space<vmem>>, vector<32x32xf32>
    %cst_19 = arith.constant dense<0.000000e+00> : vector<256x32xf32>
    %9 = tpu.matmul %7, %8, %cst_19 {dimension_numbers = #tpu.dot_dimension_numbers<[0], [0], [1], [1], [0, 1, 1, 1], [], []>} : vector<32x256xf32>, vector<32x32xf32>, vector<256x32xf32> -> vector<256x32xf32>
    %c0_20 = arith.constant 0 : index
    %c0_21 = arith.constant 0 : index
    %10 = vector.load %arg3[%c0_20, %c0_21] : memref<1x32xf32, #tpu.memory_space<vmem>>, vector<1x32xf32>
    %11 = vector.broadcast %10 : vector<1x32xf32> to vector<256x32xf32>
    %12 = arith.addf %9, %11 : vector<256x32xf32>
    %cst_22 = arith.constant 0.000000e+00 : f32
    %13 = vector.broadcast %cst_22 : f32 to vector<256x32xf32>
    %14 = arith.maximumf %12, %13 : vector<256x32xf32>
    %15 = vector.shape_cast %14 : vector<256x32xf32> to vector<16x16x32xf32>
    %c0_23 = arith.constant 0 : index
    %c1_24 = arith.constant 1 : index
    %c1_25 = arith.constant 1 : index
    %c0_26 = arith.constant 0 : index
    %16 = vector.load %arg14[%c0_23, %c1_24, %c1_25, %c0_26] : memref<1x18x18x32xf32, #tpu.memory_space<vmem>>, vector<1x16x16x32xf32>
    %17 = vector.shape_cast %16 : vector<1x16x16x32xf32> to vector<16x16x32xf32>
    %18 = vector.shape_cast %15 : vector<16x16x32xf32> to vector<1x16x16x32xf32>
    tpu.vector_store %arg14[%c0_23, %c1_24, %c1_25, %c0_26], %18 {strides = array<i32>} : memref<1x18x18x32xf32, #tpu.memory_space<vmem>>, vector<1x16x16x32xf32>,
    %c0_27 = arith.constant 0 : index
    %c0_28 = arith.constant 0 : index
    %c0_29 = arith.constant 0 : index
    %c0_30 = arith.constant 0 : index
    %19 = vector.load %arg14[%c0_27, %c0_28, %c0_29, %c0_30] : memref<1x18x18x32xf32, #tpu.memory_space<vmem>>, vector<1x16x16x32xf32>
    %c0_31 = arith.constant 0 : index
    %c0_32 = arith.constant 0 : index
    %c0_33 = arith.constant 0 : index
    %c0_34 = arith.constant 0 : index
    %20 = vector.load %arg15[%c0_31, %c0_32, %c0_33, %c0_34] : memref<1x16x16x288xf32, #tpu.memory_space<vmem>>, vector<1x16x16x32xf32>
    tpu.vector_store %arg15[%c0_31, %c0_32, %c0_33, %c0_34], %19 {strides = array<i32>} : memref<1x16x16x288xf32, #tpu.memory_space<vmem>>, vector<1x16x16x32xf32>,
    %c0_35 = arith.constant 0 : index
    %c0_36 = arith.constant 0 : index
    %c1_37 = arith.constant 1 : index
    %c0_38 = arith.constant 0 : index
    %21 = vector.load %arg14[%c0_35, %c0_36, %c1_37, %c0_38] : memref<1x18x18x32xf32, #tpu.memory_space<vmem>>, vector<1x16x16x32xf32>
    %c0_39 = arith.constant 0 : index
    %c0_40 = arith.constant 0 : index
    %c0_41 = arith.constant 0 : index
    %c32 = arith.constant 32 : index
    %22 = vector.load %arg15[%c0_39, %c0_40, %c0_41, %c32] : memref<1x16x16x288xf32, #tpu.memory_space<vmem>>, vector<1x16x16x32xf32>
    tpu.vector_store %arg15[%c0_39, %c0_40, %c0_41, %c32], %21 {strides = array<i32>} : memref<1x16x16x288xf32, #tpu.memory_space<vmem>>, vector<1x16x16x32xf32>,
    %c0_42 = arith.constant 0 : index
    %c0_43 = arith.constant 0 : index
    %c2 = arith.constant 2 : index
    %c0_44 = arith.constant 0 : index
    %23 = vector.load %arg14[%c0_42, %c0_43, %c2, %c0_44] : memref<1x18x18x32xf32, #tpu.memory_space<vmem>>, vector<1x16x16x32xf32>
    %c0_45 = arith.constant 0 : index
    %c0_46 = arith.constant 0 : index
    %c0_47 = arith.constant 0 : index
    %c64 = arith.constant 64 : index
    %24 = vector.load %arg15[%c0_45, %c0_46, %c0_47, %c64] : memref<1x16x16x288xf32, #tpu.memory_space<vmem>>, vector<1x16x16x32xf32>
    tpu.vector_store %arg15[%c0_45, %c0_46, %c0_47, %c64], %23 {strides = array<i32>} : memref<1x16x16x288xf32, #tpu.memory_space<vmem>>, vector<1x16x16x32xf32>,
    %c0_48 = arith.constant 0 : index
    %c1_49 = arith.constant 1 : index
    %c0_50 = arith.constant 0 : index
    %c0_51 = arith.constant 0 : index
    %25 = vector.load %arg14[%c0_48, %c1_49, %c0_50, %c0_51] : memref<1x18x18x32xf32, #tpu.memory_space<vmem>>, vector<1x16x16x32xf32>
    %c0_52 = arith.constant 0 : index
    %c0_53 = arith.constant 0 : index
    %c0_54 = arith.constant 0 : index
    %c96 = arith.constant 96 : index
    %26 = vector.load %arg15[%c0_52, %c0_53, %c0_54, %c96] : memref<1x16x16x288xf32, #tpu.memory_space<vmem>>, vector<1x16x16x32xf32>
    tpu.vector_store %arg15[%c0_52, %c0_53, %c0_54, %c96], %25 {strides = array<i32>} : memref<1x16x16x288xf32, #tpu.memory_space<vmem>>, vector<1x16x16x32xf32>,
    %c0_55 = arith.constant 0 : index
    %c1_56 = arith.constant 1 : index
    %c1_57 = arith.constant 1 : index
    %c0_58 = arith.constant 0 : index
    %27 = vector.load %arg14[%c0_55, %c1_56, %c1_57, %c0_58] : memref<1x18x18x32xf32, #tpu.memory_space<vmem>>, vector<1x16x16x32xf32>
    %c0_59 = arith.constant 0 : index
    %c0_60 = arith.constant 0 : index
    %c0_61 = arith.constant 0 : index
    %c128 = arith.constant 128 : index
    %28 = vector.load %arg15[%c0_59, %c0_60, %c0_61, %c128] : memref<1x16x16x288xf32, #tpu.memory_space<vmem>>, vector<1x16x16x32xf32>
    tpu.vector_store %arg15[%c0_59, %c0_60, %c0_61, %c128], %27 {strides = array<i32>} : memref<1x16x16x288xf32, #tpu.memory_space<vmem>>, vector<1x16x16x32xf32>,
    %c0_62 = arith.constant 0 : index
    %c1_63 = arith.constant 1 : index
    %c2_64 = arith.constant 2 : index
    %c0_65 = arith.constant 0 : index
    %29 = vector.load %arg14[%c0_62, %c1_63, %c2_64, %c0_65] : memref<1x18x18x32xf32, #tpu.memory_space<vmem>>, vector<1x16x16x32xf32>
    %c0_66 = arith.constant 0 : index
    %c0_67 = arith.constant 0 : index
    %c0_68 = arith.constant 0 : index
    %c160 = arith.constant 160 : index
    %30 = vector.load %arg15[%c0_66, %c0_67, %c0_68, %c160] : memref<1x16x16x288xf32, #tpu.memory_space<vmem>>, vector<1x16x16x32xf32>
    tpu.vector_store %arg15[%c0_66, %c0_67, %c0_68, %c160], %29 {strides = array<i32>} : memref<1x16x16x288xf32, #tpu.memory_space<vmem>>, vector<1x16x16x32xf32>,
    %c0_69 = arith.constant 0 : index
    %c2_70 = arith.constant 2 : index
    %c0_71 = arith.constant 0 : index
    %c0_72 = arith.constant 0 : index
    %31 = vector.load %arg14[%c0_69, %c2_70, %c0_71, %c0_72] : memref<1x18x18x32xf32, #tpu.memory_space<vmem>>, vector<1x16x16x32xf32>
    %c0_73 = arith.constant 0 : index
    %c0_74 = arith.constant 0 : index
    %c0_75 = arith.constant 0 : index
    %c192 = arith.constant 192 : index
    %32 = vector.load %arg15[%c0_73, %c0_74, %c0_75, %c192] : memref<1x16x16x288xf32, #tpu.memory_space<vmem>>, vector<1x16x16x32xf32>
    tpu.vector_store %arg15[%c0_73, %c0_74, %c0_75, %c192], %31 {strides = array<i32>} : memref<1x16x16x288xf32, #tpu.memory_space<vmem>>, vector<1x16x16x32xf32>,
    %c0_76 = arith.constant 0 : index
    %c2_77 = arith.constant 2 : index
    %c1_78 = arith.constant 1 : index
    %c0_79 = arith.constant 0 : index
    %33 = vector.load %arg14[%c0_76, %c2_77, %c1_78, %c0_79] : memref<1x18x18x32xf32, #tpu.memory_space<vmem>>, vector<1x16x16x32xf32>
    %c0_80 = arith.constant 0 : index
    %c0_81 = arith.constant 0 : index
    %c0_82 = arith.constant 0 : index
    %c224 = arith.constant 224 : index
    %34 = vector.load %arg15[%c0_80, %c0_81, %c0_82, %c224] : memref<1x16x16x288xf32, #tpu.memory_space<vmem>>, vector<1x16x16x32xf32>
    tpu.vector_store %arg15[%c0_80, %c0_81, %c0_82, %c224], %33 {strides = array<i32>} : memref<1x16x16x288xf32, #tpu.memory_space<vmem>>, vector<1x16x16x32xf32>,
    %c0_83 = arith.constant 0 : index
    %c2_84 = arith.constant 2 : index
    %c2_85 = arith.constant 2 : index
    %c0_86 = arith.constant 0 : index
    %35 = vector.load %arg14[%c0_83, %c2_84, %c2_85, %c0_86] : memref<1x18x18x32xf32, #tpu.memory_space<vmem>>, vector<1x16x16x32xf32>
    %c0_87 = arith.constant 0 : index
    %c0_88 = arith.constant 0 : index
    %c0_89 = arith.constant 0 : index
    %c256 = arith.constant 256 : index
    %36 = vector.load %arg15[%c0_87, %c0_88, %c0_89, %c256] : memref<1x16x16x288xf32, #tpu.memory_space<vmem>>, vector<1x16x16x32xf32>
    tpu.vector_store %arg15[%c0_87, %c0_88, %c0_89, %c256], %35 {strides = array<i32>} : memref<1x16x16x288xf32, #tpu.memory_space<vmem>>, vector<1x16x16x32xf32>,
    %c0_90 = arith.constant 0 : index
    %c0_91 = arith.constant 0 : index
    %c0_92 = arith.constant 0 : index
    %c0_93 = arith.constant 0 : index
    %37 = vector.load %arg15[%c0_90, %c0_91, %c0_92, %c0_93] : memref<1x16x16x288xf32, #tpu.memory_space<vmem>>, vector<1x16x16x288xf32>
    %38 = vector.shape_cast %37 : vector<1x16x16x288xf32> to vector<256x288xf32>
    %c0_94 = arith.constant 0 : index
    %c0_95 = arith.constant 0 : index
    %39 = vector.load %arg4[%c0_94, %c0_95] : memref<288x32xf32, #tpu.memory_space<vmem>>, vector<288x32xf32>
    %cst_96 = arith.constant dense<0.000000e+00> : vector<256x32xf32>
    %40 = tpu.matmul %38, %39, %cst_96 {dimension_numbers = #tpu.dot_dimension_numbers<[1], [0], [0], [1], [0, 0, 1, 1], [], []>} : vector<256x288xf32>, vector<288x32xf32>, vector<256x32xf32> -> vector<256x32xf32>
    %41 = vector.shape_cast %40 : vector<256x32xf32> to vector<1x256x32xf32>
    %c0_97 = arith.constant 0 : index
    %c0_98 = arith.constant 0 : index
    %42 = vector.load %arg6[%c0_97, %c0_98] : memref<64x256xf32, #tpu.memory_space<vmem>>, vector<64x256xf32>
    %43 = vector.shape_cast %41 : vector<1x256x32xf32> to vector<256x32xf32>
    %cst_99 = arith.constant dense<0.000000e+00> : vector<64x32xf32>
    %44 = tpu.matmul %42, %43, %cst_99 {dimension_numbers = #tpu.dot_dimension_numbers<[1], [0], [0], [1], [0, 0, 1, 1], [], []>} : vector<64x256xf32>, vector<256x32xf32>, vector<64x32xf32> -> vector<64x32xf32>
    %c0_100 = arith.constant 0 : index
    %c0_101 = arith.constant 0 : index
    %45 = vector.load %arg5[%c0_100, %c0_101] : memref<1x32xf32, #tpu.memory_space<vmem>>, vector<1x32xf32>
    %46 = vector.broadcast %45 : vector<1x32xf32> to vector<64x32xf32>
    %47 = arith.addf %44, %46 : vector<64x32xf32>
    %cst_102 = arith.constant 0.000000e+00 : f32
    %48 = vector.broadcast %cst_102 : f32 to vector<64x32xf32>
    %49 = arith.maximumf %47, %48 : vector<64x32xf32>
    %50 = vector.shape_cast %49 : vector<64x32xf32> to vector<1x64x32xf32>
    %cst_103 = arith.constant dense<0.000000e+00> : vector<1x32xf32>
    %51 = vector.multi_reduction <add>, %50, %cst_103 [1] : vector<1x64x32xf32> to vector<1x32xf32>
    %cst_104 = arith.constant 6.400000e+01 : f32
    %52 = vector.broadcast %cst_104 : f32 to vector<1x32xf32>
    %53 = arith.divf %51, %52 : vector<1x32xf32>
    %c0_105 = arith.constant 0 : index
    %c0_106 = arith.constant 0 : index
    %54 = vector.load %arg7[%c0_105, %c0_106] : memref<32x8xf32, #tpu.memory_space<vmem>>, vector<32x8xf32>
    %cst_107 = arith.constant dense<0.000000e+00> : vector<1x8xf32>
    %55 = tpu.matmul %53, %54, %cst_107 {dimension_numbers = #tpu.dot_dimension_numbers<[1], [0], [0], [1], [0, 0, 1, 1], [], []>} : vector<1x32xf32>, vector<32x8xf32>, vector<1x8xf32> -> vector<1x8xf32>
    %c0_108 = arith.constant 0 : index
    %c0_109 = arith.constant 0 : index
    %56 = vector.load %arg8[%c0_108, %c0_109] : memref<1x8xf32, #tpu.memory_space<vmem>>, vector<1x8xf32>
    %57 = arith.addf %55, %56 : vector<1x8xf32>
    %cst_110 = arith.constant 0.000000e+00 : f32
    %58 = vector.broadcast %cst_110 : f32 to vector<1x8xf32>
    %59 = arith.maximumf %57, %58 : vector<1x8xf32>
    %c0_111 = arith.constant 0 : index
    %c0_112 = arith.constant 0 : index
    %60 = vector.load %arg9[%c0_111, %c0_112] : memref<8x32xf32, #tpu.memory_space<vmem>>, vector<8x32xf32>
    %cst_113 = arith.constant dense<0.000000e+00> : vector<1x32xf32>
    %61 = tpu.matmul %59, %60, %cst_113 {dimension_numbers = #tpu.dot_dimension_numbers<[1], [0], [0], [1], [0, 0, 1, 1], [], []>} : vector<1x8xf32>, vector<8x32xf32>, vector<1x32xf32> -> vector<1x32xf32>
    %c0_114 = arith.constant 0 : index
    %c0_115 = arith.constant 0 : index
    %62 = vector.load %arg10[%c0_114, %c0_115] : memref<1x32xf32, #tpu.memory_space<vmem>>, vector<1x32xf32>
    %63 = arith.addf %61, %62 : vector<1x32xf32>
    %64 = arith.negf %63 : vector<1x32xf32>
    %65 = math.exp %64 : vector<1x32xf32>
    %cst_116 = arith.constant 1.000000e+00 : f32
    %66 = vector.broadcast %cst_116 : f32 to vector<1x32xf32>
    %67 = arith.addf %66, %65 : vector<1x32xf32>
    %68 = arith.divf %66, %67 : vector<1x32xf32>
    %69 = vector.shape_cast %49 : vector<64x32xf32> to vector<1x64x32xf32>
    %70 = vector.shape_cast %68 : vector<1x32xf32> to vector<1x1x32xf32>
    %71 = vector.broadcast %70 : vector<1x1x32xf32> to vector<1x64x32xf32>
    %72 = arith.mulf %69, %71 : vector<1x64x32xf32>
    %73 = vector.shape_cast %72 : vector<1x64x32xf32> to vector<64x32xf32>
    %c0_117 = arith.constant 0 : index
    %c0_118 = arith.constant 0 : index
    %74 = vector.load %arg11[%c0_117, %c0_118] : memref<32x64xf32, #tpu.memory_space<vmem>>, vector<32x64xf32>
    %cst_119 = arith.constant dense<0.000000e+00> : vector<64x64xf32>
    %75 = tpu.matmul %73, %74, %cst_119 {dimension_numbers = #tpu.dot_dimension_numbers<[1], [0], [0], [1], [0, 0, 1, 1], [], []>} : vector<64x32xf32>, vector<32x64xf32>, vector<64x64xf32> -> vector<64x64xf32>
    %c0_120 = arith.constant 0 : index
    %c0_121 = arith.constant 0 : index
    %76 = vector.load %arg12[%c0_120, %c0_121] : memref<1x64xf32, #tpu.memory_space<vmem>>, vector<1x64xf32>
    %77 = vector.broadcast %76 : vector<1x64xf32> to vector<64x64xf32>
    %78 = arith.addf %75, %77 : vector<64x64xf32>
    %79 = vector.shape_cast %78 : vector<64x64xf32> to vector<1x64x64xf32>
    %c0_122 = arith.constant 0 : index
    %c0_123 = arith.constant 0 : index
    %c0_124 = arith.constant 0 : index
    %80 = vector.load %arg13[%c0_122, %c0_123, %c0_124] : memref<1x64x64xf32, #tpu.memory_space<vmem>>, vector<1x64x64xf32>
    tpu.vector_store %arg13[%c0_122, %c0_123, %c0_124], %79 {strides = array<i32>} : memref<1x64x64xf32, #tpu.memory_space<vmem>>, vector<1x64x64xf32>,
    return
  }
  func.func @transform_0(%arg0: i32) -> (i32, i32, i32) {
    %c0_i32 = arith.constant 0 : i32
    %c0_i32_0 = arith.constant 0 : i32
    %c0_i32_1 = arith.constant 0 : i32
    return %arg0, %c0_i32, %c0_i32_0 : i32, i32, i32
  }
  func.func @transform_1(%arg0: i32) -> (i32, i32) {
    %c0_i32 = arith.constant 0 : i32
    %c0_i32_0 = arith.constant 0 : i32
    %c0_i32_1 = arith.constant 0 : i32
    return %c0_i32, %c0_i32_0 : i32, i32
  }
  func.func @transform_2(%arg0: i32) -> (i32, i32) {
    %c0_i32 = arith.constant 0 : i32
    %c0_i32_0 = arith.constant 0 : i32
    %c0_i32_1 = arith.constant 0 : i32
    return %c0_i32, %c0_i32_0 : i32, i32
  }
  func.func @transform_3(%arg0: i32) -> (i32, i32) {
    %c0_i32 = arith.constant 0 : i32
    %c0_i32_0 = arith.constant 0 : i32
    %c0_i32_1 = arith.constant 0 : i32
    return %c0_i32, %c0_i32_0 : i32, i32
  }
  func.func @transform_4(%arg0: i32) -> (i32, i32) {
    %c0_i32 = arith.constant 0 : i32
    %c0_i32_0 = arith.constant 0 : i32
    %c0_i32_1 = arith.constant 0 : i32
    return %c0_i32, %c0_i32_0 : i32, i32
  }
  func.func @transform_5(%arg0: i32) -> (i32, i32) {
    %c0_i32 = arith.constant 0 : i32
    %c0_i32_0 = arith.constant 0 : i32
    %c0_i32_1 = arith.constant 0 : i32
    return %c0_i32, %c0_i32_0 : i32, i32
  }
  func.func @transform_6(%arg0: i32) -> (i32, i32) {
    %c0_i32 = arith.constant 0 : i32
    %c0_i32_0 = arith.constant 0 : i32
    %c0_i32_1 = arith.constant 0 : i32
    return %c0_i32, %c0_i32_0 : i32, i32
  }
  func.func @transform_7(%arg0: i32) -> (i32, i32) {
    %c0_i32 = arith.constant 0 : i32
    %c0_i32_0 = arith.constant 0 : i32
    %c0_i32_1 = arith.constant 0 : i32
    return %c0_i32, %c0_i32_0 : i32, i32
  }
  func.func @transform_8(%arg0: i32) -> (i32, i32) {
    %c0_i32 = arith.constant 0 : i32
    %c0_i32_0 = arith.constant 0 : i32
    %c0_i32_1 = arith.constant 0 : i32
    return %c0_i32, %c0_i32_0 : i32, i32
  }
  func.func @transform_9(%arg0: i32) -> (i32, i32) {
    %c0_i32 = arith.constant 0 : i32
    %c0_i32_0 = arith.constant 0 : i32
    %c0_i32_1 = arith.constant 0 : i32
    return %c0_i32, %c0_i32_0 : i32, i32
  }
  func.func @transform_10(%arg0: i32) -> (i32, i32) {
    %c0_i32 = arith.constant 0 : i32
    %c0_i32_0 = arith.constant 0 : i32
    %c0_i32_1 = arith.constant 0 : i32
    return %c0_i32, %c0_i32_0 : i32, i32
  }
  func.func @transform_11(%arg0: i32) -> (i32, i32) {
    %c0_i32 = arith.constant 0 : i32
    %c0_i32_0 = arith.constant 0 : i32
    %c0_i32_1 = arith.constant 0 : i32
    return %c0_i32, %c0_i32_0 : i32, i32
  }
  func.func @transform_12(%arg0: i32) -> (i32, i32, i32) {
    %c0_i32 = arith.constant 0 : i32
    %c0_i32_0 = arith.constant 0 : i32
    %c0_i32_1 = arith.constant 0 : i32
    return %arg0, %c0_i32, %c0_i32_0 : i32, i32, i32
  }
}

</mosaic_0001>

<llo_original>
// kernel: tpu_custom_call.1
$region0: #{tpu_custom_call.1}
  #allocation0 [shape = 'u32[]', space=smem, size = 0x4, offset = 0x4, fixed_abs, tag = 'smem constant byte address 0x4 - core index']
  #allocation1 [shape = 'u32[144,128]{1,0:T(1,128)}', space=vmem, size = 0x12000, scoped, tag = 'internal scratch']
  #allocation2 [shape = 'f32[1,18,18,32]{3,2,1,0:T(8,128)}', space=vmem, size = 0x36000, scoped, tag = 'scratch operand']
  #allocation3 [shape = 'f32[1,16,16,288]{3,2,1,0:T(8,128)}', space=vmem, size = 0x60000, scoped, tag = 'scratch operand']
  %s0 = inlined_call_operand.vmem [shape: f32[2,32,256], index: 0, kind: input, shape index: {}]
  %s1 = inlined_call_operand.vmem [shape: f32[32,32], index: 1, kind: input, shape index: {}]
  %s2 = inlined_call_operand.vmem [shape: f32[1,32], index: 2, kind: input, shape index: {}]
  %s3 = inlined_call_operand.vmem [shape: f32[288,32], index: 3, kind: input, shape index: {}]
  %s4 = inlined_call_operand.vmem [shape: f32[1,32], index: 4, kind: input, shape index: {}]
  %s5 = inlined_call_operand.vmem [shape: f32[64,256], index: 5, kind: input, shape index: {}]
  %s6 = inlined_call_operand.vmem [shape: f32[32,8], index: 6, kind: input, shape index: {}]
  %s7 = inlined_call_operand.vmem [shape: f32[1,8], index: 7, kind: input, shape index: {}]
  %s8 = inlined_call_operand.vmem [shape: f32[8,32], index: 8, kind: input, shape index: {}]
  %s9 = inlined_call_operand.vmem [shape: f32[1,32], index: 9, kind: input, shape index: {}]
  %s10 = inlined_call_operand.vmem [shape: f32[32,64], index: 10, kind: input, shape index: {}]
  %s11 = inlined_call_operand.vmem [shape: f32[1,64], index: 11, kind: input, shape index: {}]
  %s12 = inlined_call_operand.hbm [shape: f32[2,64,64], index: 12, kind: output, shape index: {}]
  %s13 = sld [smem:[#allocation0]]
  $region81: #{tpu_custom_call.1} parent=0
    _
  %s15 = ssub.s32 1, %s13
  %s16 = scalar_select 0, %s15, %s13
  $region1: #{tpu_custom_call.1} parent=0
    #allocation4 [shape = 'u8[65536]{0}', space=vmem, size = 0x10000, scoped, tag = 'output window, operand 0']
    #allocation5 [shape = 's32[2]{0}', space=sflag, size = 0x8, scoped, tag = 'scoped memory for tpu_custom_call.1']
    %17 = vsyncpa [#allocation5], 0
    %s18 = scalar_lea.sflag [#allocation5], 1
    %19 = vsyncpa %s18, 0
    loop: start=0, step=1, limit=4
    $region2: #{tpu_custom_call.1} parent=1 // loop_pre_header
      _
    $region3: #{tpu_custom_call.1} parent=1 // loop_header
      %s21 = sphi 0, %s25
      %p22 = scmp.ge.s32.totalorder %s21, 4
      %s31 = sphi 0, %s33
      %s34 = sphi 0, %s31
      %s35 = sphi 0, %s34
      %s51 = sphi 0, %s35
      %s55 = sphi 0, %s55
      %s57 = sphi 0, %s55
      %s58 = sphi 0, %s57
      %s72 = sphi 0, %s58
      %s76 = sphi 0, %s76
      %s78 = sphi 0, %s76
      %s79 = sphi 0, %s78
      %s93 = sphi 0, %s79
      %s97 = sphi 0, %s97
      %s99 = sphi 0, %s97
      %s100 = sphi 0, %s99
      %s114 = sphi 0, %s100
      %s118 = sphi 0, %s118
      %s120 = sphi 0, %s118
      %s121 = sphi 0, %s120
      %s135 = sphi 0, %s121
      %s139 = sphi 0, %s139
      %s141 = sphi 0, %s139
      %s142 = sphi 0, %s141
      %s156 = sphi 0, %s142
      %s160 = sphi 0, %s160
      %s162 = sphi 0, %s160
      %s163 = sphi 0, %s162
      %s177 = sphi 0, %s163
      %s181 = sphi 0, %s181
      %s183 = sphi 0, %s181
      %s184 = sphi 0, %s183
      %s198 = sphi 0, %s184
      %s202 = sphi 0, %s202
      %s204 = sphi 0, %s202
      %s205 = sphi 0, %s204
      %s219 = sphi 0, %s205
      %s223 = sphi 0, %s223
      %s225 = sphi 0, %s223
      %s226 = sphi 0, %s225
      %s240 = sphi 0, %s226
      %s244 = sphi 0, %s244
      %s246 = sphi 0, %s244
      %s247 = sphi 0, %s246
      %s261 = sphi 0, %s247
      %s265 = sphi 0, %s265
      %s267 = sphi 0, %s265
      %s268 = sphi 0, %s267
      %s282 = sphi 0, %s268
      %s288 = sphi 0, %s290
      %s291 = sphi 0, %s288
      %s292 = sphi 0, %s291
      %s308 = sphi 0, %s292
    $region4: #{tpu_custom_call.1} parent=1 // loop_header_branch
      %24 = sbr.rel (%p22) target = $region8
    $region5: #{tpu_custom_call.1} parent=1 // loop_body
      %s26 = ssub.s32 %s21, 1
      %s27 = ssub.s32 %s21, 2
      %s28 = sadd.s32 %s21, 1
      %s29 = ssub.s32 %s21, %s28
      %p30 = scmp.eq.s32.totalorder %s29, 0
      %s32 = sadd.s32 %s31, 1
      %s33 = scalar_select %p30, %s31, %s32
      %p36 = pneg %p30
      %p37 = scmp.eq.s32.totalorder %s21, 1
      %p38 = por %p36, %p37
      %p39 = scmp.ne.s32.totalorder %s31, %s34
      %p40 = scmp.eq.s32.totalorder %s21, 0
      %p41 = por %p39, %p40
      %p42 = scmp.ne.s32.totalorder %s31, %s34
      %p43 = scmp.eq.s32.totalorder %s26, 1
      %p44 = por %p42, %p43
      %p45 = scmp.ne.s32.totalorder %s34, %s35
      %p46 = scmp.eq.s32.totalorder %s26, 0
      %p47 = por %p45, %p46
      %p48 = scmp.ne.s32.totalorder %s34, %s35
      %p49 = scmp.eq.s32.totalorder %s27, 1
      %p50 = por %p48, %p49
      %p52 = scmp.ne.s32.totalorder %s35, %s51
      %p53 = scmp.eq.s32.totalorder %s27, 0
      %p54 = por %p52, %p53
      %s56 = sadd.s32 %s55, 1
      %p59 = scmp.eq.s32.totalorder %s21, 1
      %p60 = scmp.ne.s32.totalorder %s55, %s57
      %p61 = scmp.eq.s32.totalorder %s21, 0
      %p62 = por %p60, %p61
      %p63 = scmp.ne.s32.totalorder %s55, %s57
      %p64 = scmp.eq.s32.totalorder %s26, 1
      %p65 = por %p63, %p64
      %p66 = scmp.ne.s32.totalorder %s57, %s58
      %p67 = scmp.eq.s32.totalorder %s26, 0
      %p68 = por %p66, %p67
      %p69 = scmp.ne.s32.totalorder %s57, %s58
      %p70 = scmp.eq.s32.totalorder %s27, 1
      %p71 = por %p69, %p70
      %p73 = scmp.ne.s32.totalorder %s58, %s72
      %p74 = scmp.eq.s32.totalorder %s27, 0
      %p75 = por %p73, %p74
      %s77 = sadd.s32 %s76, 1
      %p80 = scmp.eq.s32.totalorder %s21, 1
      %p81 = scmp.ne.s32.totalorder %s76, %s78
      %p82 = scmp.eq.s32.totalorder %s21, 0
      %p83 = por %p81, %p82
      %p84 = scmp.ne.s32.totalorder %s76, %s78
      %p85 = scmp.eq.s32.totalorder %s26, 1
      %p86 = por %p84, %p85
      %p87 = scmp.ne.s32.totalorder %s78, %s79
      %p88 = scmp.eq.s32.totalorder %s26, 0
      %p89 = por %p87, %p88
      %p90 = scmp.ne.s32.totalorder %s78, %s79
      %p91 = scmp.eq.s32.totalorder %s27, 1
      %p92 = por %p90, %p91
      %p94 = scmp.ne.s32.totalorder %s79, %s93
      %p95 = scmp.eq.s32.totalorder %s27, 0
      %p96 = por %p94, %p95
      %s98 = sadd.s32 %s97, 1
      %p101 = scmp.eq.s32.totalorder %s21, 1
      %p102 = scmp.ne.s32.totalorder %s97, %s99
      %p103 = scmp.eq.s32.totalorder %s21, 0
      %p104 = por %p102, %p103
      %p105 = scmp.ne.s32.totalorder %s97, %s99
      %p106 = scmp.eq.s32.totalorder %s26, 1
      %p107 = por %p105, %p106
      %p108 = scmp.ne.s32.totalorder %s99, %s100
      %p109 = scmp.eq.s32.totalorder %s26, 0
      %p110 = por %p108, %p109
      %p111 = scmp.ne.s32.totalorder %s99, %s100
      %p112 = scmp.eq.s32.totalorder %s27, 1
      %p113 = por %p111, %p112
      %p115 = scmp.ne.s32.totalorder %s100, %s114
      %p116 = scmp.eq.s32.totalorder %s27, 0
      %p117 = por %p115, %p116
      %s119 = sadd.s32 %s118, 1
      %p122 = scmp.eq.s32.totalorder %s21, 1
      %p123 = scmp.ne.s32.totalorder %s118, %s120
      %p124 = scmp.eq.s32.totalorder %s21, 0
      %p125 = por %p123, %p124
      %p126 = scmp.ne.s32.totalorder %s118, %s120
      %p127 = scmp.eq.s32.totalorder %s26, 1
      %p128 = por %p126, %p127
      %p129 = scmp.ne.s32.totalorder %s120, %s121
      %p130 = scmp.eq.s32.totalorder %s26, 0
      %p131 = por %p129, %p130
      %p132 = scmp.ne.s32.totalorder %s120, %s121
      %p133 = scmp.eq.s32.totalorder %s27, 1
      %p134 = por %p132, %p133
      %p136 = scmp.ne.s32.totalorder %s121, %s135
      %p137 = scmp.eq.s32.totalorder %s27, 0
      %p138 = por %p136, %p137
      %s140 = sadd.s32 %s139, 1
      %p143 = scmp.eq.s32.totalorder %s21, 1
      %p144 = scmp.ne.s32.totalorder %s139, %s141
      %p145 = scmp.eq.s32.totalorder %s21, 0
      %p146 = por %p144, %p145
      %p147 = scmp.ne.s32.totalorder %s139, %s141
      %p148 = scmp.eq.s32.totalorder %s26, 1
      %p149 = por %p147, %p148
      %p150 = scmp.ne.s32.totalorder %s141, %s142
      %p151 = scmp.eq.s32.totalorder %s26, 0
      %p152 = por %p150, %p151
      %p153 = scmp.ne.s32.totalorder %s141, %s142
      %p154 = scmp.eq.s32.totalorder %s27, 1
      %p155 = por %p153, %p154
      %p157 = scmp.ne.s32.totalorder %s142, %s156
      %p158 = scmp.eq.s32.totalorder %s27, 0
      %p159 = por %p157, %p158
      %s161 = sadd.s32 %s160, 1
      %p164 = scmp.eq.s32.totalorder %s21, 1
      %p165 = scmp.ne.s32.totalorder %s160, %s162
      %p166 = scmp.eq.s32.totalorder %s21, 0
      %p167 = por %p165, %p166
      %p168 = scmp.ne.s32.totalorder %s160, %s162
      %p169 = scmp.eq.s32.totalorder %s26, 1
      %p170 = por %p168, %p169
      %p171 = scmp.ne.s32.totalorder %s162, %s163
      %p172 = scmp.eq.s32.totalorder %s26, 0
      %p173 = por %p171, %p172
      %p174 = scmp.ne.s32.totalorder %s162, %s163
      %p175 = scmp.eq.s32.totalorder %s27, 1
      %p176 = por %p174, %p175
      %p178 = scmp.ne.s32.totalorder %s163, %s177
      %p179 = scmp.eq.s32.totalorder %s27, 0
      %p180 = por %p178, %p179
      %s182 = sadd.s32 %s181, 1
      %p185 = scmp.eq.s32.totalorder %s21, 1
      %p186 = scmp.ne.s32.totalorder %s181, %s183
      %p187 = scmp.eq.s32.totalorder %s21, 0
      %p188 = por %p186, %p187
      %p189 = scmp.ne.s32.totalorder %s181, %s183
      %p190 = scmp.eq.s32.totalorder %s26, 1
      %p191 = por %p189, %p190
      %p192 = scmp.ne.s32.totalorder %s183, %s184
      %p193 = scmp.eq.s32.totalorder %s26, 0
      %p194 = por %p192, %p193
      %p195 = scmp.ne.s32.totalorder %s183, %s184
      %p196 = scmp.eq.s32.totalorder %s27, 1
      %p197 = por %p195, %p196
      %p199 = scmp.ne.s32.totalorder %s184, %s198
      %p200 = scmp.eq.s32.totalorder %s27, 0
      %p201 = por %p199, %p200
      %s203 = sadd.s32 %s202, 1
      %p206 = scmp.eq.s32.totalorder %s21, 1
      %p207 = scmp.ne.s32.totalorder %s202, %s204
      %p208 = scmp.eq.s32.totalorder %s21, 0
      %p209 = por %p207, %p208
      %p210 = scmp.ne.s32.totalorder %s202, %s204
      %p211 = scmp.eq.s32.totalorder %s26, 1
      %p212 = por %p210, %p211
      %p213 = scmp.ne.s32.totalorder %s204, %s205
      %p214 = scmp.eq.s32.totalorder %s26, 0
      %p215 = por %p213, %p214
      %p216 = scmp.ne.s32.totalorder %s204, %s205
      %p217 = scmp.eq.s32.totalorder %s27, 1
      %p218 = por %p216, %p217
      %p220 = scmp.ne.s32.totalorder %s205, %s219
      %p221 = scmp.eq.s32.totalorder %s27, 0
      %p222 = por %p220, %p221
      %s224 = sadd.s32 %s223, 1
      %p227 = scmp.eq.s32.totalorder %s21, 1
      %p228 = scmp.ne.s32.totalorder %s223, %s225
      %p229 = scmp.eq.s32.totalorder %s21, 0
      %p230 = por %p228, %p229
      %p231 = scmp.ne.s32.totalorder %s223, %s225
      %p232 = scmp.eq.s32.totalorder %s26, 1
      %p233 = por %p231, %p232
      %p234 = scmp.ne.s32.totalorder %s225, %s226
      %p235 = scmp.eq.s32.totalorder %s26, 0
      %p236 = por %p234, %p235
      %p237 = scmp.ne.s32.totalorder %s225, %s226
      %p238 = scmp.eq.s32.totalorder %s27, 1
      %p239 = por %p237, %p238
      %p241 = scmp.ne.s32.totalorder %s226, %s240
      %p242 = scmp.eq.s32.totalorder %s27, 0
      %p243 = por %p241, %p242
      %s245 = sadd.s32 %s244, 1
      %p248 = scmp.eq.s32.totalorder %s21, 1
      %p249 = scmp.ne.s32.totalorder %s244, %s246
      %p250 = scmp.eq.s32.totalorder %s21, 0
      %p251 = por %p249, %p250
      %p252 = scmp.ne.s32.totalorder %s244, %s246
      %p253 = scmp.eq.s32.totalorder %s26, 1
      %p254 = por %p252, %p253
      %p255 = scmp.ne.s32.totalorder %s246, %s247
      %p256 = scmp.eq.s32.totalorder %s26, 0
      %p257 = por %p255, %p256
      %p258 = scmp.ne.s32.totalorder %s246, %s247
      %p259 = scmp.eq.s32.totalorder %s27, 1
      %p260 = por %p258, %p259
      %p262 = scmp.ne.s32.totalorder %s247, %s261
      %p263 = scmp.eq.s32.totalorder %s27, 0
      %p264 = por %p262, %p263
      %s266 = sadd.s32 %s265, 1
      %p269 = scmp.eq.s32.totalorder %s21, 1
      %p270 = scmp.ne.s32.totalorder %s265, %s267
      %p271 = scmp.eq.s32.totalorder %s21, 0
      %p272 = por %p270, %p271
      %p273 = scmp.ne.s32.totalorder %s265, %s267
      %p274 = scmp.eq.s32.totalorder %s26, 1
      %p275 = por %p273, %p274
      %p276 = scmp.ne.s32.totalorder %s267, %s268
      %p277 = scmp.eq.s32.totalorder %s26, 0
      %p278 = por %p276, %p277
      %p279 = scmp.ne.s32.totalorder %s267, %s268
      %p280 = scmp.eq.s32.totalorder %s27, 1
      %p281 = por %p279, %p280
      %p283 = scmp.ne.s32.totalorder %s268, %s282
      %p284 = scmp.eq.s32.totalorder %s27, 0
      %p285 = por %p283, %p284
      %s286 = ssub.s32 %s21, %s28
      %p287 = scmp.eq.s32.totalorder %s286, 0
      %s289 = sadd.s32 %s288, 1
      %s290 = scalar_select %p287, %s288, %s289
      %p293 = pneg %p287
      %p294 = scmp.eq.s32.totalorder %s21, 1
      %p295 = por %p293, %p294
      %p296 = scmp.ne.s32.totalorder %s288, %s291
      %p297 = scmp.eq.s32.totalorder %s21, 0
      %p298 = por %p296, %p297
      %p299 = scmp.ne.s32.totalorder %s288, %s291
      %p300 = scmp.eq.s32.totalorder %s26, 1
      %p301 = por %p299, %p300
      %p302 = scmp.ne.s32.totalorder %s291, %s292
      %p303 = scmp.eq.s32.totalorder %s26, 0
      %p304 = por %p302, %p303
      %p305 = scmp.ne.s32.totalorder %s291, %s292
      %p306 = scmp.eq.s32.totalorder %s27, 1
      %p307 = por %p305, %p306
      %p309 = scmp.ne.s32.totalorder %s292, %s308
      %p310 = scmp.eq.s32.totalorder %s27, 0
      %p311 = por %p309, %p310
      %p312 = scmp.le.s32.totalorder 1, %s21
      %p313 = scmp.lt.s32.totalorder %s21, 3
      %p314 = pnand %p312, %p313
      %p315 = pneg %p314
      // Predicated region
      $region9: #{tpu_custom_call.1} parent=5 // pred_check
        _
      $region10: #{tpu_custom_call.1} parent=5 // pred_check_branch
        %317 = sbr.rel (%p314) target = $region12
      $region11: #{tpu_custom_call.1} parent=5 // pred_region
        %s318 = ssub.s32 %s21, 1
        // Predicated region
        $region13: #{tpu_custom_call.1} parent=11 // pred_check
          %p319 = pneg %p68
        $region14: #{tpu_custom_call.1} parent=11 // pred_check_branch
          %321 = sbr.rel (%p319) target = $region16
        $region15: #{tpu_custom_call.1} parent=11 // pred_region
          _
        $region16: #{tpu_custom_call.1} parent=11 // pred_fallthru
          _
        // Predicated region
        $region17: #{tpu_custom_call.1} parent=11 // pred_check
          %p322 = pneg %p89
        $region18: #{tpu_custom_call.1} parent=11 // pred_check_branch
          %324 = sbr.rel (%p322) target = $region20
        $region19: #{tpu_custom_call.1} parent=11 // pred_region
          _
        $region20: #{tpu_custom_call.1} parent=11 // pred_fallthru
          _
        // Predicated region
        $region21: #{tpu_custom_call.1} parent=11 // pred_check
          %p325 = pneg %p110
        $region22: #{tpu_custom_call.1} parent=11 // pred_check_branch
          %327 = sbr.rel (%p325) target = $region24
        $region23: #{tpu_custom_call.1} parent=11 // pred_region
          _
        $region24: #{tpu_custom_call.1} parent=11 // pred_fallthru
          _
        // Predicated region
        $region25: #{tpu_custom_call.1} parent=11 // pred_check
          %p328 = pneg %p131
        $region26: #{tpu_custom_call.1} parent=11 // pred_check_branch
          %330 = sbr.rel (%p328) target = $region28
        $region27: #{tpu_custom_call.1} parent=11 // pred_region
          _
        $region28: #{tpu_custom_call.1} parent=11 // pred_fallthru
          _
        // Predicated region
        $region29: #{tpu_custom_call.1} parent=11 // pred_check
          %p331 = pneg %p152
        $region30: #{tpu_custom_call.1} parent=11 // pred_check_branch
          %333 = sbr.rel (%p331) target = $region32
        $region31: #{tpu_custom_call.1} parent=11 // pred_region
          _
        $region32: #{tpu_custom_call.1} parent=11 // pred_fallthru
          _
        // Predicated region
        $region33: #{tpu_custom_call.1} parent=11 // pred_check
          %p334 = pneg %p173
        $region34: #{tpu_custom_call.1} parent=11 // pred_check_branch
          %336 = sbr.rel (%p334) target = $region36
        $region35: #{tpu_custom_call.1} parent=11 // pred_region
          _
        $region36: #{tpu_custom_call.1} parent=11 // pred_fallthru
          _
        // Predicated region
        $region37: #{tpu_custom_call.1} parent=11 // pred_check
          %p337 = pneg %p194
        $region38: #{tpu_custom_call.1} parent=11 // pred_check_branch
          %339 = sbr.rel (%p337) target = $region40
        $region39: #{tpu_custom_call.1} parent=11 // pred_region
          _
        $region40: #{tpu_custom_call.1} parent=11 // pred_fallthru
          _
        // Predicated region
        $region41: #{tpu_custom_call.1} parent=11 // pred_check
          %p340 = pneg %p215
        $region42: #{tpu_custom_call.1} parent=11 // pred_check_branch
          %342 = sbr.rel (%p340) target = $region44
        $region43: #{tpu_custom_call.1} parent=11 // pred_region
          _
        $region44: #{tpu_custom_call.1} parent=11 // pred_fallthru
          _
        // Predicated region
        $region45: #{tpu_custom_call.1} parent=11 // pred_check
          %p343 = pneg %p236
        $region46: #{tpu_custom_call.1} parent=11 // pred_check_branch
          %345 = sbr.rel (%p343) target = $region48
        $region47: #{tpu_custom_call.1} parent=11 // pred_region
          _
        $region48: #{tpu_custom_call.1} parent=11 // pred_fallthru
          _
        // Predicated region
        $region49: #{tpu_custom_call.1} parent=11 // pred_check
          %p346 = pneg %p257
        $region50: #{tpu_custom_call.1} parent=11 // pred_check_branch
          %348 = sbr.rel (%p346) target = $region52
        $region51: #{tpu_custom_call.1} parent=11 // pred_region
          _
        $region52: #{tpu_custom_call.1} parent=11 // pred_fallthru
          _
        // Predicated region
        $region53: #{tpu_custom_call.1} parent=11 // pred_check
          %p349 = pneg %p278
        $region54: #{tpu_custom_call.1} parent=11 // pred_check_branch
          %351 = sbr.rel (%p349) target = $region56
        $region55: #{tpu_custom_call.1} parent=11 // pred_region
          _
        $region56: #{tpu_custom_call.1} parent=11 // pred_fallthru
          _
      $region12: #{tpu_custom_call.1} parent=5 // pred_fallthru
        _
      %p352 = scmp.lt.s32.totalorder %s21, 2
      // Predicated region
      $region57: #{tpu_custom_call.1} parent=5 // pred_check
        %p353 = pneg %p352
      $region58: #{tpu_custom_call.1} parent=5 // pred_check_branch
        %355 = sbr.rel (%p353) target = $region60
      $region59: #{tpu_custom_call.1} parent=5 // pred_region
        // Predicated region
        $region61: #{tpu_custom_call.1} parent=59 // pred_check
          %p356 = pneg %p41
        $region62: #{tpu_custom_call.1} parent=59 // pred_check_branch
          %358 = sbr.rel (%p356) target = $region64
        $region63: #{tpu_custom_call.1} parent=59 // pred_region
          %p359 = scmp.lt.s32.totalorder %s21, 1
          %s360 = scalar_select %p359, %s21, 1
          %s361 = smul.addr %s360, 8
          %s362 = smul.addr %s361, 8
          %s363 = scalar_lea.vmem %s0, %s362
        $region64: #{tpu_custom_call.1} parent=59 // pred_fallthru
          _
      $region60: #{tpu_custom_call.1} parent=5 // pred_fallthru
        _
      %p364 = scmp.le.s32.totalorder 1, %s21
      %p365 = scmp.lt.s32.totalorder %s21, 3
      %p366 = pnand %p364, %p365
      %p367 = pneg %p366
      // Predicated region
      $region65: #{tpu_custom_call.1} parent=5 // pred_check
        _
      $region66: #{tpu_custom_call.1} parent=5 // pred_check_branch
        %369 = sbr.rel (%p366) target = $region68
      $region67: #{tpu_custom_call.1} parent=5 // pred_region
        %s370 = ssub.s32 %s21, 1
        %p371 = scmp.lt.s32.totalorder %s26, 1
        %s372 = scalar_select %p371, %s26, 1
        %s373 = smul.addr %s372, 8
        %s374 = smul.addr %s373, 8
        %s375 = scalar_lea.vmem %s0, %s374
        %p376 = pneg %p47
        %p377 = pneg %p44
        %p378 = pneg %p68
        %p379 = pneg %p65
        %p380 = pneg %p89
        %p381 = pneg %p86
        %p382 = pneg %p110
        %p383 = pneg %p107
        %p384 = pneg %p131
        %p385 = pneg %p128
        %p386 = pneg %p152
        %p387 = pneg %p149
        %p388 = pneg %p173
        %p389 = pneg %p170
        %p390 = pneg %p194
        %p391 = pneg %p191
        %p392 = pneg %p215
        %p393 = pneg %p212
        %p394 = pneg %p236
        %p395 = pneg %p233
        %p396 = pneg %p257
        %p397 = pneg %p254
        %p398 = pneg %p278
        %p399 = pneg %p275
        %p400 = pneg %p304
        %p401 = pneg %p301
        %s402 = sand.u32 %s291, 1
        %s403 = scalar_lea.sflag [#allocation5], %s402
        %s404 = sand.u32 %s291, 1
        %s405 = smul.addr %s404, 64
        %s406 = scalar_lea.vmem [#allocation4], %s405
        %p407 = scmp.lt.s32.totalorder %s26, 1
        %s408 = scalar_select %p407, %s26, 1
        %s409 = smul.addr %s408, 8
        %s410 = smul.addr %s409, 8
        %s411 = scalar_lea.vmem %s0, %s410
        %vm412 = vcmask 261120
        %413 = vst.msk [vmem:[#allocation2] sm:$0xff] %vm412, 0.0
        %414 = vst.msk [vmem:[#allocation2 + $0x8] sm:$0xff] %vm412, 0.0
        %vm415 = vcmask 254976
        %416 = vst.msk [vmem:[#allocation2 + $0x10] sm:$0x3] %vm415, 0.0
        %s417 = scalar_lea.vmem [#allocation2], 408
        %418 = vst.msk [vmem:[%s417] sm:$0xff] %vm412, 0.0
        %419 = vst.msk [vmem:[%s417 + $0x8] sm:$0xff] %vm412, 0.0
        %420 = vst.msk [vmem:[%s417 + $0x10] sm:$0x3] %vm415, 0.0
        %s421 = scalar_lea.vmem [#allocation2], 24
        %vm422 = vcmask 253952
        %423 = vst.msk [vmem:[%s421] sm:$0x1] %vm422, 0.0
        %424 = vst.msk [vmem:[%s421 + $0x18] sm:$0x1] %vm422, 0.0
        %425 = vst.msk [vmem:[%s421 + $0x30] sm:$0x1] %vm422, 0.0
        %426 = vst.msk [vmem:[%s421 + $0x48] sm:$0x1] %vm422, 0.0
        %427 = vst.msk [vmem:[%s421 + $0x60] sm:$0x1] %vm422, 0.0
        %428 = vst.msk [vmem:[%s421 + $0x78] sm:$0x1] %vm422, 0.0
        %429 = vst.msk [vmem:[%s421 + $0x90] sm:$0x1] %vm422, 0.0
        %430 = vst.msk [vmem:[%s421 + $0xa8] sm:$0x1] %vm422, 0.0
        %431 = vst.msk [vmem:[%s421 + $0xc0] sm:$0x1] %vm422, 0.0
        %432 = vst.msk [vmem:[%s421 + $0xd8] sm:$0x1] %vm422, 0.0
        %433 = vst.msk [vmem:[%s421 + $0xf0] sm:$0x1] %vm422, 0.0
        %434 = vst.msk [vmem:[%s421 + $0x108] sm:$0x1] %vm422, 0.0
        %435 = vst.msk [vmem:[%s421 + $0x120] sm:$0x1] %vm422, 0.0
        %436 = vst.msk [vmem:[%s421 + $0x138] sm:$0x1] %vm422, 0.0
        %437 = vst.msk [vmem:[%s421 + $0x150] sm:$0x1] %vm422, 0.0
        %438 = vst.msk [vmem:[%s421 + $0x168] sm:$0x1] %vm422, 0.0
        %439 = vst.msk [vmem:[%s421 + $0x11] sm:$0x1] %vm422, 0.0
        %440 = vst.msk [vmem:[%s421 + $0x29] sm:$0x1] %vm422, 0.0
        %441 = vst.msk [vmem:[%s421 + $0x41] sm:$0x1] %vm422, 0.0
        %442 = vst.msk [vmem:[%s421 + $0x59] sm:$0x1] %vm422, 0.0
        %443 = vst.msk [vmem:[%s421 + $0x71] sm:$0x1] %vm422, 0.0
        %444 = vst.msk [vmem:[%s421 + $0x89] sm:$0x1] %vm422, 0.0
        %445 = vst.msk [vmem:[%s421 + $0xa1] sm:$0x1] %vm422, 0.0
        %446 = vst.msk [vmem:[%s421 + $0xb9] sm:$0x1] %vm422, 0.0
        %447 = vst.msk [vmem:[%s421 + $0xd1] sm:$0x1] %vm422, 0.0
        %448 = vst.msk [vmem:[%s421 + $0xe9] sm:$0x1] %vm422, 0.0
        %449 = vst.msk [vmem:[%s421 + $0x101] sm:$0x1] %vm422, 0.0
        %450 = vst.msk [vmem:[%s421 + $0x119] sm:$0x1] %vm422, 0.0
        %451 = vst.msk [vmem:[%s421 + $0x131] sm:$0x1] %vm422, 0.0
        %452 = vst.msk [vmem:[%s421 + $0x149] sm:$0x1] %vm422, 0.0
        %453 = vst.msk [vmem:[%s421 + $0x161] sm:$0x1] %vm422, 0.0
        %454 = vst.msk [vmem:[%s421 + $0x179] sm:$0x1] %vm422, 0.0
        %v455 = vld [vmem:[%s411] sm:$0xff]
        %v456 = vld [vmem:[%s411 + $0x8] sm:$0xff]
        %v457 = vld [vmem:[%s411 + $0x10] sm:$0xff]
        %v458 = vld [vmem:[%s411 + $0x18] sm:$0xff]
        %v459 = vld [vmem:[%s411 + $0x20] sm:$0xff]
        %v460 = vld [vmem:[%s411 + $0x28] sm:$0xff]
        %v461 = vld [vmem:[%s411 + $0x30] sm:$0xff]
        %v462 = vld [vmem:[%s411 + $0x38] sm:$0xff]
        %v463 = vld [vmem:[%s1] sm:$0xff]
        %v464 = vld [vmem:[%s1 + $0x8] sm:$0xff]
        %v465 = vld [vmem:[%s1 + $0x10] sm:$0xff]
        %v466 = vld [vmem:[%s1 + $0x18] sm:$0xff]
        %v467 = vld [vmem:[%s2] sm:$0x1]
        %v469 = vlaneseq
        %v470 = vshrl.u32 %v469, 7
        %v471 = vsub.s32 0, %v470
        %v472 = vrot.slane %v467, %v471
        %474 = vxpose.xlu0.b32.start [1/16] %v455, 128
        %475 = vxpose.xlu0.b32.cont [2/16] %v457, 128
        %476 = vxpose.xlu0.b32.cont [3/16] %v459, 128
        %477 = vxpose.xlu0.b32.cont [4/16] %v461, 128
        %478 = vxpose.xlu0.b32.cont [5/16] 0.0, 128
        %479 = vxpose.xlu0.b32.cont [6/16] 0.0, 128
        %480 = vxpose.xlu0.b32.cont [7/16] 0.0, 128
        %481 = vxpose.xlu0.b32.cont [8/16] 0.0, 128
        %482 = vxpose.xlu0.b32.cont [9/16] 0.0, 128
        %483 = vxpose.xlu0.b32.cont [10/16] 0.0, 128
        %484 = vxpose.xlu0.b32.cont [11/16] 0.0, 128
        %485 = vxpose.xlu0.b32.cont [12/16] 0.0, 128
        %486 = vxpose.xlu0.b32.cont [13/16] 0.0, 128
        %487 = vxpose.xlu0.b32.cont [14/16] 0.0, 128
        %488 = vxpose.xlu0.b32.cont [15/16] 0.0, 128
        %489 = vxpose.xlu0.b32.end [16/16] 0.0, 128
        %v490 = vpop.trf.xlu0
        %v491 = vpop.trf.xlu0
        %v492 = vpop.trf.xlu0
        %v493 = vpop.trf.xlu0
        %v494 = vpop.trf.xlu0
        %v495 = vpop.trf.xlu0
        %v496 = vpop.trf.xlu0
        %v497 = vpop.trf.xlu0
        %v498 = vpop.trf.xlu0
        %v499 = vpop.trf.xlu0
        %v500 = vpop.trf.xlu0
        %v501 = vpop.trf.xlu0
        %v502 = vpop.trf.xlu0
        %v503 = vpop.trf.xlu0
        %v504 = vpop.trf.xlu0
        %v505 = vpop.trf.xlu0
        %506 = vxpose.xlu0.b32.start [1/16] %v456, 128
        %507 = vxpose.xlu0.b32.cont [2/16] %v458, 128
        %508 = vxpose.xlu0.b32.cont [3/16] %v460, 128
        %509 = vxpose.xlu0.b32.cont [4/16] %v462, 128
        %510 = vxpose.xlu0.b32.cont [5/16] 0.0, 128
        %511 = vxpose.xlu0.b32.cont [6/16] 0.0, 128
        %512 = vxpose.xlu0.b32.cont [7/16] 0.0, 128
        %513 = vxpose.xlu0.b32.cont [8/16] 0.0, 128
        %514 = vxpose.xlu0.b32.cont [9/16] 0.0, 128
        %515 = vxpose.xlu0.b32.cont [10/16] 0.0, 128
        %516 = vxpose.xlu0.b32.cont [11/16] 0.0, 128
        %517 = vxpose.xlu0.b32.cont [12/16] 0.0, 128
        %518 = vxpose.xlu0.b32.cont [13/16] 0.0, 128
        %519 = vxpose.xlu0.b32.cont [14/16] 0.0, 128
        %520 = vxpose.xlu0.b32.cont [15/16] 0.0, 128
        %521 = vxpose.xlu0.b32.end [16/16] 0.0, 128
        %v522 = vpop.trf.xlu0
        %v523 = vpop.trf.xlu0
        %v524 = vpop.trf.xlu0
        %v525 = vpop.trf.xlu0
        %v526 = vpop.trf.xlu0
        %v527 = vpop.trf.xlu0
        %v528 = vpop.trf.xlu0
        %v529 = vpop.trf.xlu0
        %v530 = vpop.trf.xlu0
        %v531 = vpop.trf.xlu0
        %v532 = vpop.trf.xlu0
        %v533 = vpop.trf.xlu0
        %v534 = vpop.trf.xlu0
        %v535 = vpop.trf.xlu0
        %v536 = vpop.trf.xlu0
        %v537 = vpop.trf.xlu0
        %v539 = vsel %vm412, %v490, 0
        %v542 = vsel %vm412, %v491, 0
        %v545 = vsel %vm412, %v492, 0
        %v548 = vsel %vm412, %v493, 0
        %v551 = vsel %vm412, %v494, 0
        %v554 = vsel %vm412, %v495, 0
        %v557 = vsel %vm412, %v496, 0
        %v560 = vsel %vm412, %v497, 0
        %v563 = vsel %vm412, %v498, 0
        %v566 = vsel %vm412, %v499, 0
        %v569 = vsel %vm412, %v500, 0
        %v572 = vsel %vm412, %v501, 0
        %v575 = vsel %vm412, %v502, 0
        %v578 = vsel %vm412, %v503, 0
        %v581 = vsel %vm412, %v504, 0
        %v584 = vsel %vm412, %v505, 0
        %v587 = vsel %vm412, %v522, 0
        %v590 = vsel %vm412, %v523, 0
        %v593 = vsel %vm412, %v524, 0
        %v596 = vsel %vm412, %v525, 0
        %v599 = vsel %vm412, %v526, 0
        %v602 = vsel %vm412, %v527, 0
        %v605 = vsel %vm412, %v528, 0
        %v608 = vsel %vm412, %v529, 0
        %v611 = vsel %vm412, %v530, 0
        %v614 = vsel %vm412, %v531, 0
        %v617 = vsel %vm412, %v532, 0
        %v620 = vsel %vm412, %v533, 0
        %v623 = vsel %vm412, %v534, 0
        %v626 = vsel %vm412, %v535, 0
        %v629 = vsel %vm412, %v536, 0
        %v632 = vsel %vm412, %v537, 0
        %634 = vmatprep.subr.mxu0 0.0
        %635 = vmatpush1.msra.mxu0 %v463
        %636 = vmatprep.subr.mxu0 0.0
        %637 = vmatpush1.msra.mxu0 %v464
        %638 = vmatprep.subr.mxu0 0.0
        %639 = vmatpush1.msra.mxu0 %v465
        %640 = vmatprep.subr.mxu0 0.0
        %641 = vmatpush1.msra.mxu0 %v466
        %642 = vmatprep.subr.mxu0 0.0
        %643 = vmatpush1.msra.mxu0 0.0
        %644 = vmatprep.subr.mxu0 0.0
        %645 = vmatpush1.msra.mxu0 0.0
        %646 = vmatprep.subr.mxu0 0.0
        %647 = vmatpush1.msra.mxu0 0.0
        %648 = vmatprep.subr.mxu0 0.0
        %649 = vmatpush1.msra.mxu0 0.0
        %650 = vmatprep.subr.mxu0 0.0
        %651 = vmatpush1.msra.mxu0 0.0
        %652 = vmatprep.subr.mxu0 0.0
        %653 = vmatpush1.msra.mxu0 0.0
        %654 = vmatprep.subr.mxu0 0.0
        %655 = vmatpush1.msra.mxu0 0.0
        %656 = vmatprep.subr.mxu0 0.0
        %657 = vmatpush1.msra.mxu0 0.0
        %658 = vmatprep.subr.mxu0 0.0
        %659 = vmatpush1.msra.mxu0 0.0
        %660 = vmatprep.subr.mxu0 0.0
        %661 = vmatpush1.msra.mxu0 0.0
        %662 = vmatprep.subr.mxu0 0.0
        %663 = vmatpush1.msra.mxu0 0.0
        %664 = vmatprep.subr.mxu0 0.0
        %665 = vmatpush1.msra.mxu0 0.0
        %666 = vmatprep.subr.mxu0 0.0
        %667 = vmatpush1.msra.mxu0 0.0
        %668 = vmatprep.subr.mxu0 0.0
        %669 = vmatpush1.msra.mxu0 0.0
        %670 = vmatprep.subr.mxu0 0.0
        %671 = vmatpush1.msra.mxu0 0.0
        %672 = vmatprep.subr.mxu0 0.0
        %673 = vmatpush1.msra.mxu0 0.0
        %674 = vmatprep.subr.mxu0 0.0
        %675 = vmatpush1.msra.mxu0 0.0
        %676 = vmatprep.subr.mxu0 0.0
        %677 = vmatpush1.msra.mxu0 0.0
        %678 = vmatprep.subr.mxu0 0.0
        %679 = vmatpush1.msra.mxu0 0.0
        %680 = vmatprep.subr.mxu0 0.0
        %681 = vmatpush1.msra.mxu0 0.0
        %682 = vmatprep.subr.mxu0 0.0
        %683 = vmatpush1.msra.mxu0 0.0
        %684 = vmatprep.subr.mxu0 0.0
        %685 = vmatpush1.msra.mxu0 0.0
        %686 = vmatprep.subr.mxu0 0.0
        %687 = vmatpush1.msra.mxu0 0.0
        %688 = vmatprep.subr.mxu0 0.0
        %689 = vmatpush1.msra.mxu0 0.0
        %690 = vmatprep.subr.mxu0 0.0
        %691 = vmatpush1.msra.mxu0 0.0
        %692 = vmatprep.subr.mxu0 0.0
        %693 = vmatpush1.msra.mxu0 0.0
        %694 = vmatprep.subr.mxu0 0.0
        %695 = vmatpush1.msra.mxu0 0.0
        %696 = vmatprep.subr.mxu0 0.0
        %697 = vmatpush1.msra.mxu0 0.0
        %698 = vmatprep.mubr.f32.mxu0 0.0
        %699 = vmatmul.mubr.f32.gmra.mrb[0].mxu0 %v539
        %v700 = vpop.f32.mrb[0].mxu0
        %v701 = vadd.f32 %v472, %v700
        %v702 = vpop.f32.mrb[0].mxu0
        %703 = vmatprep.mubr.f32.mxu0 0.0
        %704 = vmatmul.mubr.f32.gmra.mrb[0].mxu0 %v542
        %v705 = vpop.f32.mrb[0].mxu0
        %v706 = vadd.f32 %v472, %v705
        %v707 = vpop.f32.mrb[0].mxu0
        %708 = vmatprep.mubr.f32.mxu0 0.0
        %709 = vmatmul.mubr.f32.gmra.mrb[0].mxu0 %v545
        %v710 = vpop.f32.mrb[0].mxu0
        %v711 = vadd.f32 %v472, %v710
        %v712 = vpop.f32.mrb[0].mxu0
        %713 = vmatprep.mubr.f32.mxu0 0.0
        %714 = vmatmul.mubr.f32.gmra.mrb[0].mxu0 %v548
        %v715 = vpop.f32.mrb[0].mxu0
        %v716 = vadd.f32 %v472, %v715
        %v717 = vpop.f32.mrb[0].mxu0
        %718 = vmatprep.mubr.f32.mxu0 0.0
        %719 = vmatmul.mubr.f32.gmra.mrb[0].mxu0 %v551
        %v720 = vpop.f32.mrb[0].mxu0
        %v721 = vadd.f32 %v472, %v720
        %v722 = vpop.f32.mrb[0].mxu0
        %723 = vmatprep.mubr.f32.mxu0 0.0
        %724 = vmatmul.mubr.f32.gmra.mrb[0].mxu0 %v554
        %v725 = vpop.f32.mrb[0].mxu0
        %v726 = vadd.f32 %v472, %v725
        %v727 = vpop.f32.mrb[0].mxu0
        %728 = vmatprep.mubr.f32.mxu0 0.0
        %729 = vmatmul.mubr.f32.gmra.mrb[0].mxu0 %v557
        %v730 = vpop.f32.mrb[0].mxu0
        %v731 = vadd.f32 %v472, %v730
        %v732 = vpop.f32.mrb[0].mxu0
        %733 = vmatprep.mubr.f32.mxu0 0.0
        %734 = vmatmul.mubr.f32.gmra.mrb[0].mxu0 %v560
        %v735 = vpop.f32.mrb[0].mxu0
        %v736 = vadd.f32 %v472, %v735
        %v737 = vpop.f32.mrb[0].mxu0
        %738 = vmatprep.mubr.f32.mxu0 0.0
        %739 = vmatmul.mubr.f32.gmra.mrb[0].mxu0 %v563
        %v740 = vpop.f32.mrb[0].mxu0
        %v741 = vadd.f32 %v472, %v740
        %v742 = vpop.f32.mrb[0].mxu0
        %743 = vmatprep.mubr.f32.mxu0 0.0
        %744 = vmatmul.mubr.f32.gmra.mrb[0].mxu0 %v566
        %v745 = vpop.f32.mrb[0].mxu0
        %v746 = vadd.f32 %v472, %v745
        %v747 = vpop.f32.mrb[0].mxu0
        %748 = vmatprep.mubr.f32.mxu0 0.0
        %749 = vmatmul.mubr.f32.gmra.mrb[0].mxu0 %v569
        %v750 = vpop.f32.mrb[0].mxu0
        %v751 = vadd.f32 %v472, %v750
        %v752 = vpop.f32.mrb[0].mxu0
        %753 = vmatprep.mubr.f32.mxu0 0.0
        %754 = vmatmul.mubr.f32.gmra.mrb[0].mxu0 %v572
        %v755 = vpop.f32.mrb[0].mxu0
        %v756 = vadd.f32 %v472, %v755
        %v757 = vpop.f32.mrb[0].mxu0
        %758 = vmatprep.mubr.f32.mxu0 0.0
        %759 = vmatmul.mubr.f32.gmra.mrb[0].mxu0 %v575
        %v760 = vpop.f32.mrb[0].mxu0
        %v761 = vadd.f32 %v472, %v760
        %v762 = vpop.f32.mrb[0].mxu0
        %763 = vmatprep.mubr.f32.mxu0 0.0
        %764 = vmatmul.mubr.f32.gmra.mrb[0].mxu0 %v578
        %v765 = vpop.f32.mrb[0].mxu0
        %v766 = vadd.f32 %v472, %v765
        %v767 = vpop.f32.mrb[0].mxu0
        %768 = vmatprep.mubr.f32.mxu0 0.0
        %769 = vmatmul.mubr.f32.gmra.mrb[0].mxu0 %v581
        %v770 = vpop.f32.mrb[0].mxu0
        %v771 = vadd.f32 %v472, %v770
        %v772 = vpop.f32.mrb[0].mxu0
        %773 = vmatprep.mubr.f32.mxu0 0.0
        %774 = vmatmul.mubr.f32.gmra.mrb[0].mxu0 %v584
        %v775 = vpop.f32.mrb[0].mxu0
        %v776 = vadd.f32 %v472, %v775
        %v777 = vpop.f32.mrb[0].mxu0
        %778 = vmatprep.mubr.f32.mxu0 0.0
        %779 = vmatmul.mubr.f32.gmra.mrb[0].mxu0 %v587
        %v780 = vpop.f32.mrb[0].mxu0
        %v781 = vadd.f32 %v472, %v780
        %v782 = vpop.f32.mrb[0].mxu0
        %783 = vmatprep.mubr.f32.mxu0 0.0
        %784 = vmatmul.mubr.f32.gmra.mrb[0].mxu0 %v590
        %v785 = vpop.f32.mrb[0].mxu0
        %v786 = vadd.f32 %v472, %v785
        %v787 = vpop.f32.mrb[0].mxu0
        %788 = vmatprep.mubr.f32.mxu0 0.0
        %789 = vmatmul.mubr.f32.gmra.mrb[0].mxu0 %v593
        %v790 = vpop.f32.mrb[0].mxu0
        %v791 = vadd.f32 %v472, %v790
        %v792 = vpop.f32.mrb[0].mxu0
        %793 = vmatprep.mubr.f32.mxu0 0.0
        %794 = vmatmul.mubr.f32.gmra.mrb[0].mxu0 %v596
        %v795 = vpop.f32.mrb[0].mxu0
        %v796 = vadd.f32 %v472, %v795
        %v797 = vpop.f32.mrb[0].mxu0
        %798 = vmatprep.mubr.f32.mxu0 0.0
        %799 = vmatmul.mubr.f32.gmra.mrb[0].mxu0 %v599
        %v800 = vpop.f32.mrb[0].mxu0
        %v801 = vadd.f32 %v472, %v800
        %v802 = vpop.f32.mrb[0].mxu0
        %803 = vmatprep.mubr.f32.mxu0 0.0
        %804 = vmatmul.mubr.f32.gmra.mrb[0].mxu0 %v602
        %v805 = vpop.f32.mrb[0].mxu0
        %v806 = vadd.f32 %v472, %v805
        %v807 = vpop.f32.mrb[0].mxu0
        %808 = vmatprep.mubr.f32.mxu0 0.0
        %809 = vmatmul.mubr.f32.gmra.mrb[0].mxu0 %v605
        %v810 = vpop.f32.mrb[0].mxu0
        %v811 = vadd.f32 %v472, %v810
        %v812 = vpop.f32.mrb[0].mxu0
        %813 = vmatprep.mubr.f32.mxu0 0.0
        %814 = vmatmul.mubr.f32.gmra.mrb[0].mxu0 %v608
        %v815 = vpop.f32.mrb[0].mxu0
        %v816 = vadd.f32 %v472, %v815
        %v817 = vpop.f32.mrb[0].mxu0
        %818 = vmatprep.mubr.f32.mxu0 0.0
        %819 = vmatmul.mubr.f32.gmra.mrb[0].mxu0 %v611
        %v820 = vpop.f32.mrb[0].mxu0
        %v821 = vadd.f32 %v472, %v820
        %v822 = vpop.f32.mrb[0].mxu0
        %823 = vmatprep.mubr.f32.mxu0 0.0
        %824 = vmatmul.mubr.f32.gmra.mrb[0].mxu0 %v614
        %v825 = vpop.f32.mrb[0].mxu0
        %v826 = vadd.f32 %v472, %v825
        %v827 = vpop.f32.mrb[0].mxu0
        %828 = vmatprep.mubr.f32.mxu0 0.0
        %829 = vmatmul.mubr.f32.gmra.mrb[0].mxu0 %v617
        %v830 = vpop.f32.mrb[0].mxu0
        %v831 = vadd.f32 %v472, %v830
        %v832 = vpop.f32.mrb[0].mxu0
        %833 = vmatprep.mubr.f32.mxu0 0.0
        %834 = vmatmul.mubr.f32.gmra.mrb[0].mxu0 %v620
        %v835 = vpop.f32.mrb[0].mxu0
        %v836 = vadd.f32 %v472, %v835
        %v837 = vpop.f32.mrb[0].mxu0
        %838 = vmatprep.mubr.f32.mxu0 0.0
        %839 = vmatmul.mubr.f32.gmra.mrb[0].mxu0 %v623
        %v840 = vpop.f32.mrb[0].mxu0
        %v841 = vadd.f32 %v472, %v840
        %v842 = vpop.f32.mrb[0].mxu0
        %843 = vmatprep.mubr.f32.mxu0 0.0
        %844 = vmatmul.mubr.f32.gmra.mrb[0].mxu0 %v626
        %v845 = vpop.f32.mrb[0].mxu0
        %v846 = vadd.f32 %v472, %v845
        %v847 = vpop.f32.mrb[0].mxu0
        %848 = vmatprep.mubr.f32.mxu0 0.0
        %849 = vmatmul.mubr.f32.gmra.mrb[0].mxu0 %v629
        %v850 = vpop.f32.mrb[0].mxu0
        %v851 = vadd.f32 %v472, %v850
        %v852 = vpop.f32.mrb[0].mxu0
        %853 = vmatprep.mubr.f32.mxu0 0.0
        %854 = vmatmul.mubr.f32.gmra.mrb[0].mxu0 %v632
        %v855 = vpop.f32.mrb[0].mxu0
        %v856 = vadd.f32 %v472, %v855
        %v857 = vpop.f32.mrb[0].mxu0
        %858 = vdwg.mxu0
        %v859 = vmax.f32 %v701, 0.0
        %v860 = vmax.f32 %v706, 0.0
        %v861 = vmax.f32 %v711, 0.0
        %v862 = vmax.f32 %v716, 0.0
        %v863 = vmax.f32 %v721, 0.0
        %v864 = vmax.f32 %v726, 0.0
        %v865 = vmax.f32 %v731, 0.0
        %v866 = vmax.f32 %v736, 0.0
        %v867 = vmax.f32 %v741, 0.0
        %v868 = vmax.f32 %v746, 0.0
        %v869 = vmax.f32 %v751, 0.0
        %v870 = vmax.f32 %v756, 0.0
        %v871 = vmax.f32 %v761, 0.0
        %v872 = vmax.f32 %v766, 0.0
        %v873 = vmax.f32 %v771, 0.0
        %v874 = vmax.f32 %v776, 0.0
        %v875 = vmax.f32 %v781, 0.0
        %v876 = vmax.f32 %v786, 0.0
        %v877 = vmax.f32 %v791, 0.0
        %v878 = vmax.f32 %v796, 0.0
        %v879 = vmax.f32 %v801, 0.0
        %v880 = vmax.f32 %v806, 0.0
        %v881 = vmax.f32 %v811, 0.0
        %v882 = vmax.f32 %v816, 0.0
        %v883 = vmax.f32 %v821, 0.0
        %v884 = vmax.f32 %v826, 0.0
        %v885 = vmax.f32 %v831, 0.0
        %v886 = vmax.f32 %v836, 0.0
        %v887 = vmax.f32 %v841, 0.0
        %v888 = vmax.f32 %v846, 0.0
        %v889 = vmax.f32 %v851, 0.0
        %v890 = vmax.f32 %v856, 0.0
        %891 = vst.msk [vmem:[%s421 + $0x1] sm:$0xff] %vm412, %v859
        %892 = vst.msk [vmem:[%s421 + $0x9] sm:$0xff] %vm412, %v860
        %893 = vst.msk [vmem:[%s421 + $0x19] sm:$0xff] %vm412, %v861
        %894 = vst.msk [vmem:[%s421 + $0x21] sm:$0xff] %vm412, %v862
        %895 = vst.msk [vmem:[%s421 + $0x31] sm:$0xff] %vm412, %v863
        %896 = vst.msk [vmem:[%s421 + $0x39] sm:$0xff] %vm412, %v864
        %897 = vst.msk [vmem:[%s421 + $0x49] sm:$0xff] %vm412, %v865
        %898 = vst.msk [vmem:[%s421 + $0x51] sm:$0xff] %vm412, %v866
        %899 = vst.msk [vmem:[%s421 + $0x61] sm:$0xff] %vm412, %v867
        %900 = vst.msk [vmem:[%s421 + $0x69] sm:$0xff] %vm412, %v868
        %901 = vst.msk [vmem:[%s421 + $0x79] sm:$0xff] %vm412, %v869
        %902 = vst.msk [vmem:[%s421 + $0x81] sm:$0xff] %vm412, %v870
        %903 = vst.msk [vmem:[%s421 + $0x91] sm:$0xff] %vm412, %v871
        %904 = vst.msk [vmem:[%s421 + $0x99] sm:$0xff] %vm412, %v872
        %905 = vst.msk [vmem:[%s421 + $0xa9] sm:$0xff] %vm412, %v873
        %906 = vst.msk [vmem:[%s421 + $0xb1] sm:$0xff] %vm412, %v874
        %907 = vst.msk [vmem:[%s421 + $0xc1] sm:$0xff] %vm412, %v875
        %908 = vst.msk [vmem:[%s421 + $0xc9] sm:$0xff] %vm412, %v876
        %909 = vst.msk [vmem:[%s421 + $0xd9] sm:$0xff] %vm412, %v877
        %910 = vst.msk [vmem:[%s421 + $0xe1] sm:$0xff] %vm412, %v878
        %911 = vst.msk [vmem:[%s421 + $0xf1] sm:$0xff] %vm412, %v879
        %912 = vst.msk [vmem:[%s421 + $0xf9] sm:$0xff] %vm412, %v880
        %913 = vst.msk [vmem:[%s421 + $0x109] sm:$0xff] %vm412, %v881
        %914 = vst.msk [vmem:[%s421 + $0x111] sm:$0xff] %vm412, %v882
        %915 = vst.msk [vmem:[%s421 + $0x121] sm:$0xff] %vm412, %v883
        %916 = vst.msk [vmem:[%s421 + $0x129] sm:$0xff] %vm412, %v884
        %917 = vst.msk [vmem:[%s421 + $0x139] sm:$0xff] %vm412, %v885
        %918 = vst.msk [vmem:[%s421 + $0x141] sm:$0xff] %vm412, %v886
        %919 = vst.msk [vmem:[%s421 + $0x151] sm:$0xff] %vm412, %v887
        %920 = vst.msk [vmem:[%s421 + $0x159] sm:$0xff] %vm412, %v888
        %921 = vst.msk [vmem:[%s421 + $0x169] sm:$0xff] %vm412, %v889
        %922 = vst.msk [vmem:[%s421 + $0x171] sm:$0xff] %vm412, %v890
        %v923 = vld [vmem:[#allocation2] sm:$0xff]
        %v924 = vld [vmem:[#allocation2 + $0x8] sm:$0xff]
        %v925 = vld [vmem:[#allocation2 + $0x18] sm:$0xff]
        %v926 = vld [vmem:[#allocation2 + $0x20] sm:$0xff]
        %v927 = vld [vmem:[#allocation2 + $0x30] sm:$0xff]
        %v928 = vld [vmem:[#allocation2 + $0x38] sm:$0xff]
        %v929 = vld [vmem:[#allocation2 + $0x48] sm:$0xff]
        %v930 = vld [vmem:[#allocation2 + $0x50] sm:$0xff]
        %v931 = vld [vmem:[#allocation2 + $0x60] sm:$0xff]
        %v932 = vld [vmem:[#allocation2 + $0x68] sm:$0xff]
        %v933 = vld [vmem:[#allocation2 + $0x78] sm:$0xff]
        %v934 = vld [vmem:[#allocation2 + $0x80] sm:$0xff]
        %v935 = vld [vmem:[#allocation2 + $0x90] sm:$0xff]
        %v936 = vld [vmem:[#allocation2 + $0x98] sm:$0xff]
        %v937 = vld [vmem:[#allocation2 + $0xa8] sm:$0xff]
        %v938 = vld [vmem:[#allocation2 + $0xb0] sm:$0xff]
        %v939 = vld [vmem:[#allocation2 + $0xc0] sm:$0xff]
        %v940 = vld [vmem:[#allocation2 + $0xc8] sm:$0xff]
        %v941 = vld [vmem:[#allocation2 + $0xd8] sm:$0xff]
        %v942 = vld [vmem:[#allocation2 + $0xe0] sm:$0xff]
        %v943 = vld [vmem:[#allocation2 + $0xf0] sm:$0xff]
        %v944 = vld [vmem:[#allocation2 + $0xf8] sm:$0xff]
        %v945 = vld [vmem:[#allocation2 + $0x108] sm:$0xff]
        %v946 = vld [vmem:[#allocation2 + $0x110] sm:$0xff]
        %v947 = vld [vmem:[#allocation2 + $0x120] sm:$0xff]
        %v948 = vld [vmem:[#allocation2 + $0x128] sm:$0xff]
        %v949 = vld [vmem:[#allocation2 + $0x138] sm:$0xff]
        %v950 = vld [vmem:[#allocation2 + $0x140] sm:$0xff]
        %v951 = vld [vmem:[#allocation2 + $0x150] sm:$0xff]
        %v952 = vld [vmem:[#allocation2 + $0x158] sm:$0xff]
        %v953 = vld [vmem:[#allocation2 + $0x168] sm:$0xff]
        %v954 = vld [vmem:[#allocation2 + $0x170] sm:$0xff]
        %955 = vst.msk [vmem:[#allocation3] sm:$0xff] %vm412, %v923
        %956 = vst.msk [vmem:[#allocation3 + $0x18] sm:$0xff] %vm412, %v924
        %957 = vst.msk [vmem:[#allocation3 + $0x30] sm:$0xff] %vm412, %v925
        %958 = vst.msk [vmem:[#allocation3 + $0x48] sm:$0xff] %vm412, %v926
        %959 = vst.msk [vmem:[#allocation3 + $0x60] sm:$0xff] %vm412, %v927
        %960 = vst.msk [vmem:[#allocation3 + $0x78] sm:$0xff] %vm412, %v928
        %961 = vst.msk [vmem:[#allocation3 + $0x90] sm:$0xff] %vm412, %v929
        %962 = vst.msk [vmem:[#allocation3 + $0xa8] sm:$0xff] %vm412, %v930
        %963 = vst.msk [vmem:[#allocation3 + $0xc0] sm:$0xff] %vm412, %v931
        %964 = vst.msk [vmem:[#allocation3 + $0xd8] sm:$0xff] %vm412, %v932
        %965 = vst.msk [vmem:[#allocation3 + $0xf0] sm:$0xff] %vm412, %v933
        %966 = vst.msk [vmem:[#allocation3 + $0x108] sm:$0xff] %vm412, %v934
        %967 = vst.msk [vmem:[#allocation3 + $0x120] sm:$0xff] %vm412, %v935
        %968 = vst.msk [vmem:[#allocation3 + $0x138] sm:$0xff] %vm412, %v936
        %969 = vst.msk [vmem:[#allocation3 + $0x150] sm:$0xff] %vm412, %v937
        %970 = vst.msk [vmem:[#allocation3 + $0x168] sm:$0xff] %vm412, %v938
        %971 = vst.msk [vmem:[#allocation3 + $0x180] sm:$0xff] %vm412, %v939
        %972 = vst.msk [vmem:[#allocation3 + $0x198] sm:$0xff] %vm412, %v940
        %973 = vst.msk [vmem:[#allocation3 + $0x1b0] sm:$0xff] %vm412, %v941
        %974 = vst.msk [vmem:[#allocation3 + $0x1c8] sm:$0xff] %vm412, %v942
        %975 = vst.msk [vmem:[#allocation3 + $0x1e0] sm:$0xff] %vm412, %v943
        %976 = vst.msk [vmem:[#allocation3 + $0x1f8] sm:$0xff] %vm412, %v944
        %977 = vst.msk [vmem:[#allocation3 + $0x210] sm:$0xff] %vm412, %v945
        %978 = vst.msk [vmem:[#allocation3 + $0x228] sm:$0xff] %vm412, %v946
        %979 = vst.msk [vmem:[#allocation3 + $0x240] sm:$0xff] %vm412, %v947
        %980 = vst.msk [vmem:[#allocation3 + $0x258] sm:$0xff] %vm412, %v948
        %981 = vst.msk [vmem:[#allocation3 + $0x270] sm:$0xff] %vm412, %v949
        %982 = vst.msk [vmem:[#allocation3 + $0x288] sm:$0xff] %vm412, %v950
        %983 = vst.msk [vmem:[#allocation3 + $0x2a0] sm:$0xff] %vm412, %v951
        %984 = vst.msk [vmem:[#allocation3 + $0x2b8] sm:$0xff] %vm412, %v952
        %985 = vst.msk [vmem:[#allocation3 + $0x2d0] sm:$0xff] %vm412, %v953
        %986 = vst.msk [vmem:[#allocation3 + $0x2e8] sm:$0xff] %vm412, %v954
        %v987 = vld [vmem:[#allocation2 + $0x1] sm:$0xff]
        %v988 = vld [vmem:[#allocation2 + $0x9] sm:$0xff]
        %v989 = vld [vmem:[#allocation2 + $0x19] sm:$0xff]
        %v990 = vld [vmem:[#allocation2 + $0x21] sm:$0xff]
        %v991 = vld [vmem:[#allocation2 + $0x31] sm:$0xff]
        %v992 = vld [vmem:[#allocation2 + $0x39] sm:$0xff]
        %v993 = vld [vmem:[#allocation2 + $0x49] sm:$0xff]
        %v994 = vld [vmem:[#allocation2 + $0x51] sm:$0xff]
        %v995 = vld [vmem:[#allocation2 + $0x61] sm:$0xff]
        %v996 = vld [vmem:[#allocation2 + $0x69] sm:$0xff]
        %v997 = vld [vmem:[#allocation2 + $0x79] sm:$0xff]
        %v998 = vld [vmem:[#allocation2 + $0x81] sm:$0xff]
        %v999 = vld [vmem:[#allocation2 + $0x91] sm:$0xff]
        %v1000 = vld [vmem:[#allocation2 + $0x99] sm:$0xff]
        %v1001 = vld [vmem:[#allocation2 + $0xa9] sm:$0xff]
        %v1002 = vld [vmem:[#allocation2 + $0xb1] sm:$0xff]
        %v1003 = vld [vmem:[#allocation2 + $0xc1] sm:$0xff]
        %v1004 = vld [vmem:[#allocation2 + $0xc9] sm:$0xff]
        %v1005 = vld [vmem:[#allocation2 + $0xd9] sm:$0xff]
        %v1006 = vld [vmem:[#allocation2 + $0xe1] sm:$0xff]
        %v1007 = vld [vmem:[#allocation2 + $0xf1] sm:$0xff]
        %v1008 = vld [vmem:[#allocation2 + $0xf9] sm:$0xff]
        %v1009 = vld [vmem:[#allocation2 + $0x109] sm:$0xff]
        %v1010 = vld [vmem:[#allocation2 + $0x111] sm:$0xff]
        %v1011 = vld [vmem:[#allocation2 + $0x121] sm:$0xff]
        %v1012 = vld [vmem:[#allocation2 + $0x129] sm:$0xff]
        %v1013 = vld [vmem:[#allocation2 + $0x139] sm:$0xff]
        %v1014 = vld [vmem:[#allocation2 + $0x141] sm:$0xff]
        %v1015 = vld [vmem:[#allocation2 + $0x151] sm:$0xff]
        %v1016 = vld [vmem:[#allocation2 + $0x159] sm:$0xff]
        %v1017 = vld [vmem:[#allocation2 + $0x169] sm:$0xff]
        %v1018 = vld [vmem:[#allocation2 + $0x171] sm:$0xff]
        %1051 = vrot.lane.b32.xlu0 %v987, 32
        %v1052 = vpop.permute.xlu0 %1051
        %1053 = vrot.lane.b32.xlu0 %v988, 32
        %v1054 = vpop.permute.xlu0 %1053
        %1055 = vrot.lane.b32.xlu0 %v989, 32
        %v1056 = vpop.permute.xlu0 %1055
        %1057 = vrot.lane.b32.xlu0 %v990, 32
        %v1058 = vpop.permute.xlu0 %1057
        %1059 = vrot.lane.b32.xlu0 %v991, 32
        %v1060 = vpop.permute.xlu0 %1059
        %1061 = vrot.lane.b32.xlu0 %v992, 32
        %v1062 = vpop.permute.xlu0 %1061
        %1063 = vrot.lane.b32.xlu0 %v993, 32
        %v1064 = vpop.permute.xlu0 %1063
        %1065 = vrot.lane.b32.xlu0 %v994, 32
        %v1066 = vpop.permute.xlu0 %1065
        %1067 = vrot.lane.b32.xlu0 %v995, 32
        %v1068 = vpop.permute.xlu0 %1067
        %1069 = vrot.lane.b32.xlu0 %v996, 32
        %v1070 = vpop.permute.xlu0 %1069
        %1071 = vrot.lane.b32.xlu0 %v997, 32
        %v1072 = vpop.permute.xlu0 %1071
        %1073 = vrot.lane.b32.xlu0 %v998, 32
        %v1074 = vpop.permute.xlu0 %1073
        %1075 = vrot.lane.b32.xlu0 %v999, 32
        %v1076 = vpop.permute.xlu0 %1075
        %1077 = vrot.lane.b32.xlu0 %v1000, 32
        %v1078 = vpop.permute.xlu0 %1077
        %1079 = vrot.lane.b32.xlu0 %v1001, 32
        %v1080 = vpop.permute.xlu0 %1079
        %1081 = vrot.lane.b32.xlu0 %v1002, 32
        %v1082 = vpop.permute.xlu0 %1081
        %1083 = vrot.lane.b32.xlu0 %v1003, 32
        %v1084 = vpop.permute.xlu0 %1083
        %1085 = vrot.lane.b32.xlu0 %v1004, 32
        %v1086 = vpop.permute.xlu0 %1085
        %1087 = vrot.lane.b32.xlu0 %v1005, 32
        %v1088 = vpop.permute.xlu0 %1087
        %1089 = vrot.lane.b32.xlu0 %v1006, 32
        %v1090 = vpop.permute.xlu0 %1089
        %1091 = vrot.lane.b32.xlu0 %v1007, 32
        %v1092 = vpop.permute.xlu0 %1091
        %1093 = vrot.lane.b32.xlu0 %v1008, 32
        %v1094 = vpop.permute.xlu0 %1093
        %1095 = vrot.lane.b32.xlu0 %v1009, 32
        %v1096 = vpop.permute.xlu0 %1095
        %1097 = vrot.lane.b32.xlu0 %v1010, 32
        %v1098 = vpop.permute.xlu0 %1097
        %1099 = vrot.lane.b32.xlu0 %v1011, 32
        %v1100 = vpop.permute.xlu0 %1099
        %1101 = vrot.lane.b32.xlu0 %v1012, 32
        %v1102 = vpop.permute.xlu0 %1101
        %1103 = vrot.lane.b32.xlu0 %v1013, 32
        %v1104 = vpop.permute.xlu0 %1103
        %1105 = vrot.lane.b32.xlu0 %v1014, 32
        %v1106 = vpop.permute.xlu0 %1105
        %1107 = vrot.lane.b32.xlu0 %v1015, 32
        %v1108 = vpop.permute.xlu0 %1107
        %1109 = vrot.lane.b32.xlu0 %v1016, 32
        %v1110 = vpop.permute.xlu0 %1109
        %1111 = vrot.lane.b32.xlu0 %v1017, 32
        %v1112 = vpop.permute.xlu0 %1111
        %1113 = vrot.lane.b32.xlu0 %v1018, 32
        %v1114 = vpop.permute.xlu0 %1113
        %vm1147 = vcmask 523520
        %1148 = vst.msk [vmem:[#allocation3] sm:$0xff] %vm1147, %v1052
        %1149 = vst.msk [vmem:[#allocation3 + $0x18] sm:$0xff] %vm1147, %v1054
        %1150 = vst.msk [vmem:[#allocation3 + $0x30] sm:$0xff] %vm1147, %v1056
        %1151 = vst.msk [vmem:[#allocation3 + $0x48] sm:$0xff] %vm1147, %v1058
        %1152 = vst.msk [vmem:[#allocation3 + $0x60] sm:$0xff] %vm1147, %v1060
        %1153 = vst.msk [vmem:[#allocation3 + $0x78] sm:$0xff] %vm1147, %v1062
        %1154 = vst.msk [vmem:[#allocation3 + $0x90] sm:$0xff] %vm1147, %v1064
        %1155 = vst.msk [vmem:[#allocation3 + $0xa8] sm:$0xff] %vm1147, %v1066
        %1156 = vst.msk [vmem:[#allocation3 + $0xc0] sm:$0xff] %vm1147, %v1068
        %1157 = vst.msk [vmem:[#allocation3 + $0xd8] sm:$0xff] %vm1147, %v1070
        %1158 = vst.msk [vmem:[#allocation3 + $0xf0] sm:$0xff] %vm1147, %v1072
        %1159 = vst.msk [vmem:[#allocation3 + $0x108] sm:$0xff] %vm1147, %v1074
        %1160 = vst.msk [vmem:[#allocation3 + $0x120] sm:$0xff] %vm1147, %v1076
        %1161 = vst.msk [vmem:[#allocation3 + $0x138] sm:$0xff] %vm1147, %v1078
        %1162 = vst.msk [vmem:[#allocation3 + $0x150] sm:$0xff] %vm1147, %v1080
        %1163 = vst.msk [vmem:[#allocation3 + $0x168] sm:$0xff] %vm1147, %v1082
        %1164 = vst.msk [vmem:[#allocation3 + $0x180] sm:$0xff] %vm1147, %v1084
        %1165 = vst.msk [vmem:[#allocation3 + $0x198] sm:$0xff] %vm1147, %v1086
        %1166 = vst.msk [vmem:[#allocation3 + $0x1b0] sm:$0xff] %vm1147, %v1088
        %1167 = vst.msk [vmem:[#allocation3 + $0x1c8] sm:$0xff] %vm1147, %v1090
        %1168 = vst.msk [vmem:[#allocation3 + $0x1e0] sm:$0xff] %vm1147, %v1092
        %1169 = vst.msk [vmem:[#allocation3 + $0x1f8] sm:$0xff] %vm1147, %v1094
        %1170 = vst.msk [vmem:[#allocation3 + $0x210] sm:$0xff] %vm1147, %v1096
        %1171 = vst.msk [vmem:[#allocation3 + $0x228] sm:$0xff] %vm1147, %v1098
        %1172 = vst.msk [vmem:[#allocation3 + $0x240] sm:$0xff] %vm1147, %v1100
        %1173 = vst.msk [vmem:[#allocation3 + $0x258] sm:$0xff] %vm1147, %v1102
        %1174 = vst.msk [vmem:[#allocation3 + $0x270] sm:$0xff] %vm1147, %v1104
        %1175 = vst.msk [vmem:[#allocation3 + $0x288] sm:$0xff] %vm1147, %v1106
        %1176 = vst.msk [vmem:[#allocation3 + $0x2a0] sm:$0xff] %vm1147, %v1108
        %1177 = vst.msk [vmem:[#allocation3 + $0x2b8] sm:$0xff] %vm1147, %v1110
        %1178 = vst.msk [vmem:[#allocation3 + $0x2d0] sm:$0xff] %vm1147, %v1112
        %1179 = vst.msk [vmem:[#allocation3 + $0x2e8] sm:$0xff] %vm1147, %v1114
        %v1180 = vld [vmem:[#allocation2 + $0x2] sm:$0xff]
        %v1181 = vld [vmem:[#allocation2 + $0xa] sm:$0xff]
        %v1182 = vld [vmem:[#allocation2 + $0x1a] sm:$0xff]
        %v1183 = vld [vmem:[#allocation2 + $0x22] sm:$0xff]
        %v1184 = vld [vmem:[#allocation2 + $0x32] sm:$0xff]
        %v1185 = vld [vmem:[#allocation2 + $0x3a] sm:$0xff]
        %v1186 = vld [vmem:[#allocation2 + $0x4a] sm:$0xff]
        %v1187 = vld [vmem:[#allocation2 + $0x52] sm:$0xff]
        %v1188 = vld [vmem:[#allocation2 + $0x62] sm:$0xff]
        %v1189 = vld [vmem:[#allocation2 + $0x6a] sm:$0xff]
        %v1190 = vld [vmem:[#allocation2 + $0x7a] sm:$0xff]
        %v1191 = vld [vmem:[#allocation2 + $0x82] sm:$0xff]
        %v1192 = vld [vmem:[#allocation2 + $0x92] sm:$0xff]
        %v1193 = vld [vmem:[#allocation2 + $0x9a] sm:$0xff]
        %v1194 = vld [vmem:[#allocation2 + $0xaa] sm:$0xff]
        %v1195 = vld [vmem:[#allocation2 + $0xb2] sm:$0xff]
        %v1196 = vld [vmem:[#allocation2 + $0xc2] sm:$0xff]
        %v1197 = vld [vmem:[#allocation2 + $0xca] sm:$0xff]
        %v1198 = vld [vmem:[#allocation2 + $0xda] sm:$0xff]
        %v1199 = vld [vmem:[#allocation2 + $0xe2] sm:$0xff]
        %v1200 = vld [vmem:[#allocation2 + $0xf2] sm:$0xff]
        %v1201 = vld [vmem:[#allocation2 + $0xfa] sm:$0xff]
        %v1202 = vld [vmem:[#allocation2 + $0x10a] sm:$0xff]
        %v1203 = vld [vmem:[#allocation2 + $0x112] sm:$0xff]
        %v1204 = vld [vmem:[#allocation2 + $0x122] sm:$0xff]
        %v1205 = vld [vmem:[#allocation2 + $0x12a] sm:$0xff]
        %v1206 = vld [vmem:[#allocation2 + $0x13a] sm:$0xff]
        %v1207 = vld [vmem:[#allocation2 + $0x142] sm:$0xff]
        %v1208 = vld [vmem:[#allocation2 + $0x152] sm:$0xff]
        %v1209 = vld [vmem:[#allocation2 + $0x15a] sm:$0xff]
        %v1210 = vld [vmem:[#allocation2 + $0x16a] sm:$0xff]
        %v1211 = vld [vmem:[#allocation2 + $0x172] sm:$0xff]
        %1244 = vrot.lane.b32.xlu0 %v1180, 64
        %v1245 = vpop.permute.xlu0 %1244
        %1246 = vrot.lane.b32.xlu0 %v1181, 64
        %v1247 = vpop.permute.xlu0 %1246
        %1248 = vrot.lane.b32.xlu0 %v1182, 64
        %v1249 = vpop.permute.xlu0 %1248
        %1250 = vrot.lane.b32.xlu0 %v1183, 64
        %v1251 = vpop.permute.xlu0 %1250
        %1252 = vrot.lane.b32.xlu0 %v1184, 64
        %v1253 = vpop.permute.xlu0 %1252
        %1254 = vrot.lane.b32.xlu0 %v1185, 64
        %v1255 = vpop.permute.xlu0 %1254
        %1256 = vrot.lane.b32.xlu0 %v1186, 64
        %v1257 = vpop.permute.xlu0 %1256
        %1258 = vrot.lane.b32.xlu0 %v1187, 64
        %v1259 = vpop.permute.xlu0 %1258
        %1260 = vrot.lane.b32.xlu0 %v1188, 64
        %v1261 = vpop.permute.xlu0 %1260
        %1262 = vrot.lane.b32.xlu0 %v1189, 64
        %v1263 = vpop.permute.xlu0 %1262
        %1264 = vrot.lane.b32.xlu0 %v1190, 64
        %v1265 = vpop.permute.xlu0 %1264
        %1266 = vrot.lane.b32.xlu0 %v1191, 64
        %v1267 = vpop.permute.xlu0 %1266
        %1268 = vrot.lane.b32.xlu0 %v1192, 64
        %v1269 = vpop.permute.xlu0 %1268
        %1270 = vrot.lane.b32.xlu0 %v1193, 64
        %v1271 = vpop.permute.xlu0 %1270
        %1272 = vrot.lane.b32.xlu0 %v1194, 64
        %v1273 = vpop.permute.xlu0 %1272
        %1274 = vrot.lane.b32.xlu0 %v1195, 64
        %v1275 = vpop.permute.xlu0 %1274
        %1276 = vrot.lane.b32.xlu0 %v1196, 64
        %v1277 = vpop.permute.xlu0 %1276
        %1278 = vrot.lane.b32.xlu0 %v1197, 64
        %v1279 = vpop.permute.xlu0 %1278
        %1280 = vrot.lane.b32.xlu0 %v1198, 64
        %v1281 = vpop.permute.xlu0 %1280
        %1282 = vrot.lane.b32.xlu0 %v1199, 64
        %v1283 = vpop.permute.xlu0 %1282
        %1284 = vrot.lane.b32.xlu0 %v1200, 64
        %v1285 = vpop.permute.xlu0 %1284
        %1286 = vrot.lane.b32.xlu0 %v1201, 64
        %v1287 = vpop.permute.xlu0 %1286
        %1288 = vrot.lane.b32.xlu0 %v1202, 64
        %v1289 = vpop.permute.xlu0 %1288
        %1290 = vrot.lane.b32.xlu0 %v1203, 64
        %v1291 = vpop.permute.xlu0 %1290
        %1292 = vrot.lane.b32.xlu0 %v1204, 64
        %v1293 = vpop.permute.xlu0 %1292
        %1294 = vrot.lane.b32.xlu0 %v1205, 64
        %v1295 = vpop.permute.xlu0 %1294
        %1296 = vrot.lane.b32.xlu0 %v1206, 64
        %v1297 = vpop.permute.xlu0 %1296
        %1298 = vrot.lane.b32.xlu0 %v1207, 64
        %v1299 = vpop.permute.xlu0 %1298
        %1300 = vrot.lane.b32.xlu0 %v1208, 64
        %v1301 = vpop.permute.xlu0 %1300
        %1302 = vrot.lane.b32.xlu0 %v1209, 64
        %v1303 = vpop.permute.xlu0 %1302
        %1304 = vrot.lane.b32.xlu0 %v1210, 64
        %v1305 = vpop.permute.xlu0 %1304
        %1306 = vrot.lane.b32.xlu0 %v1211, 64
        %v1307 = vpop.permute.xlu0 %1306
        %vm1340 = vcmask 785920
        %1341 = vst.msk [vmem:[#allocation3] sm:$0xff] %vm1340, %v1245
        %1342 = vst.msk [vmem:[#allocation3 + $0x18] sm:$0xff] %vm1340, %v1247
        %1343 = vst.msk [vmem:[#allocation3 + $0x30] sm:$0xff] %vm1340, %v1249
        %1344 = vst.msk [vmem:[#allocation3 + $0x48] sm:$0xff] %vm1340, %v1251
        %1345 = vst.msk [vmem:[#allocation3 + $0x60] sm:$0xff] %vm1340, %v1253
        %1346 = vst.msk [vmem:[#allocation3 + $0x78] sm:$0xff] %vm1340, %v1255
        %1347 = vst.msk [vmem:[#allocation3 + $0x90] sm:$0xff] %vm1340, %v1257
        %1348 = vst.msk [vmem:[#allocation3 + $0xa8] sm:$0xff] %vm1340, %v1259
        %1349 = vst.msk [vmem:[#allocation3 + $0xc0] sm:$0xff] %vm1340, %v1261
        %1350 = vst.msk [vmem:[#allocation3 + $0xd8] sm:$0xff] %vm1340, %v1263
        %1351 = vst.msk [vmem:[#allocation3 + $0xf0] sm:$0xff] %vm1340, %v1265
        %1352 = vst.msk [vmem:[#allocation3 + $0x108] sm:$0xff] %vm1340, %v1267
        %1353 = vst.msk [vmem:[#allocation3 + $0x120] sm:$0xff] %vm1340, %v1269
        %1354 = vst.msk [vmem:[#allocation3 + $0x138] sm:$0xff] %vm1340, %v1271
        %1355 = vst.msk [vmem:[#allocation3 + $0x150] sm:$0xff] %vm1340, %v1273
        %1356 = vst.msk [vmem:[#allocation3 + $0x168] sm:$0xff] %vm1340, %v1275
        %1357 = vst.msk [vmem:[#allocation3 + $0x180] sm:$0xff] %vm1340, %v1277
        %1358 = vst.msk [vmem:[#allocation3 + $0x198] sm:$0xff] %vm1340, %v1279
        %1359 = vst.msk [vmem:[#allocation3 + $0x1b0] sm:$0xff] %vm1340, %v1281
        %1360 = vst.msk [vmem:[#allocation3 + $0x1c8] sm:$0xff] %vm1340, %v1283
        %1361 = vst.msk [vmem:[#allocation3 + $0x1e0] sm:$0xff] %vm1340, %v1285
        %1362 = vst.msk [vmem:[#allocation3 + $0x1f8] sm:$0xff] %vm1340, %v1287
        %1363 = vst.msk [vmem:[#allocation3 + $0x210] sm:$0xff] %vm1340, %v1289
        %1364 = vst.msk [vmem:[#allocation3 + $0x228] sm:$0xff] %vm1340, %v1291
        %1365 = vst.msk [vmem:[#allocation3 + $0x240] sm:$0xff] %vm1340, %v1293
        %1366 = vst.msk [vmem:[#allocation3 + $0x258] sm:$0xff] %vm1340, %v1295
        %1367 = vst.msk [vmem:[#allocation3 + $0x270] sm:$0xff] %vm1340, %v1297
        %1368 = vst.msk [vmem:[#allocation3 + $0x288] sm:$0xff] %vm1340, %v1299
        %1369 = vst.msk [vmem:[#allocation3 + $0x2a0] sm:$0xff] %vm1340, %v1301
        %1370 = vst.msk [vmem:[#allocation3 + $0x2b8] sm:$0xff] %vm1340, %v1303
        %1371 = vst.msk [vmem:[#allocation3 + $0x2d0] sm:$0xff] %vm1340, %v1305
        %1372 = vst.msk [vmem:[#allocation3 + $0x2e8] sm:$0xff] %vm1340, %v1307
        %v1373 = vld [vmem:[%s421] sm:$0xff]
        %v1374 = vld [vmem:[%s421 + $0x8] sm:$0xff]
        %v1375 = vld [vmem:[%s421 + $0x18] sm:$0xff]
        %v1376 = vld [vmem:[%s421 + $0x20] sm:$0xff]
        %v1377 = vld [vmem:[%s421 + $0x30] sm:$0xff]
        %v1378 = vld [vmem:[%s421 + $0x38] sm:$0xff]
        %v1379 = vld [vmem:[%s421 + $0x48] sm:$0xff]
        %v1380 = vld [vmem:[%s421 + $0x50] sm:$0xff]
        %v1381 = vld [vmem:[%s421 + $0x60] sm:$0xff]
        %v1382 = vld [vmem:[%s421 + $0x68] sm:$0xff]
        %v1383 = vld [vmem:[%s421 + $0x78] sm:$0xff]
        %v1384 = vld [vmem:[%s421 + $0x80] sm:$0xff]
        %v1385 = vld [vmem:[%s421 + $0x90] sm:$0xff]
        %v1386 = vld [vmem:[%s421 + $0x98] sm:$0xff]
        %v1387 = vld [vmem:[%s421 + $0xa8] sm:$0xff]
        %v1388 = vld [vmem:[%s421 + $0xb0] sm:$0xff]
        %v1389 = vld [vmem:[%s421 + $0xc0] sm:$0xff]
        %v1390 = vld [vmem:[%s421 + $0xc8] sm:$0xff]
        %v1391 = vld [vmem:[%s421 + $0xd8] sm:$0xff]
        %v1392 = vld [vmem:[%s421 + $0xe0] sm:$0xff]
        %v1393 = vld [vmem:[%s421 + $0xf0] sm:$0xff]
        %v1394 = vld [vmem:[%s421 + $0xf8] sm:$0xff]
        %v1395 = vld [vmem:[%s421 + $0x108] sm:$0xff]
        %v1396 = vld [vmem:[%s421 + $0x110] sm:$0xff]
        %v1397 = vld [vmem:[%s421 + $0x120] sm:$0xff]
        %v1398 = vld [vmem:[%s421 + $0x128] sm:$0xff]
        %v1399 = vld [vmem:[%s421 + $0x138] sm:$0xff]
        %v1400 = vld [vmem:[%s421 + $0x140] sm:$0xff]
        %v1401 = vld [vmem:[%s421 + $0x150] sm:$0xff]
        %v1402 = vld [vmem:[%s421 + $0x158] sm:$0xff]
        %v1403 = vld [vmem:[%s421 + $0x168] sm:$0xff]
        %v1404 = vld [vmem:[%s421 + $0x170] sm:$0xff]
        %1437 = vrot.lane.b32.xlu0 %v1373, 96
        %v1438 = vpop.permute.xlu0 %1437
        %1439 = vrot.lane.b32.xlu0 %v1374, 96
        %v1440 = vpop.permute.xlu0 %1439
        %1441 = vrot.lane.b32.xlu0 %v1375, 96
        %v1442 = vpop.permute.xlu0 %1441
        %1443 = vrot.lane.b32.xlu0 %v1376, 96
        %v1444 = vpop.permute.xlu0 %1443
        %1445 = vrot.lane.b32.xlu0 %v1377, 96
        %v1446 = vpop.permute.xlu0 %1445
        %1447 = vrot.lane.b32.xlu0 %v1378, 96
        %v1448 = vpop.permute.xlu0 %1447
        %1449 = vrot.lane.b32.xlu0 %v1379, 96
        %v1450 = vpop.permute.xlu0 %1449
        %1451 = vrot.lane.b32.xlu0 %v1380, 96
        %v1452 = vpop.permute.xlu0 %1451
        %1453 = vrot.lane.b32.xlu0 %v1381, 96
        %v1454 = vpop.permute.xlu0 %1453
        %1455 = vrot.lane.b32.xlu0 %v1382, 96
        %v1456 = vpop.permute.xlu0 %1455
        %1457 = vrot.lane.b32.xlu0 %v1383, 96
        %v1458 = vpop.permute.xlu0 %1457
        %1459 = vrot.lane.b32.xlu0 %v1384, 96
        %v1460 = vpop.permute.xlu0 %1459
        %1461 = vrot.lane.b32.xlu0 %v1385, 96
        %v1462 = vpop.permute.xlu0 %1461
        %1463 = vrot.lane.b32.xlu0 %v1386, 96
        %v1464 = vpop.permute.xlu0 %1463
        %1465 = vrot.lane.b32.xlu0 %v1387, 96
        %v1466 = vpop.permute.xlu0 %1465
        %1467 = vrot.lane.b32.xlu0 %v1388, 96
        %v1468 = vpop.permute.xlu0 %1467
        %1469 = vrot.lane.b32.xlu0 %v1389, 96
        %v1470 = vpop.permute.xlu0 %1469
        %1471 = vrot.lane.b32.xlu0 %v1390, 96
        %v1472 = vpop.permute.xlu0 %1471
        %1473 = vrot.lane.b32.xlu0 %v1391, 96
        %v1474 = vpop.permute.xlu0 %1473
        %1475 = vrot.lane.b32.xlu0 %v1392, 96
        %v1476 = vpop.permute.xlu0 %1475
        %1477 = vrot.lane.b32.xlu0 %v1393, 96
        %v1478 = vpop.permute.xlu0 %1477
        %1479 = vrot.lane.b32.xlu0 %v1394, 96
        %v1480 = vpop.permute.xlu0 %1479
        %1481 = vrot.lane.b32.xlu0 %v1395, 96
        %v1482 = vpop.permute.xlu0 %1481
        %1483 = vrot.lane.b32.xlu0 %v1396, 96
        %v1484 = vpop.permute.xlu0 %1483
        %1485 = vrot.lane.b32.xlu0 %v1397, 96
        %v1486 = vpop.permute.xlu0 %1485
        %1487 = vrot.lane.b32.xlu0 %v1398, 96
        %v1488 = vpop.permute.xlu0 %1487
        %1489 = vrot.lane.b32.xlu0 %v1399, 96
        %v1490 = vpop.permute.xlu0 %1489
        %1491 = vrot.lane.b32.xlu0 %v1400, 96
        %v1492 = vpop.permute.xlu0 %1491
        %1493 = vrot.lane.b32.xlu0 %v1401, 96
        %v1494 = vpop.permute.xlu0 %1493
        %1495 = vrot.lane.b32.xlu0 %v1402, 96
        %v1496 = vpop.permute.xlu0 %1495
        %1497 = vrot.lane.b32.xlu0 %v1403, 96
        %v1498 = vpop.permute.xlu0 %1497
        %1499 = vrot.lane.b32.xlu0 %v1404, 96
        %v1500 = vpop.permute.xlu0 %1499
        %vm1533 = vcmask 1048320
        %1534 = vst.msk [vmem:[#allocation3] sm:$0xff] %vm1533, %v1438
        %1535 = vst.msk [vmem:[#allocation3 + $0x18] sm:$0xff] %vm1533, %v1440
        %1536 = vst.msk [vmem:[#allocation3 + $0x30] sm:$0xff] %vm1533, %v1442
        %1537 = vst.msk [vmem:[#allocation3 + $0x48] sm:$0xff] %vm1533, %v1444
        %1538 = vst.msk [vmem:[#allocation3 + $0x60] sm:$0xff] %vm1533, %v1446
        %1539 = vst.msk [vmem:[#allocation3 + $0x78] sm:$0xff] %vm1533, %v1448
        %1540 = vst.msk [vmem:[#allocation3 + $0x90] sm:$0xff] %vm1533, %v1450
        %1541 = vst.msk [vmem:[#allocation3 + $0xa8] sm:$0xff] %vm1533, %v1452
        %1542 = vst.msk [vmem:[#allocation3 + $0xc0] sm:$0xff] %vm1533, %v1454
        %1543 = vst.msk [vmem:[#allocation3 + $0xd8] sm:$0xff] %vm1533, %v1456
        %1544 = vst.msk [vmem:[#allocation3 + $0xf0] sm:$0xff] %vm1533, %v1458
        %1545 = vst.msk [vmem:[#allocation3 + $0x108] sm:$0xff] %vm1533, %v1460
        %1546 = vst.msk [vmem:[#allocation3 + $0x120] sm:$0xff] %vm1533, %v1462
        %1547 = vst.msk [vmem:[#allocation3 + $0x138] sm:$0xff] %vm1533, %v1464
        %1548 = vst.msk [vmem:[#allocation3 + $0x150] sm:$0xff] %vm1533, %v1466
        %1549 = vst.msk [vmem:[#allocation3 + $0x168] sm:$0xff] %vm1533, %v1468
        %1550 = vst.msk [vmem:[#allocation3 + $0x180] sm:$0xff] %vm1533, %v1470
        %1551 = vst.msk [vmem:[#allocation3 + $0x198] sm:$0xff] %vm1533, %v1472
        %1552 = vst.msk [vmem:[#allocation3 + $0x1b0] sm:$0xff] %vm1533, %v1474
        %1553 = vst.msk [vmem:[#allocation3 + $0x1c8] sm:$0xff] %vm1533, %v1476
        %1554 = vst.msk [vmem:[#allocation3 + $0x1e0] sm:$0xff] %vm1533, %v1478
        %1555 = vst.msk [vmem:[#allocation3 + $0x1f8] sm:$0xff] %vm1533, %v1480
        %1556 = vst.msk [vmem:[#allocation3 + $0x210] sm:$0xff] %vm1533, %v1482
        %1557 = vst.msk [vmem:[#allocation3 + $0x228] sm:$0xff] %vm1533, %v1484
        %1558 = vst.msk [vmem:[#allocation3 + $0x240] sm:$0xff] %vm1533, %v1486
        %1559 = vst.msk [vmem:[#allocation3 + $0x258] sm:$0xff] %vm1533, %v1488
        %1560 = vst.msk [vmem:[#allocation3 + $0x270] sm:$0xff] %vm1533, %v1490
        %1561 = vst.msk [vmem:[#allocation3 + $0x288] sm:$0xff] %vm1533, %v1492
        %1562 = vst.msk [vmem:[#allocation3 + $0x2a0] sm:$0xff] %vm1533, %v1494
        %1563 = vst.msk [vmem:[#allocation3 + $0x2b8] sm:$0xff] %vm1533, %v1496
        %1564 = vst.msk [vmem:[#allocation3 + $0x2d0] sm:$0xff] %vm1533, %v1498
        %1565 = vst.msk [vmem:[#allocation3 + $0x2e8] sm:$0xff] %vm1533, %v1500
        %v1566 = vld [vmem:[%s421 + $0x1] sm:$0xff]
        %v1567 = vld [vmem:[%s421 + $0x9] sm:$0xff]
        %v1568 = vld [vmem:[%s421 + $0x19] sm:$0xff]
        %v1569 = vld [vmem:[%s421 + $0x21] sm:$0xff]
        %v1570 = vld [vmem:[%s421 + $0x31] sm:$0xff]
        %v1571 = vld [vmem:[%s421 + $0x39] sm:$0xff]
        %v1572 = vld [vmem:[%s421 + $0x49] sm:$0xff]
        %v1573 = vld [vmem:[%s421 + $0x51] sm:$0xff]
        %v1574 = vld [vmem:[%s421 + $0x61] sm:$0xff]
        %v1575 = vld [vmem:[%s421 + $0x69] sm:$0xff]
        %v1576 = vld [vmem:[%s421 + $0x79] sm:$0xff]
        %v1577 = vld [vmem:[%s421 + $0x81] sm:$0xff]
        %v1578 = vld [vmem:[%s421 + $0x91] sm:$0xff]
        %v1579 = vld [vmem:[%s421 + $0x99] sm:$0xff]
        %v1580 = vld [vmem:[%s421 + $0xa9] sm:$0xff]
        %v1581 = vld [vmem:[%s421 + $0xb1] sm:$0xff]
        %v1582 = vld [vmem:[%s421 + $0xc1] sm:$0xff]
        %v1583 = vld [vmem:[%s421 + $0xc9] sm:$0xff]
        %v1584 = vld [vmem:[%s421 + $0xd9] sm:$0xff]
        %v1585 = vld [vmem:[%s421 + $0xe1] sm:$0xff]
        %v1586 = vld [vmem:[%s421 + $0xf1] sm:$0xff]
        %v1587 = vld [vmem:[%s421 + $0xf9] sm:$0xff]
        %v1588 = vld [vmem:[%s421 + $0x109] sm:$0xff]
        %v1589 = vld [vmem:[%s421 + $0x111] sm:$0xff]
        %v1590 = vld [vmem:[%s421 + $0x121] sm:$0xff]
        %v1591 = vld [vmem:[%s421 + $0x129] sm:$0xff]
        %v1592 = vld [vmem:[%s421 + $0x139] sm:$0xff]
        %v1593 = vld [vmem:[%s421 + $0x141] sm:$0xff]
        %v1594 = vld [vmem:[%s421 + $0x151] sm:$0xff]
        %v1595 = vld [vmem:[%s421 + $0x159] sm:$0xff]
        %v1596 = vld [vmem:[%s421 + $0x169] sm:$0xff]
        %v1597 = vld [vmem:[%s421 + $0x171] sm:$0xff]
        %1598 = vst.msk [vmem:[#allocation3 + $0x8] sm:$0xff] %vm412, %v1566
        %1599 = vst.msk [vmem:[#allocation3 + $0x20] sm:$0xff] %vm412, %v1567
        %1600 = vst.msk [vmem:[#allocation3 + $0x38] sm:$0xff] %vm412, %v1568
        %1601 = vst.msk [vmem:[#allocation3 + $0x50] sm:$0xff] %vm412, %v1569
        %1602 = vst.msk [vmem:[#allocation3 + $0x68] sm:$0xff] %vm412, %v1570
        %1603 = vst.msk [vmem:[#allocation3 + $0x80] sm:$0xff] %vm412, %v1571
        %1604 = vst.msk [vmem:[#allocation3 + $0x98] sm:$0xff] %vm412, %v1572
        %1605 = vst.msk [vmem:[#allocation3 + $0xb0] sm:$0xff] %vm412, %v1573
        %1606 = vst.msk [vmem:[#allocation3 + $0xc8] sm:$0xff] %vm412, %v1574
        %1607 = vst.msk [vmem:[#allocation3 + $0xe0] sm:$0xff] %vm412, %v1575
        %1608 = vst.msk [vmem:[#allocation3 + $0xf8] sm:$0xff] %vm412, %v1576
        %1609 = vst.msk [vmem:[#allocation3 + $0x110] sm:$0xff] %vm412, %v1577
        %1610 = vst.msk [vmem:[#allocation3 + $0x128] sm:$0xff] %vm412, %v1578
        %1611 = vst.msk [vmem:[#allocation3 + $0x140] sm:$0xff] %vm412, %v1579
        %1612 = vst.msk [vmem:[#allocation3 + $0x158] sm:$0xff] %vm412, %v1580
        %1613 = vst.msk [vmem:[#allocation3 + $0x170] sm:$0xff] %vm412, %v1581
        %1614 = vst.msk [vmem:[#allocation3 + $0x188] sm:$0xff] %vm412, %v1582
        %1615 = vst.msk [vmem:[#allocation3 + $0x1a0] sm:$0xff] %vm412, %v1583
        %1616 = vst.msk [vmem:[#allocation3 + $0x1b8] sm:$0xff] %vm412, %v1584
        %1617 = vst.msk [vmem:[#allocation3 + $0x1d0] sm:$0xff] %vm412, %v1585
        %1618 = vst.msk [vmem:[#allocation3 + $0x1e8] sm:$0xff] %vm412, %v1586
        %1619 = vst.msk [vmem:[#allocation3 + $0x200] sm:$0xff] %vm412, %v1587
        %1620 = vst.msk [vmem:[#allocation3 + $0x218] sm:$0xff] %vm412, %v1588
        %1621 = vst.msk [vmem:[#allocation3 + $0x230] sm:$0xff] %vm412, %v1589
        %1622 = vst.msk [vmem:[#allocation3 + $0x248] sm:$0xff] %vm412, %v1590
        %1623 = vst.msk [vmem:[#allocation3 + $0x260] sm:$0xff] %vm412, %v1591
        %1624 = vst.msk [vmem:[#allocation3 + $0x278] sm:$0xff] %vm412, %v1592
        %1625 = vst.msk [vmem:[#allocation3 + $0x290] sm:$0xff] %vm412, %v1593
        %1626 = vst.msk [vmem:[#allocation3 + $0x2a8] sm:$0xff] %vm412, %v1594
        %1627 = vst.msk [vmem:[#allocation3 + $0x2c0] sm:$0xff] %vm412, %v1595
        %1628 = vst.msk [vmem:[#allocation3 + $0x2d8] sm:$0xff] %vm412, %v1596
        %1629 = vst.msk [vmem:[#allocation3 + $0x2f0] sm:$0xff] %vm412, %v1597
        %v1630 = vld [vmem:[%s421 + $0x2] sm:$0xff]
        %v1631 = vld [vmem:[%s421 + $0xa] sm:$0xff]
        %v1632 = vld [vmem:[%s421 + $0x1a] sm:$0xff]
        %v1633 = vld [vmem:[%s421 + $0x22] sm:$0xff]
        %v1634 = vld [vmem:[%s421 + $0x32] sm:$0xff]
        %v1635 = vld [vmem:[%s421 + $0x3a] sm:$0xff]
        %v1636 = vld [vmem:[%s421 + $0x4a] sm:$0xff]
        %v1637 = vld [vmem:[%s421 + $0x52] sm:$0xff]
        %v1638 = vld [vmem:[%s421 + $0x62] sm:$0xff]
        %v1639 = vld [vmem:[%s421 + $0x6a] sm:$0xff]
        %v1640 = vld [vmem:[%s421 + $0x7a] sm:$0xff]
        %v1641 = vld [vmem:[%s421 + $0x82] sm:$0xff]
        %v1642 = vld [vmem:[%s421 + $0x92] sm:$0xff]
        %v1643 = vld [vmem:[%s421 + $0x9a] sm:$0xff]
        %v1644 = vld [vmem:[%s421 + $0xaa] sm:$0xff]
        %v1645 = vld [vmem:[%s421 + $0xb2] sm:$0xff]
        %v1646 = vld [vmem:[%s421 + $0xc2] sm:$0xff]
        %v1647 = vld [vmem:[%s421 + $0xca] sm:$0xff]
        %v1648 = vld [vmem:[%s421 + $0xda] sm:$0xff]
        %v1649 = vld [vmem:[%s421 + $0xe2] sm:$0xff]
        %v1650 = vld [vmem:[%s421 + $0xf2] sm:$0xff]
        %v1651 = vld [vmem:[%s421 + $0xfa] sm:$0xff]
        %v1652 = vld [vmem:[%s421 + $0x10a] sm:$0xff]
        %v1653 = vld [vmem:[%s421 + $0x112] sm:$0xff]
        %v1654 = vld [vmem:[%s421 + $0x122] sm:$0xff]
        %v1655 = vld [vmem:[%s421 + $0x12a] sm:$0xff]
        %v1656 = vld [vmem:[%s421 + $0x13a] sm:$0xff]
        %v1657 = vld [vmem:[%s421 + $0x142] sm:$0xff]
        %v1658 = vld [vmem:[%s421 + $0x152] sm:$0xff]
        %v1659 = vld [vmem:[%s421 + $0x15a] sm:$0xff]
        %v1660 = vld [vmem:[%s421 + $0x16a] sm:$0xff]
        %v1661 = vld [vmem:[%s421 + $0x172] sm:$0xff]
        %1694 = vrot.lane.b32.xlu0 %v1630, 32
        %v1695 = vpop.permute.xlu0 %1694
        %1696 = vrot.lane.b32.xlu0 %v1631, 32
        %v1697 = vpop.permute.xlu0 %1696
        %1698 = vrot.lane.b32.xlu0 %v1632, 32
        %v1699 = vpop.permute.xlu0 %1698
        %1700 = vrot.lane.b32.xlu0 %v1633, 32
        %v1701 = vpop.permute.xlu0 %1700
        %1702 = vrot.lane.b32.xlu0 %v1634, 32
        %v1703 = vpop.permute.xlu0 %1702
        %1704 = vrot.lane.b32.xlu0 %v1635, 32
        %v1705 = vpop.permute.xlu0 %1704
        %1706 = vrot.lane.b32.xlu0 %v1636, 32
        %v1707 = vpop.permute.xlu0 %1706
        %1708 = vrot.lane.b32.xlu0 %v1637, 32
        %v1709 = vpop.permute.xlu0 %1708
        %1710 = vrot.lane.b32.xlu0 %v1638, 32
        %v1711 = vpop.permute.xlu0 %1710
        %1712 = vrot.lane.b32.xlu0 %v1639, 32
        %v1713 = vpop.permute.xlu0 %1712
        %1714 = vrot.lane.b32.xlu0 %v1640, 32
        %v1715 = vpop.permute.xlu0 %1714
        %1716 = vrot.lane.b32.xlu0 %v1641, 32
        %v1717 = vpop.permute.xlu0 %1716
        %1718 = vrot.lane.b32.xlu0 %v1642, 32
        %v1719 = vpop.permute.xlu0 %1718
        %1720 = vrot.lane.b32.xlu0 %v1643, 32
        %v1721 = vpop.permute.xlu0 %1720
        %1722 = vrot.lane.b32.xlu0 %v1644, 32
        %v1723 = vpop.permute.xlu0 %1722
        %1724 = vrot.lane.b32.xlu0 %v1645, 32
        %v1725 = vpop.permute.xlu0 %1724
        %1726 = vrot.lane.b32.xlu0 %v1646, 32
        %v1727 = vpop.permute.xlu0 %1726
        %1728 = vrot.lane.b32.xlu0 %v1647, 32
        %v1729 = vpop.permute.xlu0 %1728
        %1730 = vrot.lane.b32.xlu0 %v1648, 32
        %v1731 = vpop.permute.xlu0 %1730
        %1732 = vrot.lane.b32.xlu0 %v1649, 32
        %v1733 = vpop.permute.xlu0 %1732
        %1734 = vrot.lane.b32.xlu0 %v1650, 32
        %v1735 = vpop.permute.xlu0 %1734
        %1736 = vrot.lane.b32.xlu0 %v1651, 32
        %v1737 = vpop.permute.xlu0 %1736
        %1738 = vrot.lane.b32.xlu0 %v1652, 32
        %v1739 = vpop.permute.xlu0 %1738
        %1740 = vrot.lane.b32.xlu0 %v1653, 32
        %v1741 = vpop.permute.xlu0 %1740
        %1742 = vrot.lane.b32.xlu0 %v1654, 32
        %v1743 = vpop.permute.xlu0 %1742
        %1744 = vrot.lane.b32.xlu0 %v1655, 32
        %v1745 = vpop.permute.xlu0 %1744
        %1746 = vrot.lane.b32.xlu0 %v1656, 32
        %v1747 = vpop.permute.xlu0 %1746
        %1748 = vrot.lane.b32.xlu0 %v1657, 32
        %v1749 = vpop.permute.xlu0 %1748
        %1750 = vrot.lane.b32.xlu0 %v1658, 32
        %v1751 = vpop.permute.xlu0 %1750
        %1752 = vrot.lane.b32.xlu0 %v1659, 32
        %v1753 = vpop.permute.xlu0 %1752
        %1754 = vrot.lane.b32.xlu0 %v1660, 32
        %v1755 = vpop.permute.xlu0 %1754
        %1756 = vrot.lane.b32.xlu0 %v1661, 32
        %v1757 = vpop.permute.xlu0 %1756
        %1790 = vst.msk [vmem:[#allocation3 + $0x8] sm:$0xff] %vm1147, %v1695
        %1791 = vst.msk [vmem:[#allocation3 + $0x20] sm:$0xff] %vm1147, %v1697
        %1792 = vst.msk [vmem:[#allocation3 + $0x38] sm:$0xff] %vm1147, %v1699
        %1793 = vst.msk [vmem:[#allocation3 + $0x50] sm:$0xff] %vm1147, %v1701
        %1794 = vst.msk [vmem:[#allocation3 + $0x68] sm:$0xff] %vm1147, %v1703
        %1795 = vst.msk [vmem:[#allocation3 + $0x80] sm:$0xff] %vm1147, %v1705
        %1796 = vst.msk [vmem:[#allocation3 + $0x98] sm:$0xff] %vm1147, %v1707
        %1797 = vst.msk [vmem:[#allocation3 + $0xb0] sm:$0xff] %vm1147, %v1709
        %1798 = vst.msk [vmem:[#allocation3 + $0xc8] sm:$0xff] %vm1147, %v1711
        %1799 = vst.msk [vmem:[#allocation3 + $0xe0] sm:$0xff] %vm1147, %v1713
        %1800 = vst.msk [vmem:[#allocation3 + $0xf8] sm:$0xff] %vm1147, %v1715
        %1801 = vst.msk [vmem:[#allocation3 + $0x110] sm:$0xff] %vm1147, %v1717
        %1802 = vst.msk [vmem:[#allocation3 + $0x128] sm:$0xff] %vm1147, %v1719
        %1803 = vst.msk [vmem:[#allocation3 + $0x140] sm:$0xff] %vm1147, %v1721
        %1804 = vst.msk [vmem:[#allocation3 + $0x158] sm:$0xff] %vm1147, %v1723
        %1805 = vst.msk [vmem:[#allocation3 + $0x170] sm:$0xff] %vm1147, %v1725
        %1806 = vst.msk [vmem:[#allocation3 + $0x188] sm:$0xff] %vm1147, %v1727
        %1807 = vst.msk [vmem:[#allocation3 + $0x1a0] sm:$0xff] %vm1147, %v1729
        %1808 = vst.msk [vmem:[#allocation3 + $0x1b8] sm:$0xff] %vm1147, %v1731
        %1809 = vst.msk [vmem:[#allocation3 + $0x1d0] sm:$0xff] %vm1147, %v1733
        %1810 = vst.msk [vmem:[#allocation3 + $0x1e8] sm:$0xff] %vm1147, %v1735
        %1811 = vst.msk [vmem:[#allocation3 + $0x200] sm:$0xff] %vm1147, %v1737
        %1812 = vst.msk [vmem:[#allocation3 + $0x218] sm:$0xff] %vm1147, %v1739
        %1813 = vst.msk [vmem:[#allocation3 + $0x230] sm:$0xff] %vm1147, %v1741
        %1814 = vst.msk [vmem:[#allocation3 + $0x248] sm:$0xff] %vm1147, %v1743
        %1815 = vst.msk [vmem:[#allocation3 + $0x260] sm:$0xff] %vm1147, %v1745
        %1816 = vst.msk [vmem:[#allocation3 + $0x278] sm:$0xff] %vm1147, %v1747
        %1817 = vst.msk [vmem:[#allocation3 + $0x290] sm:$0xff] %vm1147, %v1749
        %1818 = vst.msk [vmem:[#allocation3 + $0x2a8] sm:$0xff] %vm1147, %v1751
        %1819 = vst.msk [vmem:[#allocation3 + $0x2c0] sm:$0xff] %vm1147, %v1753
        %1820 = vst.msk [vmem:[#allocation3 + $0x2d8] sm:$0xff] %vm1147, %v1755
        %1821 = vst.msk [vmem:[#allocation3 + $0x2f0] sm:$0xff] %vm1147, %v1757
        %s1822 = scalar_lea.vmem [#allocation2], 48
        %v1823 = vld [vmem:[%s1822] sm:$0xff]
        %v1824 = vld [vmem:[%s1822 + $0x8] sm:$0xff]
        %v1825 = vld [vmem:[%s1822 + $0x18] sm:$0xff]
        %v1826 = vld [vmem:[%s1822 + $0x20] sm:$0xff]
        %v1827 = vld [vmem:[%s1822 + $0x30] sm:$0xff]
        %v1828 = vld [vmem:[%s1822 + $0x38] sm:$0xff]
        %v1829 = vld [vmem:[%s1822 + $0x48] sm:$0xff]
        %v1830 = vld [vmem:[%s1822 + $0x50] sm:$0xff]
        %v1831 = vld [vmem:[%s1822 + $0x60] sm:$0xff]
        %v1832 = vld [vmem:[%s1822 + $0x68] sm:$0xff]
        %v1833 = vld [vmem:[%s1822 + $0x78] sm:$0xff]
        %v1834 = vld [vmem:[%s1822 + $0x80] sm:$0xff]
        %v1835 = vld [vmem:[%s1822 + $0x90] sm:$0xff]
        %v1836 = vld [vmem:[%s1822 + $0x98] sm:$0xff]
        %v1837 = vld [vmem:[%s1822 + $0xa8] sm:$0xff]
        %v1838 = vld [vmem:[%s1822 + $0xb0] sm:$0xff]
        %v1839 = vld [vmem:[%s1822 + $0xc0] sm:$0xff]
        %v1840 = vld [vmem:[%s1822 + $0xc8] sm:$0xff]
        %v1841 = vld [vmem:[%s1822 + $0xd8] sm:$0xff]
        %v1842 = vld [vmem:[%s1822 + $0xe0] sm:$0xff]
        %v1843 = vld [vmem:[%s1822 + $0xf0] sm:$0xff]
        %v1844 = vld [vmem:[%s1822 + $0xf8] sm:$0xff]
        %v1845 = vld [vmem:[%s1822 + $0x108] sm:$0xff]
        %v1846 = vld [vmem:[%s1822 + $0x110] sm:$0xff]
        %v1847 = vld [vmem:[%s1822 + $0x120] sm:$0xff]
        %v1848 = vld [vmem:[%s1822 + $0x128] sm:$0xff]
        %v1849 = vld [vmem:[%s1822 + $0x138] sm:$0xff]
        %v1850 = vld [vmem:[%s1822 + $0x140] sm:$0xff]
        %v1851 = vld [vmem:[%s1822 + $0x150] sm:$0xff]
        %v1852 = vld [vmem:[%s1822 + $0x158] sm:$0xff]
        %v1853 = vld [vmem:[%s1822 + $0x168] sm:$0xff]
        %v1854 = vld [vmem:[%s1822 + $0x170] sm:$0xff]
        %1887 = vrot.lane.b32.xlu0 %v1823, 64
        %v1888 = vpop.permute.xlu0 %1887
        %1889 = vrot.lane.b32.xlu0 %v1824, 64
        %v1890 = vpop.permute.xlu0 %1889
        %1891 = vrot.lane.b32.xlu0 %v1825, 64
        %v1892 = vpop.permute.xlu0 %1891
        %1893 = vrot.lane.b32.xlu0 %v1826, 64
        %v1894 = vpop.permute.xlu0 %1893
        %1895 = vrot.lane.b32.xlu0 %v1827, 64
        %v1896 = vpop.permute.xlu0 %1895
        %1897 = vrot.lane.b32.xlu0 %v1828, 64
        %v1898 = vpop.permute.xlu0 %1897
        %1899 = vrot.lane.b32.xlu0 %v1829, 64
        %v1900 = vpop.permute.xlu0 %1899
        %1901 = vrot.lane.b32.xlu0 %v1830, 64
        %v1902 = vpop.permute.xlu0 %1901
        %1903 = vrot.lane.b32.xlu0 %v1831, 64
        %v1904 = vpop.permute.xlu0 %1903
        %1905 = vrot.lane.b32.xlu0 %v1832, 64
        %v1906 = vpop.permute.xlu0 %1905
        %1907 = vrot.lane.b32.xlu0 %v1833, 64
        %v1908 = vpop.permute.xlu0 %1907
        %1909 = vrot.lane.b32.xlu0 %v1834, 64
        %v1910 = vpop.permute.xlu0 %1909
        %1911 = vrot.lane.b32.xlu0 %v1835, 64
        %v1912 = vpop.permute.xlu0 %1911
        %1913 = vrot.lane.b32.xlu0 %v1836, 64
        %v1914 = vpop.permute.xlu0 %1913
        %1915 = vrot.lane.b32.xlu0 %v1837, 64
        %v1916 = vpop.permute.xlu0 %1915
        %1917 = vrot.lane.b32.xlu0 %v1838, 64
        %v1918 = vpop.permute.xlu0 %1917
        %1919 = vrot.lane.b32.xlu0 %v1839, 64
        %v1920 = vpop.permute.xlu0 %1919
        %1921 = vrot.lane.b32.xlu0 %v1840, 64
        %v1922 = vpop.permute.xlu0 %1921
        %1923 = vrot.lane.b32.xlu0 %v1841, 64
        %v1924 = vpop.permute.xlu0 %1923
        %1925 = vrot.lane.b32.xlu0 %v1842, 64
        %v1926 = vpop.permute.xlu0 %1925
        %1927 = vrot.lane.b32.xlu0 %v1843, 64
        %v1928 = vpop.permute.xlu0 %1927
        %1929 = vrot.lane.b32.xlu0 %v1844, 64
        %v1930 = vpop.permute.xlu0 %1929
        %1931 = vrot.lane.b32.xlu0 %v1845, 64
        %v1932 = vpop.permute.xlu0 %1931
        %1933 = vrot.lane.b32.xlu0 %v1846, 64
        %v1934 = vpop.permute.xlu0 %1933
        %1935 = vrot.lane.b32.xlu0 %v1847, 64
        %v1936 = vpop.permute.xlu0 %1935
        %1937 = vrot.lane.b32.xlu0 %v1848, 64
        %v1938 = vpop.permute.xlu0 %1937
        %1939 = vrot.lane.b32.xlu0 %v1849, 64
        %v1940 = vpop.permute.xlu0 %1939
        %1941 = vrot.lane.b32.xlu0 %v1850, 64
        %v1942 = vpop.permute.xlu0 %1941
        %1943 = vrot.lane.b32.xlu0 %v1851, 64
        %v1944 = vpop.permute.xlu0 %1943
        %1945 = vrot.lane.b32.xlu0 %v1852, 64
        %v1946 = vpop.permute.xlu0 %1945
        %1947 = vrot.lane.b32.xlu0 %v1853, 64
        %v1948 = vpop.permute.xlu0 %1947
        %1949 = vrot.lane.b32.xlu0 %v1854, 64
        %v1950 = vpop.permute.xlu0 %1949
        %1983 = vst.msk [vmem:[#allocation3 + $0x8] sm:$0xff] %vm1340, %v1888
        %1984 = vst.msk [vmem:[#allocation3 + $0x20] sm:$0xff] %vm1340, %v1890
        %1985 = vst.msk [vmem:[#allocation3 + $0x38] sm:$0xff] %vm1340, %v1892
        %1986 = vst.msk [vmem:[#allocation3 + $0x50] sm:$0xff] %vm1340, %v1894
        %1987 = vst.msk [vmem:[#allocation3 + $0x68] sm:$0xff] %vm1340, %v1896
        %1988 = vst.msk [vmem:[#allocation3 + $0x80] sm:$0xff] %vm1340, %v1898
        %1989 = vst.msk [vmem:[#allocation3 + $0x98] sm:$0xff] %vm1340, %v1900
        %1990 = vst.msk [vmem:[#allocation3 + $0xb0] sm:$0xff] %vm1340, %v1902
        %1991 = vst.msk [vmem:[#allocation3 + $0xc8] sm:$0xff] %vm1340, %v1904
        %1992 = vst.msk [vmem:[#allocation3 + $0xe0] sm:$0xff] %vm1340, %v1906
        %1993 = vst.msk [vmem:[#allocation3 + $0xf8] sm:$0xff] %vm1340, %v1908
        %1994 = vst.msk [vmem:[#allocation3 + $0x110] sm:$0xff] %vm1340, %v1910
        %1995 = vst.msk [vmem:[#allocation3 + $0x128] sm:$0xff] %vm1340, %v1912
        %1996 = vst.msk [vmem:[#allocation3 + $0x140] sm:$0xff] %vm1340, %v1914
        %1997 = vst.msk [vmem:[#allocation3 + $0x158] sm:$0xff] %vm1340, %v1916
        %1998 = vst.msk [vmem:[#allocation3 + $0x170] sm:$0xff] %vm1340, %v1918
        %1999 = vst.msk [vmem:[#allocation3 + $0x188] sm:$0xff] %vm1340, %v1920
        %2000 = vst.msk [vmem:[#allocation3 + $0x1a0] sm:$0xff] %vm1340, %v1922
        %2001 = vst.msk [vmem:[#allocation3 + $0x1b8] sm:$0xff] %vm1340, %v1924
        %2002 = vst.msk [vmem:[#allocation3 + $0x1d0] sm:$0xff] %vm1340, %v1926
        %2003 = vst.msk [vmem:[#allocation3 + $0x1e8] sm:$0xff] %vm1340, %v1928
        %2004 = vst.msk [vmem:[#allocation3 + $0x200] sm:$0xff] %vm1340, %v1930
        %2005 = vst.msk [vmem:[#allocation3 + $0x218] sm:$0xff] %vm1340, %v1932
        %2006 = vst.msk [vmem:[#allocation3 + $0x230] sm:$0xff] %vm1340, %v1934
        %2007 = vst.msk [vmem:[#allocation3 + $0x248] sm:$0xff] %vm1340, %v1936
        %2008 = vst.msk [vmem:[#allocation3 + $0x260] sm:$0xff] %vm1340, %v1938
        %2009 = vst.msk [vmem:[#allocation3 + $0x278] sm:$0xff] %vm1340, %v1940
        %2010 = vst.msk [vmem:[#allocation3 + $0x290] sm:$0xff] %vm1340, %v1942
        %2011 = vst.msk [vmem:[#allocation3 + $0x2a8] sm:$0xff] %vm1340, %v1944
        %2012 = vst.msk [vmem:[#allocation3 + $0x2c0] sm:$0xff] %vm1340, %v1946
        %2013 = vst.msk [vmem:[#allocation3 + $0x2d8] sm:$0xff] %vm1340, %v1948
        %2014 = vst.msk [vmem:[#allocation3 + $0x2f0] sm:$0xff] %vm1340, %v1950
        %v2015 = vld [vmem:[%s1822 + $0x1] sm:$0xff]
        %v2016 = vld [vmem:[%s1822 + $0x9] sm:$0xff]
        %v2017 = vld [vmem:[%s1822 + $0x19] sm:$0xff]
        %v2018 = vld [vmem:[%s1822 + $0x21] sm:$0xff]
        %v2019 = vld [vmem:[%s1822 + $0x31] sm:$0xff]
        %v2020 = vld [vmem:[%s1822 + $0x39] sm:$0xff]
        %v2021 = vld [vmem:[%s1822 + $0x49] sm:$0xff]
        %v2022 = vld [vmem:[%s1822 + $0x51] sm:$0xff]
        %v2023 = vld [vmem:[%s1822 + $0x61] sm:$0xff]
        %v2024 = vld [vmem:[%s1822 + $0x69] sm:$0xff]
        %v2025 = vld [vmem:[%s1822 + $0x79] sm:$0xff]
        %v2026 = vld [vmem:[%s1822 + $0x81] sm:$0xff]
        %v2027 = vld [vmem:[%s1822 + $0x91] sm:$0xff]
        %v2028 = vld [vmem:[%s1822 + $0x99] sm:$0xff]
        %v2029 = vld [vmem:[%s1822 + $0xa9] sm:$0xff]
        %v2030 = vld [vmem:[%s1822 + $0xb1] sm:$0xff]
        %v2031 = vld [vmem:[%s1822 + $0xc1] sm:$0xff]
        %v2032 = vld [vmem:[%s1822 + $0xc9] sm:$0xff]
        %v2033 = vld [vmem:[%s1822 + $0xd9] sm:$0xff]
        %v2034 = vld [vmem:[%s1822 + $0xe1] sm:$0xff]
        %v2035 = vld [vmem:[%s1822 + $0xf1] sm:$0xff]
        %v2036 = vld [vmem:[%s1822 + $0xf9] sm:$0xff]
        %v2037 = vld [vmem:[%s1822 + $0x109] sm:$0xff]
        %v2038 = vld [vmem:[%s1822 + $0x111] sm:$0xff]
        %v2039 = vld [vmem:[%s1822 + $0x121] sm:$0xff]
        %v2040 = vld [vmem:[%s1822 + $0x129] sm:$0xff]
        %v2041 = vld [vmem:[%s1822 + $0x139] sm:$0xff]
        %v2042 = vld [vmem:[%s1822 + $0x141] sm:$0xff]
        %v2043 = vld [vmem:[%s1822 + $0x151] sm:$0xff]
        %v2044 = vld [vmem:[%s1822 + $0x159] sm:$0xff]
        %v2045 = vld [vmem:[%s1822 + $0x169] sm:$0xff]
        %v2046 = vld [vmem:[%s1822 + $0x171] sm:$0xff]
        %2079 = vrot.lane.b32.xlu0 %v2015, 96
        %v2080 = vpop.permute.xlu0 %2079
        %2081 = vrot.lane.b32.xlu0 %v2016, 96
        %v2082 = vpop.permute.xlu0 %2081
        %2083 = vrot.lane.b32.xlu0 %v2017, 96
        %v2084 = vpop.permute.xlu0 %2083
        %2085 = vrot.lane.b32.xlu0 %v2018, 96
        %v2086 = vpop.permute.xlu0 %2085
        %2087 = vrot.lane.b32.xlu0 %v2019, 96
        %v2088 = vpop.permute.xlu0 %2087
        %2089 = vrot.lane.b32.xlu0 %v2020, 96
        %v2090 = vpop.permute.xlu0 %2089
        %2091 = vrot.lane.b32.xlu0 %v2021, 96
        %v2092 = vpop.permute.xlu0 %2091
        %2093 = vrot.lane.b32.xlu0 %v2022, 96
        %v2094 = vpop.permute.xlu0 %2093
        %2095 = vrot.lane.b32.xlu0 %v2023, 96
        %v2096 = vpop.permute.xlu0 %2095
        %2097 = vrot.lane.b32.xlu0 %v2024, 96
        %v2098 = vpop.permute.xlu0 %2097
        %2099 = vrot.lane.b32.xlu0 %v2025, 96
        %v2100 = vpop.permute.xlu0 %2099
        %2101 = vrot.lane.b32.xlu0 %v2026, 96
        %v2102 = vpop.permute.xlu0 %2101
        %2103 = vrot.lane.b32.xlu0 %v2027, 96
        %v2104 = vpop.permute.xlu0 %2103
        %2105 = vrot.lane.b32.xlu0 %v2028, 96
        %v2106 = vpop.permute.xlu0 %2105
        %2107 = vrot.lane.b32.xlu0 %v2029, 96
        %v2108 = vpop.permute.xlu0 %2107
        %2109 = vrot.lane.b32.xlu0 %v2030, 96
        %v2110 = vpop.permute.xlu0 %2109
        %2111 = vrot.lane.b32.xlu0 %v2031, 96
        %v2112 = vpop.permute.xlu0 %2111
        %2113 = vrot.lane.b32.xlu0 %v2032, 96
        %v2114 = vpop.permute.xlu0 %2113
        %2115 = vrot.lane.b32.xlu0 %v2033, 96
        %v2116 = vpop.permute.xlu0 %2115
        %2117 = vrot.lane.b32.xlu0 %v2034, 96
        %v2118 = vpop.permute.xlu0 %2117
        %2119 = vrot.lane.b32.xlu0 %v2035, 96
        %v2120 = vpop.permute.xlu0 %2119
        %2121 = vrot.lane.b32.xlu0 %v2036, 96
        %v2122 = vpop.permute.xlu0 %2121
        %2123 = vrot.lane.b32.xlu0 %v2037, 96
        %v2124 = vpop.permute.xlu0 %2123
        %2125 = vrot.lane.b32.xlu0 %v2038, 96
        %v2126 = vpop.permute.xlu0 %2125
        %2127 = vrot.lane.b32.xlu0 %v2039, 96
        %v2128 = vpop.permute.xlu0 %2127
        %2129 = vrot.lane.b32.xlu0 %v2040, 96
        %v2130 = vpop.permute.xlu0 %2129
        %2131 = vrot.lane.b32.xlu0 %v2041, 96
        %v2132 = vpop.permute.xlu0 %2131
        %2133 = vrot.lane.b32.xlu0 %v2042, 96
        %v2134 = vpop.permute.xlu0 %2133
        %2135 = vrot.lane.b32.xlu0 %v2043, 96
        %v2136 = vpop.permute.xlu0 %2135
        %2137 = vrot.lane.b32.xlu0 %v2044, 96
        %v2138 = vpop.permute.xlu0 %2137
        %2139 = vrot.lane.b32.xlu0 %v2045, 96
        %v2140 = vpop.permute.xlu0 %2139
        %2141 = vrot.lane.b32.xlu0 %v2046, 96
        %v2142 = vpop.permute.xlu0 %2141
        %2175 = vst.msk [vmem:[#allocation3 + $0x8] sm:$0xff] %vm1533, %v2080
        %2176 = vst.msk [vmem:[#allocation3 + $0x20] sm:$0xff] %vm1533, %v2082
        %2177 = vst.msk [vmem:[#allocation3 + $0x38] sm:$0xff] %vm1533, %v2084
        %2178 = vst.msk [vmem:[#allocation3 + $0x50] sm:$0xff] %vm1533, %v2086
        %2179 = vst.msk [vmem:[#allocation3 + $0x68] sm:$0xff] %vm1533, %v2088
        %2180 = vst.msk [vmem:[#allocation3 + $0x80] sm:$0xff] %vm1533, %v2090
        %2181 = vst.msk [vmem:[#allocation3 + $0x98] sm:$0xff] %vm1533, %v2092
        %2182 = vst.msk [vmem:[#allocation3 + $0xb0] sm:$0xff] %vm1533, %v2094
        %2183 = vst.msk [vmem:[#allocation3 + $0xc8] sm:$0xff] %vm1533, %v2096
        %2184 = vst.msk [vmem:[#allocation3 + $0xe0] sm:$0xff] %vm1533, %v2098
        %2185 = vst.msk [vmem:[#allocation3 + $0xf8] sm:$0xff] %vm1533, %v2100
        %2186 = vst.msk [vmem:[#allocation3 + $0x110] sm:$0xff] %vm1533, %v2102
        %2187 = vst.msk [vmem:[#allocation3 + $0x128] sm:$0xff] %vm1533, %v2104
        %2188 = vst.msk [vmem:[#allocation3 + $0x140] sm:$0xff] %vm1533, %v2106
        %2189 = vst.msk [vmem:[#allocation3 + $0x158] sm:$0xff] %vm1533, %v2108
        %2190 = vst.msk [vmem:[#allocation3 + $0x170] sm:$0xff] %vm1533, %v2110
        %2191 = vst.msk [vmem:[#allocation3 + $0x188] sm:$0xff] %vm1533, %v2112
        %2192 = vst.msk [vmem:[#allocation3 + $0x1a0] sm:$0xff] %vm1533, %v2114
        %2193 = vst.msk [vmem:[#allocation3 + $0x1b8] sm:$0xff] %vm1533, %v2116
        %2194 = vst.msk [vmem:[#allocation3 + $0x1d0] sm:$0xff] %vm1533, %v2118
        %2195 = vst.msk [vmem:[#allocation3 + $0x1e8] sm:$0xff] %vm1533, %v2120
        %2196 = vst.msk [vmem:[#allocation3 + $0x200] sm:$0xff] %vm1533, %v2122
        %2197 = vst.msk [vmem:[#allocation3 + $0x218] sm:$0xff] %vm1533, %v2124
        %2198 = vst.msk [vmem:[#allocation3 + $0x230] sm:$0xff] %vm1533, %v2126
        %2199 = vst.msk [vmem:[#allocation3 + $0x248] sm:$0xff] %vm1533, %v2128
        %2200 = vst.msk [vmem:[#allocation3 + $0x260] sm:$0xff] %vm1533, %v2130
        %2201 = vst.msk [vmem:[#allocation3 + $0x278] sm:$0xff] %vm1533, %v2132
        %2202 = vst.msk [vmem:[#allocation3 + $0x290] sm:$0xff] %vm1533, %v2134
        %2203 = vst.msk [vmem:[#allocation3 + $0x2a8] sm:$0xff] %vm1533, %v2136
        %2204 = vst.msk [vmem:[#allocation3 + $0x2c0] sm:$0xff] %vm1533, %v2138
        %2205 = vst.msk [vmem:[#allocation3 + $0x2d8] sm:$0xff] %vm1533, %v2140
        %2206 = vst.msk [vmem:[#allocation3 + $0x2f0] sm:$0xff] %vm1533, %v2142
        %v2207 = vld [vmem:[%s1822 + $0x2] sm:$0xff]
        %v2208 = vld [vmem:[%s1822 + $0xa] sm:$0xff]
        %v2209 = vld [vmem:[%s1822 + $0x1a] sm:$0xff]
        %v2210 = vld [vmem:[%s1822 + $0x22] sm:$0xff]
        %v2211 = vld [vmem:[%s1822 + $0x32] sm:$0xff]
        %v2212 = vld [vmem:[%s1822 + $0x3a] sm:$0xff]
        %v2213 = vld [vmem:[%s1822 + $0x4a] sm:$0xff]
        %v2214 = vld [vmem:[%s1822 + $0x52] sm:$0xff]
        %v2215 = vld [vmem:[%s1822 + $0x62] sm:$0xff]
        %v2216 = vld [vmem:[%s1822 + $0x6a] sm:$0xff]
        %v2217 = vld [vmem:[%s1822 + $0x7a] sm:$0xff]
        %v2218 = vld [vmem:[%s1822 + $0x82] sm:$0xff]
        %v2219 = vld [vmem:[%s1822 + $0x92] sm:$0xff]
        %v2220 = vld [vmem:[%s1822 + $0x9a] sm:$0xff]
        %v2221 = vld [vmem:[%s1822 + $0xaa] sm:$0xff]
        %v2222 = vld [vmem:[%s1822 + $0xb2] sm:$0xff]
        %v2223 = vld [vmem:[%s1822 + $0xc2] sm:$0xff]
        %v2224 = vld [vmem:[%s1822 + $0xca] sm:$0xff]
        %v2225 = vld [vmem:[%s1822 + $0xda] sm:$0xff]
        %v2226 = vld [vmem:[%s1822 + $0xe2] sm:$0xff]
        %v2227 = vld [vmem:[%s1822 + $0xf2] sm:$0xff]
        %v2228 = vld [vmem:[%s1822 + $0xfa] sm:$0xff]
        %v2229 = vld [vmem:[%s1822 + $0x10a] sm:$0xff]
        %v2230 = vld [vmem:[%s1822 + $0x112] sm:$0xff]
        %v2231 = vld [vmem:[%s1822 + $0x122] sm:$0xff]
        %v2232 = vld [vmem:[%s1822 + $0x12a] sm:$0xff]
        %v2233 = vld [vmem:[%s1822 + $0x13a] sm:$0xff]
        %v2234 = vld [vmem:[%s1822 + $0x142] sm:$0xff]
        %v2235 = vld [vmem:[%s1822 + $0x152] sm:$0xff]
        %v2236 = vld [vmem:[%s1822 + $0x15a] sm:$0xff]
        %v2237 = vld [vmem:[%s1822 + $0x16a] sm:$0xff]
        %v2238 = vld [vmem:[%s1822 + $0x172] sm:$0xff]
        %2239 = vst.msk [vmem:[#allocation3 + $0x10] sm:$0xff] %vm412, %v2207
        %2240 = vst.msk [vmem:[#allocation3 + $0x28] sm:$0xff] %vm412, %v2208
        %2241 = vst.msk [vmem:[#allocation3 + $0x40] sm:$0xff] %vm412, %v2209
        %2242 = vst.msk [vmem:[#allocation3 + $0x58] sm:$0xff] %vm412, %v2210
        %2243 = vst.msk [vmem:[#allocation3 + $0x70] sm:$0xff] %vm412, %v2211
        %2244 = vst.msk [vmem:[#allocation3 + $0x88] sm:$0xff] %vm412, %v2212
        %2245 = vst.msk [vmem:[#allocation3 + $0xa0] sm:$0xff] %vm412, %v2213
        %2246 = vst.msk [vmem:[#allocation3 + $0xb8] sm:$0xff] %vm412, %v2214
        %2247 = vst.msk [vmem:[#allocation3 + $0xd0] sm:$0xff] %vm412, %v2215
        %2248 = vst.msk [vmem:[#allocation3 + $0xe8] sm:$0xff] %vm412, %v2216
        %2249 = vst.msk [vmem:[#allocation3 + $0x100] sm:$0xff] %vm412, %v2217
        %2250 = vst.msk [vmem:[#allocation3 + $0x118] sm:$0xff] %vm412, %v2218
        %2251 = vst.msk [vmem:[#allocation3 + $0x130] sm:$0xff] %vm412, %v2219
        %2252 = vst.msk [vmem:[#allocation3 + $0x148] sm:$0xff] %vm412, %v2220
        %2253 = vst.msk [vmem:[#allocation3 + $0x160] sm:$0xff] %vm412, %v2221
        %2254 = vst.msk [vmem:[#allocation3 + $0x178] sm:$0xff] %vm412, %v2222
        %2255 = vst.msk [vmem:[#allocation3 + $0x190] sm:$0xff] %vm412, %v2223
        %2256 = vst.msk [vmem:[#allocation3 + $0x1a8] sm:$0xff] %vm412, %v2224
        %2257 = vst.msk [vmem:[#allocation3 + $0x1c0] sm:$0xff] %vm412, %v2225
        %2258 = vst.msk [vmem:[#allocation3 + $0x1d8] sm:$0xff] %vm412, %v2226
        %2259 = vst.msk [vmem:[#allocation3 + $0x1f0] sm:$0xff] %vm412, %v2227
        %2260 = vst.msk [vmem:[#allocation3 + $0x208] sm:$0xff] %vm412, %v2228
        %2261 = vst.msk [vmem:[#allocation3 + $0x220] sm:$0xff] %vm412, %v2229
        %2262 = vst.msk [vmem:[#allocation3 + $0x238] sm:$0xff] %vm412, %v2230
        %2263 = vst.msk [vmem:[#allocation3 + $0x250] sm:$0xff] %vm412, %v2231
        %2264 = vst.msk [vmem:[#allocation3 + $0x268] sm:$0xff] %vm412, %v2232
        %2265 = vst.msk [vmem:[#allocation3 + $0x280] sm:$0xff] %vm412, %v2233
        %2266 = vst.msk [vmem:[#allocation3 + $0x298] sm:$0xff] %vm412, %v2234
        %2267 = vst.msk [vmem:[#allocation3 + $0x2b0] sm:$0xff] %vm412, %v2235
        %2268 = vst.msk [vmem:[#allocation3 + $0x2c8] sm:$0xff] %vm412, %v2236
        %2269 = vst.msk [vmem:[#allocation3 + $0x2e0] sm:$0xff] %vm412, %v2237
        %2270 = vst.msk [vmem:[#allocation3 + $0x2f8] sm:$0xff] %vm412, %v2238
        %v2271 = vld [vmem:[#allocation3] sm:$0xff]
        %v2272 = vld [vmem:[#allocation3 + $0x8] sm:$0xff]
        %v2273 = vld [vmem:[#allocation3 + $0x10] sm:$0xff]
        %v2274 = vld [vmem:[#allocation3 + $0x18] sm:$0xff]
        %v2275 = vld [vmem:[#allocation3 + $0x20] sm:$0xff]
        %v2276 = vld [vmem:[#allocation3 + $0x28] sm:$0xff]
        %v2277 = vld [vmem:[#allocation3 + $0x30] sm:$0xff]
        %v2278 = vld [vmem:[#allocation3 + $0x38] sm:$0xff]
        %v2279 = vld [vmem:[#allocation3 + $0x40] sm:$0xff]
        %v2280 = vld [vmem:[#allocation3 + $0x48] sm:$0xff]
        %v2281 = vld [vmem:[#allocation3 + $0x50] sm:$0xff]
        %v2282 = vld [vmem:[#allocation3 + $0x58] sm:$0xff]
        %v2283 = vld [vmem:[#allocation3 + $0x60] sm:$0xff]
        %v2284 = vld [vmem:[#allocation3 + $0x68] sm:$0xff]
        %v2285 = vld [vmem:[#allocation3 + $0x70] sm:$0xff]
        %v2286 = vld [vmem:[#allocation3 + $0x78] sm:$0xff]
        %v2287 = vld [vmem:[#allocation3 + $0x80] sm:$0xff]
        %v2288 = vld [vmem:[#allocation3 + $0x88] sm:$0xff]
        %v2289 = vld [vmem:[#allocation3 + $0x90] sm:$0xff]
        %v2290 = vld [vmem:[#allocation3 + $0x98] sm:$0xff]
        %v2291 = vld [vmem:[#allocation3 + $0xa0] sm:$0xff]
        %v2292 = vld [vmem:[#allocation3 + $0xa8] sm:$0xff]
        %v2293 = vld [vmem:[#allocation3 + $0xb0] sm:$0xff]
        %v2294 = vld [vmem:[#allocation3 + $0xb8] sm:$0xff]
        %v2295 = vld [vmem:[#allocation3 + $0xc0] sm:$0xff]
        %v2296 = vld [vmem:[#allocation3 + $0xc8] sm:$0xff]
        %v2297 = vld [vmem:[#allocation3 + $0xd0] sm:$0xff]
        %v2298 = vld [vmem:[#allocation3 + $0xd8] sm:$0xff]
        %v2299 = vld [vmem:[#allocation3 + $0xe0] sm:$0xff]
        %v2300 = vld [vmem:[#allocation3 + $0xe8] sm:$0xff]
        %v2301 = vld [vmem:[#allocation3 + $0xf0] sm:$0xff]
        %v2302 = vld [vmem:[#allocation3 + $0xf8] sm:$0xff]
        %v2303 = vld [vmem:[#allocation3 + $0x100] sm:$0xff]
        %v2304 = vld [vmem:[#allocation3 + $0x108] sm:$0xff]
        %v2305 = vld [vmem:[#allocation3 + $0x110] sm:$0xff]
        %v2306 = vld [vmem:[#allocation3 + $0x118] sm:$0xff]
        %v2307 = vld [vmem:[#allocation3 + $0x120] sm:$0xff]
        %v2308 = vld [vmem:[#allocation3 + $0x128] sm:$0xff]
        %v2309 = vld [vmem:[#allocation3 + $0x130] sm:$0xff]
        %v2310 = vld [vmem:[#allocation3 + $0x138] sm:$0xff]
        %v2311 = vld [vmem:[#allocation3 + $0x140] sm:$0xff]
        %v2312 = vld [vmem:[#allocation3 + $0x148] sm:$0xff]
        %v2313 = vld [vmem:[#allocation3 + $0x150] sm:$0xff]
        %v2314 = vld [vmem:[#allocation3 + $0x158] sm:$0xff]
        %v2315 = vld [vmem:[#allocation3 + $0x160] sm:$0xff]
        %v2316 = vld [vmem:[#allocation3 + $0x168] sm:$0xff]
        %v2317 = vld [vmem:[#allocation3 + $0x170] sm:$0xff]
        %v2318 = vld [vmem:[#allocation3 + $0x178] sm:$0xff]
        %v2319 = vld [vmem:[#allocation3 + $0x180] sm:$0xff]
        %v2320 = vld [vmem:[#allocation3 + $0x188] sm:$0xff]
        %v2321 = vld [vmem:[#allocation3 + $0x190] sm:$0xff]
        %v2322 = vld [vmem:[#allocation3 + $0x198] sm:$0xff]
        %v2323 = vld [vmem:[#allocation3 + $0x1a0] sm:$0xff]
        %v2324 = vld [vmem:[#allocation3 + $0x1a8] sm:$0xff]
        %v2325 = vld [vmem:[#allocation3 + $0x1b0] sm:$0xff]
        %v2326 = vld [vmem:[#allocation3 + $0x1b8] sm:$0xff]
        %v2327 = vld [vmem:[#allocation3 + $0x1c0] sm:$0xff]
        %v2328 = vld [vmem:[#allocation3 + $0x1c8] sm:$0xff]
        %v2329 = vld [vmem:[#allocation3 + $0x1d0] sm:$0xff]
        %v2330 = vld [vmem:[#allocation3 + $0x1d8] sm:$0xff]
        %v2331 = vld [vmem:[#allocation3 + $0x1e0] sm:$0xff]
        %v2332 = vld [vmem:[#allocation3 + $0x1e8] sm:$0xff]
        %v2333 = vld [vmem:[#allocation3 + $0x1f0] sm:$0xff]
        %v2334 = vld [vmem:[#allocation3 + $0x1f8] sm:$0xff]
        %v2335 = vld [vmem:[#allocation3 + $0x200] sm:$0xff]
        %v2336 = vld [vmem:[#allocation3 + $0x208] sm:$0xff]
        %v2337 = vld [vmem:[#allocation3 + $0x210] sm:$0xff]
        %v2338 = vld [vmem:[#allocation3 + $0x218] sm:$0xff]
        %v2339 = vld [vmem:[#allocation3 + $0x220] sm:$0xff]
        %v2340 = vld [vmem:[#allocation3 + $0x228] sm:$0xff]
        %v2341 = vld [vmem:[#allocation3 + $0x230] sm:$0xff]
        %v2342 = vld [vmem:[#allocation3 + $0x238] sm:$0xff]
        %v2343 = vld [vmem:[#allocation3 + $0x240] sm:$0xff]
        %v2344 = vld [vmem:[#allocation3 + $0x248] sm:$0xff]
        %v2345 = vld [vmem:[#allocation3 + $0x250] sm:$0xff]
        %v2346 = vld [vmem:[#allocation3 + $0x258] sm:$0xff]
        %v2347 = vld [vmem:[#allocation3 + $0x260] sm:$0xff]
        %v2348 = vld [vmem:[#allocation3 + $0x268] sm:$0xff]
        %v2349 = vld [vmem:[#allocation3 + $0x270] sm:$0xff]
        %v2350 = vld [vmem:[#allocation3 + $0x278] sm:$0xff]
        %v2351 = vld [vmem:[#allocation3 + $0x280] sm:$0xff]
        %v2352 = vld [vmem:[#allocation3 + $0x288] sm:$0xff]
        %v2353 = vld [vmem:[#allocation3 + $0x290] sm:$0xff]
        %v2354 = vld [vmem:[#allocation3 + $0x298] sm:$0xff]
        %v2355 = vld [vmem:[#allocation3 + $0x2a0] sm:$0xff]
        %v2356 = vld [vmem:[#allocation3 + $0x2a8] sm:$0xff]
        %v2357 = vld [vmem:[#allocation3 + $0x2b0] sm:$0xff]
        %v2358 = vld [vmem:[#allocation3 + $0x2b8] sm:$0xff]
        %v2359 = vld [vmem:[#allocation3 + $0x2c0] sm:$0xff]
        %v2360 = vld [vmem:[#allocation3 + $0x2c8] sm:$0xff]
        %v2361 = vld [vmem:[#allocation3 + $0x2d0] sm:$0xff]
        %v2362 = vld [vmem:[#allocation3 + $0x2d8] sm:$0xff]
        %v2363 = vld [vmem:[#allocation3 + $0x2e0] sm:$0xff]
        %v2364 = vld [vmem:[#allocation3 + $0x2e8] sm:$0xff]
        %v2365 = vld [vmem:[#allocation3 + $0x2f0] sm:$0xff]
        %v2366 = vld [vmem:[#allocation3 + $0x2f8] sm:$0xff]
        %v2367 = vld [vmem:[%s3] sm:$0xff]
        %v2368 = vld [vmem:[%s3 + $0x8] sm:$0xff]
        %v2369 = vld [vmem:[%s3 + $0x10] sm:$0xff]
        %v2370 = vld [vmem:[%s3 + $0x18] sm:$0xff]
        %v2371 = vld [vmem:[%s3 + $0x20] sm:$0xff]
        %v2372 = vld [vmem:[%s3 + $0x28] sm:$0xff]
        %v2373 = vld [vmem:[%s3 + $0x30] sm:$0xff]
        %v2374 = vld [vmem:[%s3 + $0x38] sm:$0xff]
        %v2375 = vld [vmem:[%s3 + $0x40] sm:$0xff]
        %v2376 = vld [vmem:[%s3 + $0x48] sm:$0xff]
        %v2377 = vld [vmem:[%s3 + $0x50] sm:$0xff]
        %v2378 = vld [vmem:[%s3 + $0x58] sm:$0xff]
        %v2379 = vld [vmem:[%s3 + $0x60] sm:$0xff]
        %v2380 = vld [vmem:[%s3 + $0x68] sm:$0xff]
        %v2381 = vld [vmem:[%s3 + $0x70] sm:$0xff]
        %v2382 = vld [vmem:[%s3 + $0x78] sm:$0xff]
        %v2383 = vld [vmem:[%s3 + $0x80] sm:$0xff]
        %v2384 = vld [vmem:[%s3 + $0x88] sm:$0xff]
        %v2385 = vld [vmem:[%s3 + $0x90] sm:$0xff]
        %v2386 = vld [vmem:[%s3 + $0x98] sm:$0xff]
        %v2387 = vld [vmem:[%s3 + $0xa0] sm:$0xff]
        %v2388 = vld [vmem:[%s3 + $0xa8] sm:$0xff]
        %v2389 = vld [vmem:[%s3 + $0xb0] sm:$0xff]
        %v2390 = vld [vmem:[%s3 + $0xb8] sm:$0xff]
        %v2391 = vld [vmem:[%s3 + $0xc0] sm:$0xff]
        %v2392 = vld [vmem:[%s3 + $0xc8] sm:$0xff]
        %v2393 = vld [vmem:[%s3 + $0xd0] sm:$0xff]
        %v2394 = vld [vmem:[%s3 + $0xd8] sm:$0xff]
        %v2395 = vld [vmem:[%s3 + $0xe0] sm:$0xff]
        %v2396 = vld [vmem:[%s3 + $0xe8] sm:$0xff]
        %v2397 = vld [vmem:[%s3 + $0xf0] sm:$0xff]
        %v2398 = vld [vmem:[%s3 + $0xf8] sm:$0xff]
        %v2399 = vld [vmem:[%s3 + $0x100] sm:$0xff]
        %v2400 = vld [vmem:[%s3 + $0x108] sm:$0xff]
        %v2401 = vld [vmem:[%s3 + $0x110] sm:$0xff]
        %v2402 = vld [vmem:[%s3 + $0x118] sm:$0xff]
        %v2404 = vsel %vm412, %v2273, 0
        %v2407 = vsel %vm412, %v2276, 0
        %v2410 = vsel %vm412, %v2279, 0
        %v2413 = vsel %vm412, %v2282, 0
        %v2416 = vsel %vm412, %v2285, 0
        %v2419 = vsel %vm412, %v2288, 0
        %v2422 = vsel %vm412, %v2291, 0
        %v2425 = vsel %vm412, %v2294, 0
        %v2428 = vsel %vm412, %v2297, 0
        %v2431 = vsel %vm412, %v2300, 0
        %v2434 = vsel %vm412, %v2303, 0
        %v2437 = vsel %vm412, %v2306, 0
        %v2440 = vsel %vm412, %v2309, 0
        %v2443 = vsel %vm412, %v2312, 0
        %v2446 = vsel %vm412, %v2315, 0
        %v2449 = vsel %vm412, %v2318, 0
        %v2452 = vsel %vm412, %v2321, 0
        %v2455 = vsel %vm412, %v2324, 0
        %v2458 = vsel %vm412, %v2327, 0
        %v2461 = vsel %vm412, %v2330, 0
        %v2464 = vsel %vm412, %v2333, 0
        %v2467 = vsel %vm412, %v2336, 0
        %v2470 = vsel %vm412, %v2339, 0
        %v2473 = vsel %vm412, %v2342, 0
        %v2476 = vsel %vm412, %v2345, 0
        %v2479 = vsel %vm412, %v2348, 0
        %v2482 = vsel %vm412, %v2351, 0
        %v2485 = vsel %vm412, %v2354, 0
        %v2488 = vsel %vm412, %v2357, 0
        %v2491 = vsel %vm412, %v2360, 0
        %v2494 = vsel %vm412, %v2363, 0
        %v2497 = vsel %vm412, %v2366, 0
        %2499 = vmatprep.subr.mxu0 0.0
        %2500 = vmatpush1.msra.mxu0 %v2367
        %2501 = vmatprep.subr.mxu0 0.0
        %2502 = vmatpush1.msra.mxu0 %v2368
        %2503 = vmatprep.subr.mxu0 0.0
        %2504 = vmatpush1.msra.mxu0 %v2369
        %2505 = vmatprep.subr.mxu0 0.0
        %2506 = vmatpush1.msra.mxu0 %v2370
        %2507 = vmatprep.subr.mxu0 0.0
        %2508 = vmatpush1.msra.mxu0 %v2371
        %2509 = vmatprep.subr.mxu0 0.0
        %2510 = vmatpush1.msra.mxu0 %v2372
        %2511 = vmatprep.subr.mxu0 0.0
        %2512 = vmatpush1.msra.mxu0 %v2373
        %2513 = vmatprep.subr.mxu0 0.0
        %2514 = vmatpush1.msra.mxu0 %v2374
        %2515 = vmatprep.subr.mxu0 0.0
        %2516 = vmatpush1.msra.mxu0 %v2375
        %2517 = vmatprep.subr.mxu0 0.0
        %2518 = vmatpush1.msra.mxu0 %v2376
        %2519 = vmatprep.subr.mxu0 0.0
        %2520 = vmatpush1.msra.mxu0 %v2377
        %2521 = vmatprep.subr.mxu0 0.0
        %2522 = vmatpush1.msra.mxu0 %v2378
        %2523 = vmatprep.subr.mxu0 0.0
        %2524 = vmatpush1.msra.mxu0 %v2379
        %2525 = vmatprep.subr.mxu0 0.0
        %2526 = vmatpush1.msra.mxu0 %v2380
        %2527 = vmatprep.subr.mxu0 0.0
        %2528 = vmatpush1.msra.mxu0 %v2381
        %2529 = vmatprep.subr.mxu0 0.0
        %2530 = vmatpush1.msra.mxu0 %v2382
        %2531 = vmatprep.subr.mxu0 0.0
        %2532 = vmatpush1.msra.mxu0 %v2383
        %2533 = vmatprep.subr.mxu0 0.0
        %2534 = vmatpush1.msra.mxu0 %v2384
        %2535 = vmatprep.subr.mxu0 0.0
        %2536 = vmatpush1.msra.mxu0 %v2385
        %2537 = vmatprep.subr.mxu0 0.0
        %2538 = vmatpush1.msra.mxu0 %v2386
        %2539 = vmatprep.subr.mxu0 0.0
        %2540 = vmatpush1.msra.mxu0 %v2387
        %2541 = vmatprep.subr.mxu0 0.0
        %2542 = vmatpush1.msra.mxu0 %v2388
        %2543 = vmatprep.subr.mxu0 0.0
        %2544 = vmatpush1.msra.mxu0 %v2389
        %2545 = vmatprep.subr.mxu0 0.0
        %2546 = vmatpush1.msra.mxu0 %v2390
        %2547 = vmatprep.subr.mxu0 0.0
        %2548 = vmatpush1.msra.mxu0 %v2391
        %2549 = vmatprep.subr.mxu0 0.0
        %2550 = vmatpush1.msra.mxu0 %v2392
        %2551 = vmatprep.subr.mxu0 0.0
        %2552 = vmatpush1.msra.mxu0 %v2393
        %2553 = vmatprep.subr.mxu0 0.0
        %2554 = vmatpush1.msra.mxu0 %v2394
        %2555 = vmatprep.subr.mxu0 0.0
        %2556 = vmatpush1.msra.mxu0 %v2395
        %2557 = vmatprep.subr.mxu0 0.0
        %2558 = vmatpush1.msra.mxu0 %v2396
        %2559 = vmatprep.subr.mxu0 0.0
        %2560 = vmatpush1.msra.mxu0 %v2397
        %2561 = vmatprep.subr.mxu0 0.0
        %2562 = vmatpush1.msra.mxu0 %v2398
        %2563 = vmatprep.mubr.f32.mxu0 %v2272
        %2564 = vmatmul.mubr.f32.gmra.mrb[0].mxu0 %v2271
        %v2565 = vpop.f32.mrb[0].mxu0
        %v2566 = vadd.f32 0.0, %v2565
        %v2567 = vpop.f32.mrb[0].mxu0
        %2568 = vmatprep.mubr.f32.mxu0 %v2275
        %2569 = vmatmul.mubr.f32.gmra.mrb[0].mxu0 %v2274
        %v2570 = vpop.f32.mrb[0].mxu0
        %v2571 = vadd.f32 0.0, %v2570
        %v2572 = vpop.f32.mrb[0].mxu0
        %2573 = vmatprep.mubr.f32.mxu0 %v2278
        %2574 = vmatmul.mubr.f32.gmra.mrb[0].mxu0 %v2277
        %v2575 = vpop.f32.mrb[0].mxu0
        %v2576 = vadd.f32 0.0, %v2575
        %v2577 = vpop.f32.mrb[0].mxu0
        %2578 = vmatprep.mubr.f32.mxu0 %v2281
        %2579 = vmatmul.mubr.f32.gmra.mrb[0].mxu0 %v2280
        %v2580 = vpop.f32.mrb[0].mxu0
        %v2581 = vadd.f32 0.0, %v2580
        %v2582 = vpop.f32.mrb[0].mxu0
        %2583 = vmatprep.mubr.f32.mxu0 %v2284
        %2584 = vmatmul.mubr.f32.gmra.mrb[0].mxu0 %v2283
        %v2585 = vpop.f32.mrb[0].mxu0
        %v2586 = vadd.f32 0.0, %v2585
        %v2587 = vpop.f32.mrb[0].mxu0
        %2588 = vmatprep.mubr.f32.mxu0 %v2287
        %2589 = vmatmul.mubr.f32.gmra.mrb[0].mxu0 %v2286
        %v2590 = vpop.f32.mrb[0].mxu0
        %v2591 = vadd.f32 0.0, %v2590
        %v2592 = vpop.f32.mrb[0].mxu0
        %2593 = vmatprep.mubr.f32.mxu0 %v2290
        %2594 = vmatmul.mubr.f32.gmra.mrb[0].mxu0 %v2289
        %v2595 = vpop.f32.mrb[0].mxu0
        %v2596 = vadd.f32 0.0, %v2595
        %v2597 = vpop.f32.mrb[0].mxu0
        %2598 = vmatprep.mubr.f32.mxu0 %v2293
        %2599 = vmatmul.mubr.f32.gmra.mrb[0].mxu0 %v2292
        %v2600 = vpop.f32.mrb[0].mxu0
        %v2601 = vadd.f32 0.0, %v2600
        %v2602 = vpop.f32.mrb[0].mxu0
        %2603 = vmatprep.mubr.f32.mxu0 %v2296
        %2604 = vmatmul.mubr.f32.gmra.mrb[0].mxu0 %v2295
        %v2605 = vpop.f32.mrb[0].mxu0
        %v2606 = vadd.f32 0.0, %v2605
        %v2607 = vpop.f32.mrb[0].mxu0
        %2608 = vmatprep.mubr.f32.mxu0 %v2299
        %2609 = vmatmul.mubr.f32.gmra.mrb[0].mxu0 %v2298
        %v2610 = vpop.f32.mrb[0].mxu0
        %v2611 = vadd.f32 0.0, %v2610
        %v2612 = vpop.f32.mrb[0].mxu0
        %2613 = vmatprep.mubr.f32.mxu0 %v2302
        %2614 = vmatmul.mubr.f32.gmra.mrb[0].mxu0 %v2301
        %v2615 = vpop.f32.mrb[0].mxu0
        %v2616 = vadd.f32 0.0, %v2615
        %v2617 = vpop.f32.mrb[0].mxu0
        %2618 = vmatprep.mubr.f32.mxu0 %v2305
        %2619 = vmatmul.mubr.f32.gmra.mrb[0].mxu0 %v2304
        %v2620 = vpop.f32.mrb[0].mxu0
        %v2621 = vadd.f32 0.0, %v2620
        %v2622 = vpop.f32.mrb[0].mxu0
        %2623 = vmatprep.mubr.f32.mxu0 %v2308
        %2624 = vmatmul.mubr.f32.gmra.mrb[0].mxu0 %v2307
        %v2625 = vpop.f32.mrb[0].mxu0
        %v2626 = vadd.f32 0.0, %v2625
        %v2627 = vpop.f32.mrb[0].mxu0
        %2628 = vmatprep.mubr.f32.mxu0 %v2311
        %2629 = vmatmul.mubr.f32.gmra.mrb[0].mxu0 %v2310
        %v2630 = vpop.f32.mrb[0].mxu0
        %v2631 = vadd.f32 0.0, %v2630
        %v2632 = vpop.f32.mrb[0].mxu0
        %2633 = vmatprep.mubr.f32.mxu0 %v2314
        %2634 = vmatmul.mubr.f32.gmra.mrb[0].mxu0 %v2313
        %v2635 = vpop.f32.mrb[0].mxu0
        %v2636 = vadd.f32 0.0, %v2635
        %v2637 = vpop.f32.mrb[0].mxu0
        %2638 = vmatprep.mubr.f32.mxu0 %v2317
        %2639 = vmatmul.mubr.f32.gmra.mrb[0].mxu0 %v2316
        %v2640 = vpop.f32.mrb[0].mxu0
        %v2641 = vadd.f32 0.0, %v2640
        %v2642 = vpop.f32.mrb[0].mxu0
        %2643 = vmatprep.mubr.f32.mxu0 %v2320
        %2644 = vmatmul.mubr.f32.gmra.mrb[0].mxu0 %v2319
        %v2645 = vpop.f32.mrb[0].mxu0
        %v2646 = vadd.f32 0.0, %v2645
        %v2647 = vpop.f32.mrb[0].mxu0
        %2648 = vmatprep.mubr.f32.mxu0 %v2323
        %2649 = vmatmul.mubr.f32.gmra.mrb[0].mxu0 %v2322
        %v2650 = vpop.f32.mrb[0].mxu0
        %v2651 = vadd.f32 0.0, %v2650
        %v2652 = vpop.f32.mrb[0].mxu0
        %2653 = vmatprep.mubr.f32.mxu0 %v2326
        %2654 = vmatmul.mubr.f32.gmra.mrb[0].mxu0 %v2325
        %v2655 = vpop.f32.mrb[0].mxu0
        %v2656 = vadd.f32 0.0, %v2655
        %v2657 = vpop.f32.mrb[0].mxu0
        %2658 = vmatprep.mubr.f32.mxu0 %v2329
        %2659 = vmatmul.mubr.f32.gmra.mrb[0].mxu0 %v2328
        %v2660 = vpop.f32.mrb[0].mxu0
        %v2661 = vadd.f32 0.0, %v2660
        %v2662 = vpop.f32.mrb[0].mxu0
        %2663 = vmatprep.mubr.f32.mxu0 %v2332
        %2664 = vmatmul.mubr.f32.gmra.mrb[0].mxu0 %v2331
        %v2665 = vpop.f32.mrb[0].mxu0
        %v2666 = vadd.f32 0.0, %v2665
        %v2667 = vpop.f32.mrb[0].mxu0
        %2668 = vmatprep.mubr.f32.mxu0 %v2335
        %2669 = vmatmul.mubr.f32.gmra.mrb[0].mxu0 %v2334
        %v2670 = vpop.f32.mrb[0].mxu0
        %v2671 = vadd.f32 0.0, %v2670
        %v2672 = vpop.f32.mrb[0].mxu0
        %2673 = vmatprep.mubr.f32.mxu0 %v2338
        %2674 = vmatmul.mubr.f32.gmra.mrb[0].mxu0 %v2337
        %v2675 = vpop.f32.mrb[0].mxu0
        %v2676 = vadd.f32 0.0, %v2675
        %v2677 = vpop.f32.mrb[0].mxu0
        %2678 = vmatprep.mubr.f32.mxu0 %v2341
        %2679 = vmatmul.mubr.f32.gmra.mrb[0].mxu0 %v2340
        %v2680 = vpop.f32.mrb[0].mxu0
        %v2681 = vadd.f32 0.0, %v2680
        %v2682 = vpop.f32.mrb[0].mxu0
        %2683 = vmatprep.mubr.f32.mxu0 %v2344
        %2684 = vmatmul.mubr.f32.gmra.mrb[0].mxu0 %v2343
        %v2685 = vpop.f32.mrb[0].mxu0
        %v2686 = vadd.f32 0.0, %v2685
        %v2687 = vpop.f32.mrb[0].mxu0
        %2688 = vmatprep.mubr.f32.mxu0 %v2347
        %2689 = vmatmul.mubr.f32.gmra.mrb[0].mxu0 %v2346
        %v2690 = vpop.f32.mrb[0].mxu0
        %v2691 = vadd.f32 0.0, %v2690
        %v2692 = vpop.f32.mrb[0].mxu0
        %2693 = vmatprep.mubr.f32.mxu0 %v2350
        %2694 = vmatmul.mubr.f32.gmra.mrb[0].mxu0 %v2349
        %v2695 = vpop.f32.mrb[0].mxu0
        %v2696 = vadd.f32 0.0, %v2695
        %v2697 = vpop.f32.mrb[0].mxu0
        %2698 = vmatprep.mubr.f32.mxu0 %v2353
        %2699 = vmatmul.mubr.f32.gmra.mrb[0].mxu0 %v2352
        %v2700 = vpop.f32.mrb[0].mxu0
        %v2701 = vadd.f32 0.0, %v2700
        %v2702 = vpop.f32.mrb[0].mxu0
        %2703 = vmatprep.mubr.f32.mxu0 %v2356
        %2704 = vmatmul.mubr.f32.gmra.mrb[0].mxu0 %v2355
        %v2705 = vpop.f32.mrb[0].mxu0
        %v2706 = vadd.f32 0.0, %v2705
        %v2707 = vpop.f32.mrb[0].mxu0
        %2708 = vmatprep.mubr.f32.mxu0 %v2359
        %2709 = vmatmul.mubr.f32.gmra.mrb[0].mxu0 %v2358
        %v2710 = vpop.f32.mrb[0].mxu0
        %v2711 = vadd.f32 0.0, %v2710
        %v2712 = vpop.f32.mrb[0].mxu0
        %2713 = vmatprep.mubr.f32.mxu0 %v2362
        %2714 = vmatmul.mubr.f32.gmra.mrb[0].mxu0 %v2361
        %v2715 = vpop.f32.mrb[0].mxu0
        %v2716 = vadd.f32 0.0, %v2715
        %v2717 = vpop.f32.mrb[0].mxu0
        %2718 = vmatprep.mubr.f32.mxu0 %v2365
        %2719 = vmatmul.mubr.f32.gmra.mrb[0].mxu0 %v2364
        %v2720 = vpop.f32.mrb[0].mxu0
        %v2721 = vadd.f32 0.0, %v2720
        %v2722 = vpop.f32.mrb[0].mxu0
        %2723 = vdwg.mxu0
        %2724 = vmatprep.subr.mxu0 0.0
        %2725 = vmatpush1.msra.mxu0 %v2399
        %2726 = vmatprep.subr.mxu0 0.0
        %2727 = vmatpush1.msra.mxu0 %v2400
        %2728 = vmatprep.subr.mxu0 0.0
        %2729 = vmatpush1.msra.mxu0 %v2401
        %2730 = vmatprep.subr.mxu0 0.0
        %2731 = vmatpush1.msra.mxu0 %v2402
        %2732 = vmatprep.subr.mxu0 0.0
        %2733 = vmatpush1.msra.mxu0 0.0
        %2734 = vmatprep.subr.mxu0 0.0
        %2735 = vmatpush1.msra.mxu0 0.0
        %2736 = vmatprep.subr.mxu0 0.0
        %2737 = vmatpush1.msra.mxu0 0.0
        %2738 = vmatprep.subr.mxu0 0.0
        %2739 = vmatpush1.msra.mxu0 0.0
        %2740 = vmatprep.subr.mxu0 0.0
        %2741 = vmatpush1.msra.mxu0 0.0
        %2742 = vmatprep.subr.mxu0 0.0
        %2743 = vmatpush1.msra.mxu0 0.0
        %2744 = vmatprep.subr.mxu0 0.0
        %2745 = vmatpush1.msra.mxu0 0.0
        %2746 = vmatprep.subr.mxu0 0.0
        %2747 = vmatpush1.msra.mxu0 0.0
        %2748 = vmatprep.subr.mxu0 0.0
        %2749 = vmatpush1.msra.mxu0 0.0
        %2750 = vmatprep.subr.mxu0 0.0
        %2751 = vmatpush1.msra.mxu0 0.0
        %2752 = vmatprep.subr.mxu0 0.0
        %2753 = vmatpush1.msra.mxu0 0.0
        %2754 = vmatprep.subr.mxu0 0.0
        %2755 = vmatpush1.msra.mxu0 0.0
        %2756 = vmatprep.subr.mxu0 0.0
        %2757 = vmatpush1.msra.mxu0 0.0
        %2758 = vmatprep.subr.mxu0 0.0
        %2759 = vmatpush1.msra.mxu0 0.0
        %2760 = vmatprep.subr.mxu0 0.0
        %2761 = vmatpush1.msra.mxu0 0.0
        %2762 = vmatprep.subr.mxu0 0.0
        %2763 = vmatpush1.msra.mxu0 0.0
        %2764 = vmatprep.subr.mxu0 0.0
        %2765 = vmatpush1.msra.mxu0 0.0
        %2766 = vmatprep.subr.mxu0 0.0
        %2767 = vmatpush1.msra.mxu0 0.0
        %2768 = vmatprep.subr.mxu0 0.0
        %2769 = vmatpush1.msra.mxu0 0.0
        %2770 = vmatprep.subr.mxu0 0.0
        %2771 = vmatpush1.msra.mxu0 0.0
        %2772 = vmatprep.subr.mxu0 0.0
        %2773 = vmatpush1.msra.mxu0 0.0
        %2774 = vmatprep.subr.mxu0 0.0
        %2775 = vmatpush1.msra.mxu0 0.0
        %2776 = vmatprep.subr.mxu0 0.0
        %2777 = vmatpush1.msra.mxu0 0.0
        %2778 = vmatprep.subr.mxu0 0.0
        %2779 = vmatpush1.msra.mxu0 0.0
        %2780 = vmatprep.subr.mxu0 0.0
        %2781 = vmatpush1.msra.mxu0 0.0
        %2782 = vmatprep.subr.mxu0 0.0
        %2783 = vmatpush1.msra.mxu0 0.0
        %2784 = vmatprep.subr.mxu0 0.0
        %2785 = vmatpush1.msra.mxu0 0.0
        %2786 = vmatprep.subr.mxu0 0.0
        %2787 = vmatpush1.msra.mxu0 0.0
        %2788 = vmatprep.mubr.f32.mxu0 0.0
        %2789 = vmatmul.mubr.f32.gmra.mrb[0].mxu0 %v2404
        %v2790 = vpop.f32.mrb[0].mxu0
        %v2791 = vadd.f32 %v2566, %v2790
        %v2792 = vpop.f32.mrb[0].mxu0
        %2793 = vmatprep.mubr.f32.mxu0 0.0
        %2794 = vmatmul.mubr.f32.gmra.mrb[0].mxu0 %v2407
        %v2795 = vpop.f32.mrb[0].mxu0
        %v2796 = vadd.f32 %v2571, %v2795
        %v2797 = vpop.f32.mrb[0].mxu0
        %2798 = vmatprep.mubr.f32.mxu0 0.0
        %2799 = vmatmul.mubr.f32.gmra.mrb[0].mxu0 %v2410
        %v2800 = vpop.f32.mrb[0].mxu0
        %v2801 = vadd.f32 %v2576, %v2800
        %v2802 = vpop.f32.mrb[0].mxu0
        %2803 = vmatprep.mubr.f32.mxu0 0.0
        %2804 = vmatmul.mubr.f32.gmra.mrb[0].mxu0 %v2413
        %v2805 = vpop.f32.mrb[0].mxu0
        %v2806 = vadd.f32 %v2581, %v2805
        %v2807 = vpop.f32.mrb[0].mxu0
        %2808 = vmatprep.mubr.f32.mxu0 0.0
        %2809 = vmatmul.mubr.f32.gmra.mrb[0].mxu0 %v2416
        %v2810 = vpop.f32.mrb[0].mxu0
        %v2811 = vadd.f32 %v2586, %v2810
        %v2812 = vpop.f32.mrb[0].mxu0
        %2813 = vmatprep.mubr.f32.mxu0 0.0
        %2814 = vmatmul.mubr.f32.gmra.mrb[0].mxu0 %v2419
        %v2815 = vpop.f32.mrb[0].mxu0
        %v2816 = vadd.f32 %v2591, %v2815
        %v2817 = vpop.f32.mrb[0].mxu0
        %2818 = vmatprep.mubr.f32.mxu0 0.0
        %2819 = vmatmul.mubr.f32.gmra.mrb[0].mxu0 %v2422
        %v2820 = vpop.f32.mrb[0].mxu0
        %v2821 = vadd.f32 %v2596, %v2820
        %v2822 = vpop.f32.mrb[0].mxu0
        %2823 = vmatprep.mubr.f32.mxu0 0.0
        %2824 = vmatmul.mubr.f32.gmra.mrb[0].mxu0 %v2425
        %v2825 = vpop.f32.mrb[0].mxu0
        %v2826 = vadd.f32 %v2601, %v2825
        %v2827 = vpop.f32.mrb[0].mxu0
        %2828 = vmatprep.mubr.f32.mxu0 0.0
        %2829 = vmatmul.mubr.f32.gmra.mrb[0].mxu0 %v2428
        %v2830 = vpop.f32.mrb[0].mxu0
        %v2831 = vadd.f32 %v2606, %v2830
        %v2832 = vpop.f32.mrb[0].mxu0
        %2833 = vmatprep.mubr.f32.mxu0 0.0
        %2834 = vmatmul.mubr.f32.gmra.mrb[0].mxu0 %v2431
        %v2835 = vpop.f32.mrb[0].mxu0
        %v2836 = vadd.f32 %v2611, %v2835
        %v2837 = vpop.f32.mrb[0].mxu0
        %2838 = vmatprep.mubr.f32.mxu0 0.0
        %2839 = vmatmul.mubr.f32.gmra.mrb[0].mxu0 %v2434
        %v2840 = vpop.f32.mrb[0].mxu0
        %v2841 = vadd.f32 %v2616, %v2840
        %v2842 = vpop.f32.mrb[0].mxu0
        %2843 = vmatprep.mubr.f32.mxu0 0.0
        %2844 = vmatmul.mubr.f32.gmra.mrb[0].mxu0 %v2437
        %v2845 = vpop.f32.mrb[0].mxu0
        %v2846 = vadd.f32 %v2621, %v2845
        %v2847 = vpop.f32.mrb[0].mxu0
        %2848 = vmatprep.mubr.f32.mxu0 0.0
        %2849 = vmatmul.mubr.f32.gmra.mrb[0].mxu0 %v2440
        %v2850 = vpop.f32.mrb[0].mxu0
        %v2851 = vadd.f32 %v2626, %v2850
        %v2852 = vpop.f32.mrb[0].mxu0
        %2853 = vmatprep.mubr.f32.mxu0 0.0
        %2854 = vmatmul.mubr.f32.gmra.mrb[0].mxu0 %v2443
        %v2855 = vpop.f32.mrb[0].mxu0
        %v2856 = vadd.f32 %v2631, %v2855
        %v2857 = vpop.f32.mrb[0].mxu0
        %2858 = vmatprep.mubr.f32.mxu0 0.0
        %2859 = vmatmul.mubr.f32.gmra.mrb[0].mxu0 %v2446
        %v2860 = vpop.f32.mrb[0].mxu0
        %v2861 = vadd.f32 %v2636, %v2860
        %v2862 = vpop.f32.mrb[0].mxu0
        %2863 = vmatprep.mubr.f32.mxu0 0.0
        %2864 = vmatmul.mubr.f32.gmra.mrb[0].mxu0 %v2449
        %v2865 = vpop.f32.mrb[0].mxu0
        %v2866 = vadd.f32 %v2641, %v2865
        %v2867 = vpop.f32.mrb[0].mxu0
        %2868 = vmatprep.mubr.f32.mxu0 0.0
        %2869 = vmatmul.mubr.f32.gmra.mrb[0].mxu0 %v2452
        %v2870 = vpop.f32.mrb[0].mxu0
        %v2871 = vadd.f32 %v2646, %v2870
        %v2872 = vpop.f32.mrb[0].mxu0
        %2873 = vmatprep.mubr.f32.mxu0 0.0
        %2874 = vmatmul.mubr.f32.gmra.mrb[0].mxu0 %v2455
        %v2875 = vpop.f32.mrb[0].mxu0
        %v2876 = vadd.f32 %v2651, %v2875
        %v2877 = vpop.f32.mrb[0].mxu0
        %2878 = vmatprep.mubr.f32.mxu0 0.0
        %2879 = vmatmul.mubr.f32.gmra.mrb[0].mxu0 %v2458
        %v2880 = vpop.f32.mrb[0].mxu0
        %v2881 = vadd.f32 %v2656, %v2880
        %v2882 = vpop.f32.mrb[0].mxu0
        %2883 = vmatprep.mubr.f32.mxu0 0.0
        %2884 = vmatmul.mubr.f32.gmra.mrb[0].mxu0 %v2461
        %v2885 = vpop.f32.mrb[0].mxu0
        %v2886 = vadd.f32 %v2661, %v2885
        %v2887 = vpop.f32.mrb[0].mxu0
        %2888 = vmatprep.mubr.f32.mxu0 0.0
        %2889 = vmatmul.mubr.f32.gmra.mrb[0].mxu0 %v2464
        %v2890 = vpop.f32.mrb[0].mxu0
        %v2891 = vadd.f32 %v2666, %v2890
        %v2892 = vpop.f32.mrb[0].mxu0
        %2893 = vmatprep.mubr.f32.mxu0 0.0
        %2894 = vmatmul.mubr.f32.gmra.mrb[0].mxu0 %v2467
        %v2895 = vpop.f32.mrb[0].mxu0
        %v2896 = vadd.f32 %v2671, %v2895
        %v2897 = vpop.f32.mrb[0].mxu0
        %2898 = vmatprep.mubr.f32.mxu0 0.0
        %2899 = vmatmul.mubr.f32.gmra.mrb[0].mxu0 %v2470
        %v2900 = vpop.f32.mrb[0].mxu0
        %v2901 = vadd.f32 %v2676, %v2900
        %v2902 = vpop.f32.mrb[0].mxu0
        %2903 = vmatprep.mubr.f32.mxu0 0.0
        %2904 = vmatmul.mubr.f32.gmra.mrb[0].mxu0 %v2473
        %v2905 = vpop.f32.mrb[0].mxu0
        %v2906 = vadd.f32 %v2681, %v2905
        %v2907 = vpop.f32.mrb[0].mxu0
        %2908 = vmatprep.mubr.f32.mxu0 0.0
        %2909 = vmatmul.mubr.f32.gmra.mrb[0].mxu0 %v2476
        %v2910 = vpop.f32.mrb[0].mxu0
        %v2911 = vadd.f32 %v2686, %v2910
        %v2912 = vpop.f32.mrb[0].mxu0
        %2913 = vmatprep.mubr.f32.mxu0 0.0
        %2914 = vmatmul.mubr.f32.gmra.mrb[0].mxu0 %v2479
        %v2915 = vpop.f32.mrb[0].mxu0
        %v2916 = vadd.f32 %v2691, %v2915
        %v2917 = vpop.f32.mrb[0].mxu0
        %2918 = vmatprep.mubr.f32.mxu0 0.0
        %2919 = vmatmul.mubr.f32.gmra.mrb[0].mxu0 %v2482
        %v2920 = vpop.f32.mrb[0].mxu0
        %v2921 = vadd.f32 %v2696, %v2920
        %v2922 = vpop.f32.mrb[0].mxu0
        %2923 = vmatprep.mubr.f32.mxu0 0.0
        %2924 = vmatmul.mubr.f32.gmra.mrb[0].mxu0 %v2485
        %v2925 = vpop.f32.mrb[0].mxu0
        %v2926 = vadd.f32 %v2701, %v2925
        %v2927 = vpop.f32.mrb[0].mxu0
        %2928 = vmatprep.mubr.f32.mxu0 0.0
        %2929 = vmatmul.mubr.f32.gmra.mrb[0].mxu0 %v2488
        %v2930 = vpop.f32.mrb[0].mxu0
        %v2931 = vadd.f32 %v2706, %v2930
        %v2932 = vpop.f32.mrb[0].mxu0
        %2933 = vmatprep.mubr.f32.mxu0 0.0
        %2934 = vmatmul.mubr.f32.gmra.mrb[0].mxu0 %v2491
        %v2935 = vpop.f32.mrb[0].mxu0
        %v2936 = vadd.f32 %v2711, %v2935
        %v2937 = vpop.f32.mrb[0].mxu0
        %2938 = vmatprep.mubr.f32.mxu0 0.0
        %2939 = vmatmul.mubr.f32.gmra.mrb[0].mxu0 %v2494
        %v2940 = vpop.f32.mrb[0].mxu0
        %v2941 = vadd.f32 %v2716, %v2940
        %v2942 = vpop.f32.mrb[0].mxu0
        %2943 = vmatprep.mubr.f32.mxu0 0.0
        %2944 = vmatmul.mubr.f32.gmra.mrb[0].mxu0 %v2497
        %v2945 = vpop.f32.mrb[0].mxu0
        %v2946 = vadd.f32 %v2721, %v2945
        %v2947 = vpop.f32.mrb[0].mxu0
        %2948 = vdwg.mxu0
        %v2949 = vld [vmem:[%s5] sm:$0xff]
        %v2950 = vld [vmem:[%s5 + $0x8] sm:$0xff]
        %v2951 = vld [vmem:[%s5 + $0x10] sm:$0xff]
        %v2952 = vld [vmem:[%s5 + $0x18] sm:$0xff]
        %v2953 = vld [vmem:[%s5 + $0x20] sm:$0xff]
        %v2954 = vld [vmem:[%s5 + $0x28] sm:$0xff]
        %v2955 = vld [vmem:[%s5 + $0x30] sm:$0xff]
        %v2956 = vld [vmem:[%s5 + $0x38] sm:$0xff]
        %v2957 = vld [vmem:[%s5 + $0x40] sm:$0xff]
        %v2958 = vld [vmem:[%s5 + $0x48] sm:$0xff]
        %v2959 = vld [vmem:[%s5 + $0x50] sm:$0xff]
        %v2960 = vld [vmem:[%s5 + $0x58] sm:$0xff]
        %v2961 = vld [vmem:[%s5 + $0x60] sm:$0xff]
        %v2962 = vld [vmem:[%s5 + $0x68] sm:$0xff]
        %v2963 = vld [vmem:[%s5 + $0x70] sm:$0xff]
        %v2964 = vld [vmem:[%s5 + $0x78] sm:$0xff]
        %v2965 = vld [vmem:[%s4] sm:$0x1]
        %v2967 = vlaneseq
        %v2968 = vshrl.u32 %v2967, 7
        %v2969 = vsub.s32 0, %v2968
        %v2970 = vrot.slane %v2965, %v2969
        %2972 = vmatprep.subr.mxu0 0.0
        %2973 = vmatpush1.msra.mxu0 %v2791
        %2974 = vmatprep.subr.mxu0 0.0
        %2975 = vmatpush1.msra.mxu0 %v2796
        %2976 = vmatprep.subr.mxu0 0.0
        %2977 = vmatpush1.msra.mxu0 %v2801
        %2978 = vmatprep.subr.mxu0 0.0
        %2979 = vmatpush1.msra.mxu0 %v2806
        %2980 = vmatprep.subr.mxu0 0.0
        %2981 = vmatpush1.msra.mxu0 %v2811
        %2982 = vmatprep.subr.mxu0 0.0
        %2983 = vmatpush1.msra.mxu0 %v2816
        %2984 = vmatprep.subr.mxu0 0.0
        %2985 = vmatpush1.msra.mxu0 %v2821
        %2986 = vmatprep.subr.mxu0 0.0
        %2987 = vmatpush1.msra.mxu0 %v2826
        %2988 = vmatprep.subr.mxu0 0.0
        %2989 = vmatpush1.msra.mxu0 %v2831
        %2990 = vmatprep.subr.mxu0 0.0
        %2991 = vmatpush1.msra.mxu0 %v2836
        %2992 = vmatprep.subr.mxu0 0.0
        %2993 = vmatpush1.msra.mxu0 %v2841
        %2994 = vmatprep.subr.mxu0 0.0
        %2995 = vmatpush1.msra.mxu0 %v2846
        %2996 = vmatprep.subr.mxu0 0.0
        %2997 = vmatpush1.msra.mxu0 %v2851
        %2998 = vmatprep.subr.mxu0 0.0
        %2999 = vmatpush1.msra.mxu0 %v2856
        %3000 = vmatprep.subr.mxu0 0.0
        %3001 = vmatpush1.msra.mxu0 %v2861
        %3002 = vmatprep.subr.mxu0 0.0
        %3003 = vmatpush1.msra.mxu0 %v2866
        %3004 = vmatprep.subr.mxu0 0.0
        %3005 = vmatpush1.msra.mxu0 %v2871
        %3006 = vmatprep.subr.mxu0 0.0
        %3007 = vmatpush1.msra.mxu0 %v2876
        %3008 = vmatprep.subr.mxu0 0.0
        %3009 = vmatpush1.msra.mxu0 %v2881
        %3010 = vmatprep.subr.mxu0 0.0
        %3011 = vmatpush1.msra.mxu0 %v2886
        %3012 = vmatprep.subr.mxu0 0.0
        %3013 = vmatpush1.msra.mxu0 %v2891
        %3014 = vmatprep.subr.mxu0 0.0
        %3015 = vmatpush1.msra.mxu0 %v2896
        %3016 = vmatprep.subr.mxu0 0.0
        %3017 = vmatpush1.msra.mxu0 %v2901
        %3018 = vmatprep.subr.mxu0 0.0
        %3019 = vmatpush1.msra.mxu0 %v2906
        %3020 = vmatprep.subr.mxu0 0.0
        %3021 = vmatpush1.msra.mxu0 %v2911
        %3022 = vmatprep.subr.mxu0 0.0
        %3023 = vmatpush1.msra.mxu0 %v2916
        %3024 = vmatprep.subr.mxu0 0.0
        %3025 = vmatpush1.msra.mxu0 %v2921
        %3026 = vmatprep.subr.mxu0 0.0
        %3027 = vmatpush1.msra.mxu0 %v2926
        %3028 = vmatprep.subr.mxu0 0.0
        %3029 = vmatpush1.msra.mxu0 %v2931
        %3030 = vmatprep.subr.mxu0 0.0
        %3031 = vmatpush1.msra.mxu0 %v2936
        %3032 = vmatprep.subr.mxu0 0.0
        %3033 = vmatpush1.msra.mxu0 %v2941
        %3034 = vmatprep.subr.mxu0 0.0
        %3035 = vmatpush1.msra.mxu0 %v2946
        %3036 = vmatprep.mubr.f32.mxu0 %v2950
        %3037 = vmatmul.mubr.f32.gmra.mrb[0].mxu0 %v2949
        %v3038 = vpop.f32.mrb[0].mxu0
        %v3039 = vadd.f32 %v2970, %v3038
        %v3040 = vpop.f32.mrb[0].mxu0
        %3041 = vmatprep.mubr.f32.mxu0 %v2952
        %3042 = vmatmul.mubr.f32.gmra.mrb[0].mxu0 %v2951
        %v3043 = vpop.f32.mrb[0].mxu0
        %v3044 = vadd.f32 %v2970, %v3043
        %v3045 = vpop.f32.mrb[0].mxu0
        %3046 = vmatprep.mubr.f32.mxu0 %v2954
        %3047 = vmatmul.mubr.f32.gmra.mrb[0].mxu0 %v2953
        %v3048 = vpop.f32.mrb[0].mxu0
        %v3049 = vadd.f32 %v2970, %v3048
        %v3050 = vpop.f32.mrb[0].mxu0
        %3051 = vmatprep.mubr.f32.mxu0 %v2956
        %3052 = vmatmul.mubr.f32.gmra.mrb[0].mxu0 %v2955
        %v3053 = vpop.f32.mrb[0].mxu0
        %v3054 = vadd.f32 %v2970, %v3053
        %v3055 = vpop.f32.mrb[0].mxu0
        %3056 = vmatprep.mubr.f32.mxu0 %v2958
        %3057 = vmatmul.mubr.f32.gmra.mrb[0].mxu0 %v2957
        %v3058 = vpop.f32.mrb[0].mxu0
        %v3059 = vadd.f32 %v2970, %v3058
        %v3060 = vpop.f32.mrb[0].mxu0
        %3061 = vmatprep.mubr.f32.mxu0 %v2960
        %3062 = vmatmul.mubr.f32.gmra.mrb[0].mxu0 %v2959
        %v3063 = vpop.f32.mrb[0].mxu0
        %v3064 = vadd.f32 %v2970, %v3063
        %v3065 = vpop.f32.mrb[0].mxu0
        %3066 = vmatprep.mubr.f32.mxu0 %v2962
        %3067 = vmatmul.mubr.f32.gmra.mrb[0].mxu0 %v2961
        %v3068 = vpop.f32.mrb[0].mxu0
        %v3069 = vadd.f32 %v2970, %v3068
        %v3070 = vpop.f32.mrb[0].mxu0
        %3071 = vmatprep.mubr.f32.mxu0 %v2964
        %3072 = vmatmul.mubr.f32.gmra.mrb[0].mxu0 %v2963
        %v3073 = vpop.f32.mrb[0].mxu0
        %v3074 = vadd.f32 %v2970, %v3073
        %v3075 = vpop.f32.mrb[0].mxu0
        %3076 = vdwg.mxu0
        %v3077 = vmax.f32 %v3039, 0.0
        %v3078 = vmax.f32 %v3044, 0.0
        %v3079 = vmax.f32 %v3049, 0.0
        %v3080 = vmax.f32 %v3054, 0.0
        %v3081 = vmax.f32 %v3059, 0.0
        %v3082 = vmax.f32 %v3064, 0.0
        %v3083 = vmax.f32 %v3069, 0.0
        %v3084 = vmax.f32 %v3074, 0.0
        %v3085 = vsel %vm412, %v3077, 0.0
        %v3086 = vsel %vm412, %v3078, 0.0
        %v3087 = vadd.f32 %v3085, %v3086
        %v3088 = vsel %vm412, %v3079, 0.0
        %v3089 = vadd.f32 %v3087, %v3088
        %v3090 = vsel %vm412, %v3080, 0.0
        %v3091 = vadd.f32 %v3089, %v3090
        %v3092 = vsel %vm412, %v3081, 0.0
        %v3093 = vadd.f32 %v3091, %v3092
        %v3094 = vsel %vm412, %v3082, 0.0
        %v3095 = vadd.f32 %v3093, %v3094
        %v3096 = vsel %vm412, %v3083, 0.0
        %v3097 = vadd.f32 %v3095, %v3096
        %v3098 = vsel %vm412, %v3084, 0.0
        %v3099 = vadd.f32 %v3097, %v3098
        %v3100 = vrot.slane %v3099, 4
        %v3101 = vadd.f32 %v3099, %v3100
        %v3102 = vrot.slane %v3101, 2
        %v3103 = vadd.f32 %v3101, %v3102
        %v3104 = vrot.slane %v3103, 1
        %v3105 = vadd.f32 %v3103, %v3104
        %v3106 = vrcp.pop 64.0
        %v3107 = vmul.f32 %v3105, %v3106
        %v3108 = vld [vmem:[%s6] sm:$0xff]
        %v3109 = vld [vmem:[%s6 + $0x8] sm:$0xff]
        %v3110 = vld [vmem:[%s6 + $0x10] sm:$0xff]
        %v3111 = vld [vmem:[%s6 + $0x18] sm:$0xff]
        %v3112 = vld [vmem:[%s7] sm:$0x1]
        %v3114 = vsel %vm412, %v3107, 0
        %3116 = vmatprep.subr.mxu0 0.0
        %3117 = vmatpush1.msra.mxu0 %v3108
        %3118 = vmatprep.subr.mxu0 0.0
        %3119 = vmatpush1.msra.mxu0 %v3109
        %3120 = vmatprep.subr.mxu0 0.0
        %3121 = vmatpush1.msra.mxu0 %v3110
        %3122 = vmatprep.subr.mxu0 0.0
        %3123 = vmatpush1.msra.mxu0 %v3111
        %3124 = vmatprep.subr.mxu0 0.0
        %3125 = vmatpush1.msra.mxu0 0.0
        %3126 = vmatprep.subr.mxu0 0.0
        %3127 = vmatpush1.msra.mxu0 0.0
        %3128 = vmatprep.subr.mxu0 0.0
        %3129 = vmatpush1.msra.mxu0 0.0
        %3130 = vmatprep.subr.mxu0 0.0
        %3131 = vmatpush1.msra.mxu0 0.0
        %3132 = vmatprep.subr.mxu0 0.0
        %3133 = vmatpush1.msra.mxu0 0.0
        %3134 = vmatprep.subr.mxu0 0.0
        %3135 = vmatpush1.msra.mxu0 0.0
        %3136 = vmatprep.subr.mxu0 0.0
        %3137 = vmatpush1.msra.mxu0 0.0
        %3138 = vmatprep.subr.mxu0 0.0
        %3139 = vmatpush1.msra.mxu0 0.0
        %3140 = vmatprep.subr.mxu0 0.0
        %3141 = vmatpush1.msra.mxu0 0.0
        %3142 = vmatprep.subr.mxu0 0.0
        %3143 = vmatpush1.msra.mxu0 0.0
        %3144 = vmatprep.subr.mxu0 0.0
        %3145 = vmatpush1.msra.mxu0 0.0
        %3146 = vmatprep.subr.mxu0 0.0
        %3147 = vmatpush1.msra.mxu0 0.0
        %3148 = vmatprep.subr.mxu0 0.0
        %3149 = vmatpush1.msra.mxu0 0.0
        %3150 = vmatprep.subr.mxu0 0.0
        %3151 = vmatpush1.msra.mxu0 0.0
        %3152 = vmatprep.subr.mxu0 0.0
        %3153 = vmatpush1.msra.mxu0 0.0
        %3154 = vmatprep.subr.mxu0 0.0
        %3155 = vmatpush1.msra.mxu0 0.0
        %3156 = vmatprep.subr.mxu0 0.0
        %3157 = vmatpush1.msra.mxu0 0.0
        %3158 = vmatprep.subr.mxu0 0.0
        %3159 = vmatpush1.msra.mxu0 0.0
        %3160 = vmatprep.subr.mxu0 0.0
        %3161 = vmatpush1.msra.mxu0 0.0
        %3162 = vmatprep.subr.mxu0 0.0
        %3163 = vmatpush1.msra.mxu0 0.0
        %3164 = vmatprep.subr.mxu0 0.0
        %3165 = vmatpush1.msra.mxu0 0.0
        %3166 = vmatprep.subr.mxu0 0.0
        %3167 = vmatpush1.msra.mxu0 0.0
        %3168 = vmatprep.subr.mxu0 0.0
        %3169 = vmatpush1.msra.mxu0 0.0
        %3170 = vmatprep.subr.mxu0 0.0
        %3171 = vmatpush1.msra.mxu0 0.0
        %3172 = vmatprep.subr.mxu0 0.0
        %3173 = vmatpush1.msra.mxu0 0.0
        %3174 = vmatprep.subr.mxu0 0.0
        %3175 = vmatpush1.msra.mxu0 0.0
        %3176 = vmatprep.subr.mxu0 0.0
        %3177 = vmatpush1.msra.mxu0 0.0
        %3178 = vmatprep.subr.mxu0 0.0
        %3179 = vmatpush1.msra.mxu0 0.0
        %3180 = vmatprep.mubr.f32.mxu0 0.0
        %3181 = vmatmul.mubr.f32.gmra.mrb[0].mxu0 %v3114
        %v3182 = vpop.f32.mrb[0].mxu0
        %v3183 = vadd.f32 %v3112, %v3182
        %v3184 = vpop.f32.mrb[0].mxu0
        %3185 = vdwg.mxu0
        %v3186 = vmax.f32 %v3183, 0.0
        %v3187 = vld [vmem:[%s8] sm:$0xff]
        %v3188 = vld [vmem:[%s9] sm:$0x1]
        %vm3189 = vcmask 64512
        %v3191 = vsel %vm3189, %v3186, 0
        %3193 = vmatprep.subr.mxu0 0.0
        %3194 = vmatpush1.msra.mxu0 %v3187
        %3195 = vmatprep.subr.mxu0 0.0
        %3196 = vmatpush1.msra.mxu0 0.0
        %3197 = vmatprep.subr.mxu0 0.0
        %3198 = vmatpush1.msra.mxu0 0.0
        %3199 = vmatprep.subr.mxu0 0.0
        %3200 = vmatpush1.msra.mxu0 0.0
        %3201 = vmatprep.subr.mxu0 0.0
        %3202 = vmatpush1.msra.mxu0 0.0
        %3203 = vmatprep.subr.mxu0 0.0
        %3204 = vmatpush1.msra.mxu0 0.0
        %3205 = vmatprep.subr.mxu0 0.0
        %3206 = vmatpush1.msra.mxu0 0.0
        %3207 = vmatprep.subr.mxu0 0.0
        %3208 = vmatpush1.msra.mxu0 0.0
        %3209 = vmatprep.subr.mxu0 0.0
        %3210 = vmatpush1.msra.mxu0 0.0
        %3211 = vmatprep.subr.mxu0 0.0
        %3212 = vmatpush1.msra.mxu0 0.0
        %3213 = vmatprep.subr.mxu0 0.0
        %3214 = vmatpush1.msra.mxu0 0.0
        %3215 = vmatprep.subr.mxu0 0.0
        %3216 = vmatpush1.msra.mxu0 0.0
        %3217 = vmatprep.subr.mxu0 0.0
        %3218 = vmatpush1.msra.mxu0 0.0
        %3219 = vmatprep.subr.mxu0 0.0
        %3220 = vmatpush1.msra.mxu0 0.0
        %3221 = vmatprep.subr.mxu0 0.0
        %3222 = vmatpush1.msra.mxu0 0.0
        %3223 = vmatprep.subr.mxu0 0.0
        %3224 = vmatpush1.msra.mxu0 0.0
        %3225 = vmatprep.subr.mxu0 0.0
        %3226 = vmatpush1.msra.mxu0 0.0
        %3227 = vmatprep.subr.mxu0 0.0
        %3228 = vmatpush1.msra.mxu0 0.0
        %3229 = vmatprep.subr.mxu0 0.0
        %3230 = vmatpush1.msra.mxu0 0.0
        %3231 = vmatprep.subr.mxu0 0.0
        %3232 = vmatpush1.msra.mxu0 0.0
        %3233 = vmatprep.subr.mxu0 0.0
        %3234 = vmatpush1.msra.mxu0 0.0
        %3235 = vmatprep.subr.mxu0 0.0
        %3236 = vmatpush1.msra.mxu0 0.0
        %3237 = vmatprep.subr.mxu0 0.0
        %3238 = vmatpush1.msra.mxu0 0.0
        %3239 = vmatprep.subr.mxu0 0.0
        %3240 = vmatpush1.msra.mxu0 0.0
        %3241 = vmatprep.subr.mxu0 0.0
        %3242 = vmatpush1.msra.mxu0 0.0
        %3243 = vmatprep.subr.mxu0 0.0
        %3244 = vmatpush1.msra.mxu0 0.0
        %3245 = vmatprep.subr.mxu0 0.0
        %3246 = vmatpush1.msra.mxu0 0.0
        %3247 = vmatprep.subr.mxu0 0.0
        %3248 = vmatpush1.msra.mxu0 0.0
        %3249 = vmatprep.subr.mxu0 0.0
        %3250 = vmatpush1.msra.mxu0 0.0
        %3251 = vmatprep.subr.mxu0 0.0
        %3252 = vmatpush1.msra.mxu0 0.0
        %3253 = vmatprep.subr.mxu0 0.0
        %3254 = vmatpush1.msra.mxu0 0.0
        %3255 = vmatprep.subr.mxu0 0.0
        %3256 = vmatpush1.msra.mxu0 0.0
        %3257 = vmatprep.mubr.f32.mxu0 0.0
        %3258 = vmatmul.mubr.f32.gmra.mrb[0].mxu0 %v3191
        %v3259 = vpop.f32.mrb[0].mxu0
        %v3260 = vadd.f32 %v3188, %v3259
        %v3261 = vpop.f32.mrb[0].mxu0
        %3262 = vdwg.mxu0
        %v3263 = vxor.u32 %v3260, 2147483648
        %v3264 = vmul.f32 %v3263, 1.442695
        %v3265 = vpow.pop %v3264
        %v3266 = vadd.f32 %v3265, 1.0
        %v3267 = vrcp.pop %v3266
        %v3268 = vmul.f32 1.0, %v3267
        %v3269 = vlaneseq
        %v3270 = vshrl.u32 %v3269, 7
        %v3271 = vsub.s32 0, %v3270
        %v3272 = vrot.slane %v3268, %v3271
        %v3273 = vmul.f32 %v3077, %v3272
        %v3274 = vmul.f32 %v3078, %v3272
        %v3275 = vmul.f32 %v3079, %v3272
        %v3276 = vmul.f32 %v3080, %v3272
        %v3277 = vmul.f32 %v3081, %v3272
        %v3278 = vmul.f32 %v3082, %v3272
        %v3279 = vmul.f32 %v3083, %v3272
        %v3280 = vmul.f32 %v3084, %v3272
        %v3281 = vld [vmem:[%s10] sm:$0xff]
        %v3282 = vld [vmem:[%s10 + $0x8] sm:$0xff]
        %v3283 = vld [vmem:[%s10 + $0x10] sm:$0xff]
        %v3284 = vld [vmem:[%s10 + $0x18] sm:$0xff]
        %v3285 = vld [vmem:[%s11] sm:$0x1]
        %v3287 = vlaneseq
        %v3288 = vshrl.u32 %v3287, 7
        %v3289 = vsub.s32 0, %v3288
        %v3290 = vrot.slane %v3285, %v3289
        %v3293 = vsel %vm412, %v3273, 0
        %v3296 = vsel %vm412, %v3274, 0
        %v3299 = vsel %vm412, %v3275, 0
        %v3302 = vsel %vm412, %v3276, 0
        %v3305 = vsel %vm412, %v3277, 0
        %v3308 = vsel %vm412, %v3278, 0
        %v3311 = vsel %vm412, %v3279, 0
        %v3314 = vsel %vm412, %v3280, 0
        %3316 = vmatprep.subr.mxu0 0.0
        %3317 = vmatpush1.msra.mxu0 %v3281
        %3318 = vmatprep.subr.mxu0 0.0
        %3319 = vmatpush1.msra.mxu0 %v3282
        %3320 = vmatprep.subr.mxu0 0.0
        %3321 = vmatpush1.msra.mxu0 %v3283
        %3322 = vmatprep.subr.mxu0 0.0
        %3323 = vmatpush1.msra.mxu0 %v3284
        %3324 = vmatprep.subr.mxu0 0.0
        %3325 = vmatpush1.msra.mxu0 0.0
        %3326 = vmatprep.subr.mxu0 0.0
        %3327 = vmatpush1.msra.mxu0 0.0
        %3328 = vmatprep.subr.mxu0 0.0
        %3329 = vmatpush1.msra.mxu0 0.0
        %3330 = vmatprep.subr.mxu0 0.0
        %3331 = vmatpush1.msra.mxu0 0.0
        %3332 = vmatprep.subr.mxu0 0.0
        %3333 = vmatpush1.msra.mxu0 0.0
        %3334 = vmatprep.subr.mxu0 0.0
        %3335 = vmatpush1.msra.mxu0 0.0
        %3336 = vmatprep.subr.mxu0 0.0
        %3337 = vmatpush1.msra.mxu0 0.0
        %3338 = vmatprep.subr.mxu0 0.0
        %3339 = vmatpush1.msra.mxu0 0.0
        %3340 = vmatprep.subr.mxu0 0.0
        %3341 = vmatpush1.msra.mxu0 0.0
        %3342 = vmatprep.subr.mxu0 0.0
        %3343 = vmatpush1.msra.mxu0 0.0
        %3344 = vmatprep.subr.mxu0 0.0
        %3345 = vmatpush1.msra.mxu0 0.0
        %3346 = vmatprep.subr.mxu0 0.0
        %3347 = vmatpush1.msra.mxu0 0.0
        %3348 = vmatprep.subr.mxu0 0.0
        %3349 = vmatpush1.msra.mxu0 0.0
        %3350 = vmatprep.subr.mxu0 0.0
        %3351 = vmatpush1.msra.mxu0 0.0
        %3352 = vmatprep.subr.mxu0 0.0
        %3353 = vmatpush1.msra.mxu0 0.0
        %3354 = vmatprep.subr.mxu0 0.0
        %3355 = vmatpush1.msra.mxu0 0.0
        %3356 = vmatprep.subr.mxu0 0.0
        %3357 = vmatpush1.msra.mxu0 0.0
        %3358 = vmatprep.subr.mxu0 0.0
        %3359 = vmatpush1.msra.mxu0 0.0
        %3360 = vmatprep.subr.mxu0 0.0
        %3361 = vmatpush1.msra.mxu0 0.0
        %3362 = vmatprep.subr.mxu0 0.0
        %3363 = vmatpush1.msra.mxu0 0.0
        %3364 = vmatprep.subr.mxu0 0.0
        %3365 = vmatpush1.msra.mxu0 0.0
        %3366 = vmatprep.subr.mxu0 0.0
        %3367 = vmatpush1.msra.mxu0 0.0
        %3368 = vmatprep.subr.mxu0 0.0
        %3369 = vmatpush1.msra.mxu0 0.0
        %3370 = vmatprep.subr.mxu0 0.0
        %3371 = vmatpush1.msra.mxu0 0.0
        %3372 = vmatprep.subr.mxu0 0.0
        %3373 = vmatpush1.msra.mxu0 0.0
        %3374 = vmatprep.subr.mxu0 0.0
        %3375 = vmatpush1.msra.mxu0 0.0
        %3376 = vmatprep.subr.mxu0 0.0
        %3377 = vmatpush1.msra.mxu0 0.0
        %3378 = vmatprep.subr.mxu0 0.0
        %3379 = vmatpush1.msra.mxu0 0.0
        %3380 = vmatprep.mubr.f32.mxu0 0.0
        %3381 = vmatmul.mubr.f32.gmra.mrb[0].mxu0 %v3293
        %v3382 = vpop.f32.mrb[0].mxu0
        %v3383 = vadd.f32 %v3290, %v3382
        %v3384 = vpop.f32.mrb[0].mxu0
        %3385 = vmatprep.mubr.f32.mxu0 0.0
        %3386 = vmatmul.mubr.f32.gmra.mrb[0].mxu0 %v3296
        %v3387 = vpop.f32.mrb[0].mxu0
        %v3388 = vadd.f32 %v3290, %v3387
        %v3389 = vpop.f32.mrb[0].mxu0
        %3390 = vmatprep.mubr.f32.mxu0 0.0
        %3391 = vmatmul.mubr.f32.gmra.mrb[0].mxu0 %v3299
        %v3392 = vpop.f32.mrb[0].mxu0
        %v3393 = vadd.f32 %v3290, %v3392
        %v3394 = vpop.f32.mrb[0].mxu0
        %3395 = vmatprep.mubr.f32.mxu0 0.0
        %3396 = vmatmul.mubr.f32.gmra.mrb[0].mxu0 %v3302
        %v3397 = vpop.f32.mrb[0].mxu0
        %v3398 = vadd.f32 %v3290, %v3397
        %v3399 = vpop.f32.mrb[0].mxu0
        %3400 = vmatprep.mubr.f32.mxu0 0.0
        %3401 = vmatmul.mubr.f32.gmra.mrb[0].mxu0 %v3305
        %v3402 = vpop.f32.mrb[0].mxu0
        %v3403 = vadd.f32 %v3290, %v3402
        %v3404 = vpop.f32.mrb[0].mxu0
        %3405 = vmatprep.mubr.f32.mxu0 0.0
        %3406 = vmatmul.mubr.f32.gmra.mrb[0].mxu0 %v3308
        %v3407 = vpop.f32.mrb[0].mxu0
        %v3408 = vadd.f32 %v3290, %v3407
        %v3409 = vpop.f32.mrb[0].mxu0
        %3410 = vmatprep.mubr.f32.mxu0 0.0
        %3411 = vmatmul.mubr.f32.gmra.mrb[0].mxu0 %v3311
        %v3412 = vpop.f32.mrb[0].mxu0
        %v3413 = vadd.f32 %v3290, %v3412
        %v3414 = vpop.f32.mrb[0].mxu0
        %3415 = vmatprep.mubr.f32.mxu0 0.0
        %3416 = vmatmul.mubr.f32.gmra.mrb[0].mxu0 %v3314
        %v3417 = vpop.f32.mrb[0].mxu0
        %v3418 = vadd.f32 %v3290, %v3417
        %v3419 = vpop.f32.mrb[0].mxu0
        %3420 = vdwg.mxu0
        %vm3421 = vcmask 523264
        %3422 = vst.msk [vmem:[%s406] sm:$0xff] %vm3421, %v3383
        %3423 = vst.msk [vmem:[%s406 + $0x8] sm:$0xff] %vm3421, %v3388
        %3424 = vst.msk [vmem:[%s406 + $0x10] sm:$0xff] %vm3421, %v3393
        %3425 = vst.msk [vmem:[%s406 + $0x18] sm:$0xff] %vm3421, %v3398
        %3426 = vst.msk [vmem:[%s406 + $0x20] sm:$0xff] %vm3421, %v3403
        %3427 = vst.msk [vmem:[%s406 + $0x28] sm:$0xff] %vm3421, %v3408
        %3428 = vst.msk [vmem:[%s406 + $0x30] sm:$0xff] %vm3421, %v3413
        %3429 = vst.msk [vmem:[%s406 + $0x38] sm:$0xff] %vm3421, %v3418
        %s3430 = sand.u32 %s291, 1
        %s3431 = scalar_lea.sflag [#allocation5], %s3430
        %s3432 = sand.u32 %s291, 1
        %s3433 = smul.addr %s3432, 64
        %s3434 = scalar_lea.vmem [#allocation4], %s3433
        // Predicated region
        $region69: #{tpu_custom_call.1} parent=67 // pred_check
          %p3435 = pneg %p301
        $region70: #{tpu_custom_call.1} parent=67 // pred_check_branch
          %3437 = sbr.rel (%p3435) target = $region72
        $region71: #{tpu_custom_call.1} parent=67 // pred_region
          %s3439 = ssub.s32 1024, 1024
          %3440 = vsyncadd %s3431, %s3439
          %s3441 = smul.addr %s26, 8
          %s3442 = smul.addr %s3441, 128
          %s3443 = scalar_lea.hbm %s12, %s3442
          %s3444 = sshll.u32 %s3434, 4
          %s3445 = int_to_ptr.vmem [resolvable:$true] %s3444
          %3450 = dma.vmem_to_hbm [thread:$0]  %s3445, 1024, %s3443, %s3431, 128, 128, 8
        $region72: #{tpu_custom_call.1} parent=67 // pred_fallthru
          _
      $region68: #{tpu_custom_call.1} parent=5 // pred_fallthru
        _
      %p3451 = scmp.le.s32.totalorder 2, %s21
      // Predicated region
      $region73: #{tpu_custom_call.1} parent=5 // pred_check
        %p3452 = pneg %p3451
      $region74: #{tpu_custom_call.1} parent=5 // pred_check_branch
        %3454 = sbr.rel (%p3452) target = $region76
      $region75: #{tpu_custom_call.1} parent=5 // pred_region
        %s3455 = ssub.s32 %s21, 2
        // Predicated region
        $region77: #{tpu_custom_call.1} parent=75 // pred_check
          %p3456 = pneg %p307
        $region78: #{tpu_custom_call.1} parent=75 // pred_check_branch
          %3458 = sbr.rel (%p3456) target = $region80
        $region79: #{tpu_custom_call.1} parent=75 // pred_region
          %s3459 = sand.u32 %s292, 1
          %s3460 = scalar_lea.sflag [#allocation5], %s3459
          %s3461 = sand.u32 %s292, 1
          %s3462 = smul.addr %s3461, 64
          %s3463 = scalar_lea.vmem [#allocation4], %s3462
          %3464 = dma.done %s3460, 1024
        $region80: #{tpu_custom_call.1} parent=75 // pred_fallthru
          _
      $region76: #{tpu_custom_call.1} parent=5 // pred_fallthru
        _
    $region6: #{tpu_custom_call.1} parent=1 // loop_footer
      %s25 = sadd.s32 1, %s21
    $region7: #{tpu_custom_call.1} parent=1 // loop_footer_branch
      %20 = sbr.rel target = $region3
    $region8: #{tpu_custom_call.1} parent=1 // loop_exit
      _
    %3465 = vsyncpa [#allocation5], 1
    %s3466 = scalar_lea.sflag [#allocation5], 1
    %3467 = vsyncpa %s3466, 1

</llo_original>
